<compile_context>
chip_gen: v6e
topology: v6e:2x2x1
jax: 0.10.0
libtpu: 0.0.40
codegen_flags: <defaults>
</compile_context>

<pallas_src>
import functools

import jax
import jax.numpy as jnp
from jax import lax
from jax.experimental import pallas as pl
from jax.experimental.pallas import tpu as pltpu


COMPUTE_DTYPE = jnp.bfloat16              # MXU operand dtype; accumulation stays f32
VMEM_LIMIT_BYTES = 48 * 1024 * 1024       # safe on v5e/v6e (128 MiB) and v7x (64 MiB)


# ----------------------------------------------------------------------------
# Tiling helper
# ----------------------------------------------------------------------------
def _pick_tile(dim, preferred, align):
    """Largest multiple of `align` that divides `dim` and is <= `preferred`;
    falls back to the full dimension (full-block is always legal)."""
    if dim % align != 0:
        return dim
    t = min(preferred, dim)
    t = (t // align) * align
    while t > align and dim % t != 0:
        t -= align
    if t <= 0 or dim % t != 0:
        return dim
    return t


# ----------------------------------------------------------------------------
# Pallas kernels
# ----------------------------------------------------------------------------
def linear_kernel(x_ref, w_ref, b_ref, o_ref, acc_ref, *, activation=None):
    # Tiled y = x @ w + b (optional ReLU).  K is the last grid axis; accumulate
    # in an f32 VMEM scratch and finalize on the last K step.
    @pl.when(pl.program_id(2) == 0)
    def _init():
        acc_ref[...] = jnp.zeros_like(acc_ref)

    acc_ref[...] += jnp.dot(x_ref[...], w_ref[...],
                            preferred_element_type=jnp.float32)

    @pl.when(pl.program_id(2) == pl.num_programs(2) - 1)
    def _finalize():
        y = acc_ref[...] + b_ref[...]
        if activation == "relu":
            y = jnp.maximum(y, 0.0)
        o_ref[...] = y.astype(o_ref.dtype)


def linear_add_ln_kernel(x_ref, w_ref, b_ref, r_ref, g_ref, bln_ref, o_ref,
                         acc_ref):
    # Fused (K-tiled): y = x @ w + b ; z = y + residual ; out = LN(z) * g + bln
    # N stays whole so the LayerNorm statistics see the full row; K is the
    # last grid axis with an f32 VMEM accumulator (keeps VMEM bounded on v7x).
    @pl.when(pl.program_id(1) == 0)
    def _init():
        acc_ref[...] = jnp.zeros_like(acc_ref)

    acc_ref[...] += jnp.dot(x_ref[...], w_ref[...],
                            preferred_element_type=jnp.float32)

    @pl.when(pl.program_id(1) == pl.num_programs(1) - 1)
    def _finalize():
        y = acc_ref[...] + b_ref[...] + r_ref[...]
        mu = jnp.mean(y, axis=-1, keepdims=True)
        var = jnp.mean(jnp.square(y - mu), axis=-1, keepdims=True)
        yn = (y - mu) * lax.rsqrt(var + 1e-5)
        o_ref[...] = (yn * g_ref[...] + bln_ref[...]).astype(o_ref.dtype)


def _attention_core(q, k, v, m, o_ref, acc_ref, n_head):
    # q: [Sq, D] bf16, k/v: [Sk, D] bf16, m: [Sq, Sk] int8 (1 = attend).
    # 1/sqrt(Dh) is already folded into the q-projection weights.
    # Per-head results go straight into the f32 VMEM scratch slice (bounded
    # live ranges, no concatenate); one lane-dense store at the end.
    D = q.shape[-1]
    Dh = D // n_head
    attend = (m != 0)
    for h in range(n_head):                       # static unroll over heads
        sl = slice(h * Dh, (h + 1) * Dh)
        # q @ k^T without forming an explicit transpose of k
        s = lax.dot_general(q[:, sl], k[:, sl], (((1,), (1,)), ((), ())),
                            preferred_element_type=jnp.float32)
        s = jnp.where(attend, s, -1e9)
        s = s - jnp.max(s, axis=-1, keepdims=True)
        p = jnp.exp(s)
        # denom >= 1 here (max-subtraction guarantees one exp(0)=1 per row),
        # so the approx reciprocal is safe even for fully-masked rows.
        p = p * pl.reciprocal(jnp.sum(p, axis=-1, keepdims=True), approx=True)
        acc_ref[:, sl] = jnp.dot(p.astype(v.dtype), v[:, sl],
                                 preferred_element_type=jnp.float32)
    o_ref[0] = acc_ref[...].astype(o_ref.dtype)


def self_attention_kernel(qkv_ref, m_ref, o_ref, acc_ref, *, n_head):
    # qkv: [1, S, 3, D] fused projection output; mask: [1, S, S] int8.
    q = qkv_ref[0, :, 0, :]
    k = qkv_ref[0, :, 1, :]
    v = qkv_ref[0, :, 2, :]
    _attention_core(q, k, v, m_ref[0], o_ref, acc_ref, n_head)


def cross_attention_kernel(q_ref, kv_ref, m_ref, o_ref, acc_ref, *, n_head):
    # q: [1, Sq, D]; kv: [1, Sk, 2, D]; mask: [1, Sq, Sk] int8.
    _attention_core(q_ref[0], kv_ref[0, :, 0, :], kv_ref[0, :, 1, :],
                    m_ref[0], o_ref, acc_ref, n_head)


# ----------------------------------------------------------------------------
# Pallas wrappers
# ----------------------------------------------------------------------------
def pallas_linear(x, w, b, activation=None, out_dtype=jnp.float32):
    # w is bf16 (cast once at init), b is f32 with shape (1, N).
    M, K = x.shape
    N = w.shape[1]
    tm = _pick_tile(M, 512, 16)     # 16 = bf16 sublane packing
    tn = _pick_tile(N, 512, 128)
    tk = _pick_tile(K, 512, 128)
    grid = (M // tm, N // tn, K // tk)
    return pl.pallas_call(
        functools.partial(linear_kernel, activation=activation),
        out_shape=jax.ShapeDtypeStruct((M, N), out_dtype),
        grid_spec=pltpu.PrefetchScalarGridSpec(
            num_scalar_prefetch=0,
            grid=grid,
            in_specs=[
                pl.BlockSpec((tm, tk), lambda i, j, k: (i, k)),
                pl.BlockSpec((tk, tn), lambda i, j, k: (k, j)),
                pl.BlockSpec((1, tn), lambda i, j, k: (0, j)),
            ],
            out_specs=pl.BlockSpec((tm, tn), lambda i, j, k: (i, j)),
            scratch_shapes=[pltpu.VMEM((tm, tn), jnp.float32)],
        ),
        compiler_params=pltpu.CompilerParams(
            dimension_semantics=("parallel", "parallel", "arbitrary"),
            vmem_limit_bytes=VMEM_LIMIT_BYTES),
    )(x.astype(COMPUTE_DTYPE), w, b)


def pallas_linear_add_ln(x, w, b, res, gamma, beta):
    # Fused projection + residual + LayerNorm; M and K tiled, N whole (LN row).
    M, K = x.shape
    N = w.shape[1]
    tm = _pick_tile(M, 256, 16)
    tk = _pick_tile(K, 512, 128)
    grid = (M // tm, K // tk)
    return pl.pallas_call(
        linear_add_ln_kernel,
        out_shape=jax.ShapeDtypeStruct((M, N), jnp.float32),
        grid_spec=pltpu.PrefetchScalarGridSpec(
            num_scalar_prefetch=0,
            grid=grid,
            in_specs=[
                pl.BlockSpec((tm, tk), lambda i, k: (i, k)),
                pl.BlockSpec((tk, N), lambda i, k: (k, 0)),
                pl.BlockSpec((1, N), lambda i, k: (0, 0)),
                pl.BlockSpec((tm, N), lambda i, k: (i, 0)),
                pl.BlockSpec((1, N), lambda i, k: (0, 0)),
                pl.BlockSpec((1, N), lambda i, k: (0, 0)),
            ],
            out_specs=pl.BlockSpec((tm, N), lambda i, k: (i, 0)),
            scratch_shapes=[pltpu.VMEM((tm, N), jnp.float32)],
        ),
        compiler_params=pltpu.CompilerParams(
            dimension_semantics=("parallel", "arbitrary"),
            vmem_limit_bytes=VMEM_LIMIT_BYTES),
    )(x.astype(COMPUTE_DTYPE), w, b, res.astype(jnp.float32), gamma, beta)


def pallas_self_attention(qkv, mask_i8, n_head):
    # qkv: [B, S, 3, D] bf16 (free reshape of the fused [B*S, 3D] projection).
    B, S, _, D = qkv.shape
    return pl.pallas_call(
        functools.partial(self_attention_kernel, n_head=n_head),
        out_shape=jax.ShapeDtypeStruct((B, S, D), COMPUTE_DTYPE),
        grid_spec=pltpu.PrefetchScalarGridSpec(
            num_scalar_prefetch=0,
            grid=(B,),
            in_specs=[
                pl.BlockSpec((1, S, 3, D), lambda b: (b, 0, 0, 0)),
                pl.BlockSpec((1, S, S), lambda b: (b, 0, 0)),
            ],
            out_specs=pl.BlockSpec((1, S, D), lambda b: (b, 0, 0)),
            scratch_shapes=[pltpu.VMEM((S, D), jnp.float32)],
        ),
        compiler_params=pltpu.CompilerParams(
            dimension_semantics=("parallel",),
            vmem_limit_bytes=VMEM_LIMIT_BYTES),
    )(qkv, mask_i8)


def pallas_cross_attention(q, kv, mask_i8, n_head):
    # q: [B, Sq, D] bf16; kv: [B, Sk, 2, D] bf16; mask: [B, Sq, Sk] int8.
    B, Sq, D = q.shape
    Sk = kv.shape[1]
    return pl.pallas_call(
        functools.partial(cross_attention_kernel, n_head=n_head),
        out_shape=jax.ShapeDtypeStruct((B, Sq, D), COMPUTE_DTYPE),
        grid_spec=pltpu.PrefetchScalarGridSpec(
            num_scalar_prefetch=0,
            grid=(B,),
            in_specs=[
                pl.BlockSpec((1, Sq, D), lambda b: (b, 0, 0)),
                pl.BlockSpec((1, Sk, 2, D), lambda b: (b, 0, 0, 0)),
                pl.BlockSpec((1, Sq, Sk), lambda b: (b, 0, 0)),
            ],
            out_specs=pl.BlockSpec((1, Sq, D), lambda b: (b, 0, 0)),
            scratch_shapes=[pltpu.VMEM((Sq, D), jnp.float32)],
        ),
        compiler_params=pltpu.CompilerParams(
            dimension_semantics=("parallel",),
            vmem_limit_bytes=VMEM_LIMIT_BYTES),
    )(q, kv, mask_i8)


# ----------------------------------------------------------------------------
# Model pieces (JAX glue around the Pallas kernels)
# ----------------------------------------------------------------------------
def self_mha(p, x, mask_i8, n_head):
    # Returns concatenated head outputs BEFORE the output projection
    # (wo projection is fused with residual + LN by the caller).
    B, S, D = x.shape
    qkv = pallas_linear(x.reshape(B * S, D), p["w_qkv"], p["b_qkv"],
                        out_dtype=COMPUTE_DTYPE)          # [B*S, 3D]
    qkv = qkv.reshape(B, S, 3, D)                          # contiguous (free) reshape
    o = pallas_self_attention(qkv, mask_i8, n_head)        # [B, S, D]
    return o.reshape(B * S, D)


def cross_mha(p, x_enc, x_dec, mask_i8, n_head):
    B, Sq, D = x_dec.shape
    Sk = x_enc.shape[1]
    q = pallas_linear(x_dec.reshape(B * Sq, D), p["w_q"], p["b_q"],
                      out_dtype=COMPUTE_DTYPE).reshape(B, Sq, D)
    kv = pallas_linear(x_enc.reshape(B * Sk, D), p["w_kv"], p["b_kv"],
                       out_dtype=COMPUTE_DTYPE).reshape(B, Sk, 2, D)
    o = pallas_cross_attention(q, kv, mask_i8, n_head)     # [B, Sq, D]
    return o.reshape(B * Sq, D)


def decoder_layer(p, x_enc, x_dec, future_mask_i8, cross_mask_i8, n_head):
    B, S, D = x_dec.shape
    x2 = x_dec.reshape(B * S, D)

    # masked self-attention -> fused out-proj + residual + LN1  (Dropout1 = identity)
    h = self_mha(p["self_attn"], x_dec, future_mask_i8, n_head)
    x2 = pallas_linear_add_ln(h, p["self_attn"]["wo"], p["self_attn"]["bo"],
                              x2, p["ln1_g"], p["ln1_b"])
    x = x2.reshape(B, S, D)

    # cross-attention -> fused out-proj + residual + LN2         (Dropout2 = identity)
    h = cross_mha(p["cross_attn"], x_enc, x, cross_mask_i8, n_head)
    x2 = pallas_linear_add_ln(h, p["cross_attn"]["wo"], p["cross_attn"]["bo"],
                              x2, p["ln2_g"], p["ln2_b"])

    # FFN: Linear+ReLU -> fused Linear + residual + LN3          (Dropout3 = identity)
    h1 = pallas_linear(x2, p["ffn_w1"], p["ffn_b1"], activation="relu",
                       out_dtype=COMPUTE_DTYPE)
    x2 = pallas_linear_add_ln(h1, p["ffn_w2"], p["ffn_b2"], x2,
                              p["ln3_g"], p["ln3_b"])
    return x2.reshape(B, S, D)


def decoder_forward(params, x_enc, x_dec_tokens, future_mask, cross_mask, n_head):
    B, S = x_dec_tokens.shape
    vocab = params["emb"].shape[0]
    D = params["emb"].shape[1]

    # masks cast to int8 once (4x less HBM traffic than f32 per attention call)
    fm = (future_mask != 0).astype(jnp.int8)
    cm = (cross_mask != 0).astype(jnp.int8)

    # TODO(synk): token-embedding gather kept in plain JAX (data-dependent gather).
    x = jnp.take(params["emb"], x_dec_tokens, axis=0)       # [B, S, D]
    x = x + params["pos"][None, :S, :]                        # sinusoidal PE; dropout = identity

    for layer_p in params["layers"]:
        x = decoder_layer(layer_p, x_enc, x, fm, cm, n_head)

    logits = pallas_linear(x.reshape(B * S, D), params["fc_w"], params["fc_b"])
    return logits[:, :vocab].reshape(B, S, vocab)             # drop vocab padding


# ----------------------------------------------------------------------------
# Deterministic parameter construction (weights stored bf16, cast once here)
# ----------------------------------------------------------------------------
def make_sinusoidal_pe(seq_len, d_model):
    pos = jnp.arange(seq_len, dtype=jnp.float32)[:, None]
    i = jnp.arange(0, d_model, 2, dtype=jnp.float32)[None, :]
    angle = pos / jnp.power(10000.0, i / d_model)
    pe = jnp.zeros((seq_len, d_model), jnp.float32)
    pe = pe.at[:, 0::2].set(jnp.sin(angle))
    pe = pe.at[:, 1::2].set(jnp.cos(angle))
    return pe


def init_params(key, vocab_size, seq_len, d_model, ffn_hidden, n_layer, n_head):
    dh = d_model // n_head
    q_scale = 1.0 / (dh ** 0.5)       # folded into the q projection weights/bias

    def dense(k, fan_in, fan_out):
        return 0.02 * jax.random.normal(k, (fan_in, fan_out), jnp.float32)

    def bf16(w):
        return w.astype(COMPUTE_DTYPE)

    def zeros_row(n):
        return jnp.zeros((1, n), jnp.float32)

    keys = jax.random.split(key, 2 + n_layer)

    # pad logits projection to a multiple of 128 columns (lane-dense stores)
    vocab_pad = ((vocab_size + 127) // 128) * 128
    fc_w = dense(keys[1], d_model, vocab_size)
    fc_w = jnp.pad(fc_w, ((0, 0), (0, vocab_pad - vocab_size)))

    params = {
        "emb": 0.02 * jax.random.normal(keys[0], (vocab_size, d_model), jnp.float32),
        "pos": make_sinusoidal_pe(seq_len, d_model),
        "fc_w": bf16(fc_w),
        "fc_b": zeros_row(vocab_pad),
        "layers": [],
    }
    for li in range(n_layer):
        lk = jax.random.split(keys[2 + li], 12)

        wq = dense(lk[0], d_model, d_model) * q_scale
        wk = dense(lk[1], d_model, d_model)
        wv = dense(lk[2], d_model, d_model)
        self_attn = {
            "w_qkv": bf16(jnp.concatenate([wq, wk, wv], axis=1)),   # [D, 3D]
            "b_qkv": zeros_row(3 * d_model),                        # (q part pre-scaled if nonzero)
            "wo": bf16(dense(lk[3], d_model, d_model)),
            "bo": zeros_row(d_model),
        }

        wq = dense(lk[4], d_model, d_model) * q_scale
        wk = dense(lk[5], d_model, d_model)
        wv = dense(lk[6], d_model, d_model)
        cross_attn = {
            "w_q": bf16(wq),
            "b_q": zeros_row(d_model),
            "w_kv": bf16(jnp.concatenate([wk, wv], axis=1)),        # [D, 2D]
            "b_kv": zeros_row(2 * d_model),
            "wo": bf16(dense(lk[7], d_model, d_model)),
            "bo": zeros_row(d_model),
        }

        layer = {
            "self_attn": self_attn,
            "cross_attn": cross_attn,
            "ln1_g": jnp.ones((1, d_model), jnp.float32), "ln1_b": zeros_row(d_model),
            "ln2_g": jnp.ones((1, d_model), jnp.float32), "ln2_b": zeros_row(d_model),
            "ln3_g": jnp.ones((1, d_model), jnp.float32), "ln3_b": zeros_row(d_model),
            "ffn_w1": bf16(dense(lk[8], d_model, ffn_hidden)), "ffn_b1": zeros_row(ffn_hidden),
            "ffn_w2": bf16(dense(lk[9], ffn_hidden, d_model)), "ffn_b2": zeros_row(d_model),
        }
        params["layers"].append(layer)
    return params


# ----------------------------------------------------------------------------
# Main
# ----------------------------------------------------------------------------
if __name__ == "__main__":
    vocab_size = 32
    seq_len = 8
    d_model = 32
    n_head = 4
    ffn_hidden = 64
    n_layer = 2
    batch = 2

    key = jax.random.PRNGKey(0)
    k_par, k_enc, k_tok = jax.random.split(key, 3)

    params = init_params(k_par, vocab_size, seq_len, d_model, ffn_hidden,
                         n_layer, n_head)

    x_enc = jax.random.normal(k_enc, (batch, seq_len, d_model), jnp.float32)        # encoder output
    x_dec = jax.random.randint(k_tok, (batch, seq_len), 0, vocab_size, jnp.int32)    # decoder token ids

    # masks: 1 = attend, 0 = masked (as in masked_fill(mask == 0, -1e9))
    future_mask = jnp.broadcast_to(
        jnp.tril(jnp.ones((seq_len, seq_len), jnp.float32))[None, :, :],
        (batch, seq_len, seq_len))
    cross_mask = jnp.ones((batch, seq_len, seq_len), jnp.float32)

    fwd = jax.jit(functools.partial(decoder_forward, n_head=n_head))
    out = fwd(params, x_enc, x_dec, future_mask, cross_mask)
    jax.block_until_ready(out)

    assert out.shape == (batch, seq_len, vocab_size)
    assert bool(jnp.all(jnp.isfinite(out)))
    print("KERNEL_OK")
</pallas_src>

<mosaic_0001>
module attributes {stable_mosaic.version = 11 : i64} {
  func.func @linear_kernel(%arg0: i32, %arg1: i32, %arg2: i32, %arg3: memref<16x32xbf16, #tpu.memory_space<vmem>>, %arg4: memref<32x96xbf16, #tpu.memory_space<vmem>>, %arg5: memref<1x96xf32, #tpu.memory_space<vmem>>, %arg6: memref<16x96xbf16, #tpu.memory_space<vmem>>, %arg7: memref<16x96xf32, #tpu.memory_space<vmem>>) attributes {dimension_semantics = [#tpu.dimension_semantics<parallel>, #tpu.dimension_semantics<parallel>, #tpu.dimension_semantics<arbitrary>], iteration_bounds = array<i64: 1, 1, 1>, scalar_prefetch = 0 : i64, scratch_operands = 1 : i64, tpu.core_type = #tpu.core_type<tc>, window_params = [{transform_indices = @transform_0, window_bounds = array<i64: 16, 32>}, {transform_indices = @transform_1, window_bounds = array<i64: 32, 96>}, {transform_indices = @transform_2, window_bounds = array<i64: 1, 96>}, {transform_indices = @transform_3, window_bounds = array<i64: 16, 96>}]} {
    %c0_i32 = arith.constant 0 : i32
    %0 = arith.cmpi eq, %arg2, %c0_i32 : i32
    %1 = arith.extui %0 : i1 to i32
    %c0_i32_0 = arith.constant 0 : i32
    %2 = arith.cmpi ne, %1, %c0_i32_0 : i32
    scf.if %2 {
      %cst_10 = arith.constant 0.000000e+00 : f32
      %12 = vector.broadcast %cst_10 : f32 to vector<16x96xf32>
      %c0_11 = arith.constant 0 : index
      %c0_12 = arith.constant 0 : index
      %13 = vector.load %arg7[%c0_11, %c0_12] : memref<16x96xf32, #tpu.memory_space<vmem>>, vector<16x96xf32>
      tpu.vector_store %arg7[%c0_11, %c0_12], %12 {strides = array<i32>} : memref<16x96xf32, #tpu.memory_space<vmem>>, vector<16x96xf32>,
    } else {
    }
    %c0 = arith.constant 0 : index
    %c0_1 = arith.constant 0 : index
    %3 = vector.load %arg7[%c0, %c0_1] : memref<16x96xf32, #tpu.memory_space<vmem>>, vector<16x96xf32>
    %c0_2 = arith.constant 0 : index
    %c0_3 = arith.constant 0 : index
    %4 = vector.load %arg3[%c0_2, %c0_3] : memref<16x32xbf16, #tpu.memory_space<vmem>>, vector<16x32xbf16>
    %c0_4 = arith.constant 0 : index
    %c0_5 = arith.constant 0 : index
    %5 = vector.load %arg4[%c0_4, %c0_5] : memref<32x96xbf16, #tpu.memory_space<vmem>>, vector<32x96xbf16>
    %cst = arith.constant dense<0.000000e+00> : vector<16x96xf32>
    %6 = tpu.matmul %4, %5, %cst {dimension_numbers = #tpu.dot_dimension_numbers<[1], [0], [0], [1], [0, 0, 1, 1], [], []>} : vector<16x32xbf16>, vector<32x96xbf16>, vector<16x96xf32> -> vector<16x96xf32>
    %7 = arith.addf %3, %6 : vector<16x96xf32>
    %c0_6 = arith.constant 0 : index
    %c0_7 = arith.constant 0 : index
    %8 = vector.load %arg7[%c0_6, %c0_7] : memref<16x96xf32, #tpu.memory_space<vmem>>, vector<16x96xf32>
    tpu.vector_store %arg7[%c0_6, %c0_7], %7 {strides = array<i32>} : memref<16x96xf32, #tpu.memory_space<vmem>>, vector<16x96xf32>,
    %c0_i32_8 = arith.constant 0 : i32
    %9 = arith.cmpi eq, %arg2, %c0_i32_8 : i32
    %10 = arith.extui %9 : i1 to i32
    %c0_i32_9 = arith.constant 0 : i32
    %11 = arith.cmpi ne, %10, %c0_i32_9 : i32
    scf.if %11 {
      %c0_10 = arith.constant 0 : index
      %c0_11 = arith.constant 0 : index
      %12 = vector.load %arg7[%c0_10, %c0_11] : memref<16x96xf32, #tpu.memory_space<vmem>>, vector<16x96xf32>
      %c0_12 = arith.constant 0 : index
      %c0_13 = arith.constant 0 : index
      %13 = vector.load %arg5[%c0_12, %c0_13] : memref<1x96xf32, #tpu.memory_space<vmem>>, vector<1x96xf32>
      %14 = vector.broadcast %13 : vector<1x96xf32> to vector<16x96xf32>
      %15 = arith.addf %12, %14 : vector<16x96xf32>
      %16 = arith.truncf %15 : vector<16x96xf32> to vector<16x96xbf16>
      %c0_14 = arith.constant 0 : index
      %c0_15 = arith.constant 0 : index
      %17 = vector.load %arg6[%c0_14, %c0_15] : memref<16x96xbf16, #tpu.memory_space<vmem>>, vector<16x96xbf16>
      tpu.vector_store %arg6[%c0_14, %c0_15], %16 {strides = array<i32>} : memref<16x96xbf16, #tpu.memory_space<vmem>>, vector<16x96xbf16>,
    } else {
    }
    return
  }
  func.func @transform_0(%arg0: i32, %arg1: i32, %arg2: i32) -> (i32, i32) {
    %c0_i32 = arith.constant 0 : i32
    return %arg0, %arg2 : i32, i32
  }
  func.func @transform_1(%arg0: i32, %arg1: i32, %arg2: i32) -> (i32, i32) {
    %c0_i32 = arith.constant 0 : i32
    return %arg2, %arg1 : i32, i32
  }
  func.func @transform_2(%arg0: i32, %arg1: i32, %arg2: i32) -> (i32, i32) {
    %c0_i32 = arith.constant 0 : i32
    %c0_i32_0 = arith.constant 0 : i32
    return %c0_i32, %arg1 : i32, i32
  }
  func.func @transform_3(%arg0: i32, %arg1: i32, %arg2: i32) -> (i32, i32) {
    %c0_i32 = arith.constant 0 : i32
    return %arg0, %arg1 : i32, i32
  }
}

module attributes {stable_mosaic.version = 11 : i64} {
  func.func @linear_add_ln_kernel(%arg0: i32, %arg1: i32, %arg2: memref<16x32xbf16, #tpu.memory_space<vmem>>, %arg3: memref<32x32xbf16, #tpu.memory_space<vmem>>, %arg4: memref<1x32xf32, #tpu.memory_space<vmem>>, %arg5: memref<16x32xf32, #tpu.memory_space<vmem>>, %arg6: memref<1x32xf32, #tpu.memory_space<vmem>>, %arg7: memref<1x32xf32, #tpu.memory_space<vmem>>, %arg8: memref<16x32xf32, #tpu.memory_space<vmem>>, %arg9: memref<16x32xf32, #tpu.memory_space<vmem>>) attributes {dimension_semantics = [#tpu.dimension_semantics<parallel>, #tpu.dimension_semantics<arbitrary>], iteration_bounds = array<i64: 1, 1>, scalar_prefetch = 0 : i64, scratch_operands = 1 : i64, tpu.core_type = #tpu.core_type<tc>, window_params = [{transform_indices = @transform_0, window_bounds = array<i64: 16, 32>}, {transform_indices = @transform_1, window_bounds = array<i64: 32, 32>}, {pipeline_mode = #tpu.pipeline_mode<synchronous>, transform_indices = @transform_2, window_bounds = array<i64: 1, 32>}, {transform_indices = @transform_3, window_bounds = array<i64: 16, 32>}, {pipeline_mode = #tpu.pipeline_mode<synchronous>, transform_indices = @transform_4, window_bounds = array<i64: 1, 32>}, {pipeline_mode = #tpu.pipeline_mode<synchronous>, transform_indices = @transform_5, window_bounds = array<i64: 1, 32>}, {transform_indices = @transform_6, window_bounds = array<i64: 16, 32>}]} {
    %c0_i32 = arith.constant 0 : i32
    %0 = arith.cmpi eq, %arg1, %c0_i32 : i32
    %1 = arith.extui %0 : i1 to i32
    %c0_i32_0 = arith.constant 0 : i32
    %2 = arith.cmpi ne, %1, %c0_i32_0 : i32
    scf.if %2 {
      %cst_10 = arith.constant 0.000000e+00 : f32
      %12 = vector.broadcast %cst_10 : f32 to vector<16x32xf32>
      %c0_11 = arith.constant 0 : index
      %c0_12 = arith.constant 0 : index
      %13 = vector.load %arg9[%c0_11, %c0_12] : memref<16x32xf32, #tpu.memory_space<vmem>>, vector<16x32xf32>
      tpu.vector_store %arg9[%c0_11, %c0_12], %12 {strides = array<i32>} : memref<16x32xf32, #tpu.memory_space<vmem>>, vector<16x32xf32>,
    } else {
    }
    %c0 = arith.constant 0 : index
    %c0_1 = arith.constant 0 : index
    %3 = vector.load %arg9[%c0, %c0_1] : memref<16x32xf32, #tpu.memory_space<vmem>>, vector<16x32xf32>
    %c0_2 = arith.constant 0 : index
    %c0_3 = arith.constant 0 : index
    %4 = vector.load %arg2[%c0_2, %c0_3] : memref<16x32xbf16, #tpu.memory_space<vmem>>, vector<16x32xbf16>
    %c0_4 = arith.constant 0 : index
    %c0_5 = arith.constant 0 : index
    %5 = vector.load %arg3[%c0_4, %c0_5] : memref<32x32xbf16, #tpu.memory_space<vmem>>, vector<32x32xbf16>
    %cst = arith.constant dense<0.000000e+00> : vector<16x32xf32>
    %6 = tpu.matmul %4, %5, %cst {dimension_numbers = #tpu.dot_dimension_numbers<[1], [0], [0], [1], [0, 0, 1, 1], [], []>} : vector<16x32xbf16>, vector<32x32xbf16>, vector<16x32xf32> -> vector<16x32xf32>
    %7 = arith.addf %3, %6 : vector<16x32xf32>
    %c0_6 = arith.constant 0 : index
    %c0_7 = arith.constant 0 : index
    %8 = vector.load %arg9[%c0_6, %c0_7] : memref<16x32xf32, #tpu.memory_space<vmem>>, vector<16x32xf32>
    tpu.vector_store %arg9[%c0_6, %c0_7], %7 {strides = array<i32>} : memref<16x32xf32, #tpu.memory_space<vmem>>, vector<16x32xf32>,
    %c0_i32_8 = arith.constant 0 : i32
    %9 = arith.cmpi eq, %arg1, %c0_i32_8 : i32
    %10 = arith.extui %9 : i1 to i32
    %c0_i32_9 = arith.constant 0 : i32
    %11 = arith.cmpi ne, %10, %c0_i32_9 : i32
    scf.if %11 {
      %c0_10 = arith.constant 0 : index
      %c0_11 = arith.constant 0 : index
      %12 = vector.load %arg9[%c0_10, %c0_11] : memref<16x32xf32, #tpu.memory_space<vmem>>, vector<16x32xf32>
      %c0_12 = arith.constant 0 : index
      %c0_13 = arith.constant 0 : index
      %13 = vector.load %arg4[%c0_12, %c0_13] : memref<1x32xf32, #tpu.memory_space<vmem>>, vector<1x32xf32>
      %14 = vector.broadcast %13 : vector<1x32xf32> to vector<16x32xf32>
      %15 = arith.addf %12, %14 : vector<16x32xf32>
      %c0_14 = arith.constant 0 : index
      %c0_15 = arith.constant 0 : index
      %16 = vector.load %arg5[%c0_14, %c0_15] : memref<16x32xf32, #tpu.memory_space<vmem>>, vector<16x32xf32>
      %17 = arith.addf %15, %16 : vector<16x32xf32>
      %cst_16 = arith.constant dense<0.000000e+00> : vector<16xf32>
      %18 = vector.multi_reduction <add>, %17, %cst_16 [1] : vector<16x32xf32> to vector<16xf32>
      %19 = vector.shape_cast %18 : vector<16xf32> to vector<16x1xf32>
      %cst_17 = arith.constant 3.200000e+01 : f32
      %20 = vector.broadcast %cst_17 : f32 to vector<16x1xf32>
      %21 = arith.divf %19, %20 : vector<16x1xf32>
      %22 = vector.broadcast %21 : vector<16x1xf32> to vector<16x32xf32>
      %23 = arith.subf %17, %22 : vector<16x32xf32>
      %24 = arith.mulf %23, %23 : vector<16x32xf32>
      %cst_18 = arith.constant dense<0.000000e+00> : vector<16xf32>
      %25 = vector.multi_reduction <add>, %24, %cst_18 [1] : vector<16x32xf32> to vector<16xf32>
      %26 = vector.shape_cast %25 : vector<16xf32> to vector<16x1xf32>
      %cst_19 = arith.constant 3.200000e+01 : f32
      %27 = vector.broadcast %cst_19 : f32 to vector<16x1xf32>
      %28 = arith.divf %26, %27 : vector<16x1xf32>
      %29 = vector.broadcast %21 : vector<16x1xf32> to vector<16x32xf32>
      %30 = arith.subf %17, %29 : vector<16x32xf32>
      %cst_20 = arith.constant 9.99999974E-6 : f32
      %31 = vector.broadcast %cst_20 : f32 to vector<16x1xf32>
      %32 = arith.addf %28, %31 : vector<16x1xf32>
      %33 = math.rsqrt %32 : vector<16x1xf32>
      %34 = vector.broadcast %33 : vector<16x1xf32> to vector<16x32xf32>
      %35 = arith.mulf %30, %34 : vector<16x32xf32>
      %c0_21 = arith.constant 0 : index
      %c0_22 = arith.constant 0 : index
      %36 = vector.load %arg6[%c0_21, %c0_22] : memref<1x32xf32, #tpu.memory_space<vmem>>, vector<1x32xf32>
      %37 = vector.broadcast %36 : vector<1x32xf32> to vector<16x32xf32>
      %38 = arith.mulf %35, %37 : vector<16x32xf32>
      %c0_23 = arith.constant 0 : index
      %c0_24 = arith.constant 0 : index
      %39 = vector.load %arg7[%c0_23, %c0_24] : memref<1x32xf32, #tpu.memory_space<vmem>>, vector<1x32xf32>
      %40 = vector.broadcast %39 : vector<1x32xf32> to vector<16x32xf32>
      %41 = arith.addf %38, %40 : vector<16x32xf32>
      %c0_25 = arith.constant 0 : index
      %c0_26 = arith.constant 0 : index
      %42 = vector.load %arg8[%c0_25, %c0_26] : memref<16x32xf32, #tpu.memory_space<vmem>>, vector<16x32xf32>
      tpu.vector_store %arg8[%c0_25, %c0_26], %41 {strides = array<i32>} : memref<16x32xf32, #tpu.memory_space<vmem>>, vector<16x32xf32>,
    } else {
    }
    return
  }
  func.func @transform_0(%arg0: i32, %arg1: i32) -> (i32, i32) {
    %c0_i32 = arith.constant 0 : i32
    return %arg0, %arg1 : i32, i32
  }
  func.func @transform_1(%arg0: i32, %arg1: i32) -> (i32, i32) {
    %c0_i32 = arith.constant 0 : i32
    %c0_i32_0 = arith.constant 0 : i32
    return %arg1, %c0_i32 : i32, i32
  }
  func.func @transform_2(%arg0: i32, %arg1: i32) -> (i32, i32) {
    %c0_i32 = arith.constant 0 : i32
    %c0_i32_0 = arith.constant 0 : i32
    %c0_i32_1 = arith.constant 0 : i32
    return %c0_i32, %c0_i32_0 : i32, i32
  }
  func.func @transform_3(%arg0: i32, %arg1: i32) -> (i32, i32) {
    %c0_i32 = arith.constant 0 : i32
    %c0_i32_0 = arith.constant 0 : i32
    return %arg0, %c0_i32 : i32, i32
  }
  func.func @transform_4(%arg0: i32, %arg1: i32) -> (i32, i32) {
    %c0_i32 = arith.constant 0 : i32
    %c0_i32_0 = arith.constant 0 : i32
    %c0_i32_1 = arith.constant 0 : i32
    return %c0_i32, %c0_i32_0 : i32, i32
  }
  func.func @transform_5(%arg0: i32, %arg1: i32) -> (i32, i32) {
    %c0_i32 = arith.constant 0 : i32
    %c0_i32_0 = arith.constant 0 : i32
    %c0_i32_1 = arith.constant 0 : i32
    return %c0_i32, %c0_i32_0 : i32, i32
  }
  func.func @transform_6(%arg0: i32, %arg1: i32) -> (i32, i32) {
    %c0_i32 = arith.constant 0 : i32
    %c0_i32_0 = arith.constant 0 : i32
    return %arg0, %c0_i32 : i32, i32
  }
}

module attributes {stable_mosaic.version = 11 : i64} {
  func.func @self_attention_kernel(%arg0: i32, %arg1: memref<1x8x3x32xbf16, #tpu.memory_space<vmem>>, %arg2: memref<1x8x8xi8, #tpu.memory_space<vmem>>, %arg3: memref<1x8x32xbf16, #tpu.memory_space<vmem>>, %arg4: memref<8x32xf32, #tpu.memory_space<vmem>>) attributes {dimension_semantics = [#tpu.dimension_semantics<parallel>], iteration_bounds = array<i64: 2>, scalar_prefetch = 0 : i64, scratch_operands = 1 : i64, tpu.core_type = #tpu.core_type<tc>, window_params = [{transform_indices = @transform_0, window_bounds = array<i64: 1, 8, 3, 32>}, {transform_indices = @transform_1, window_bounds = array<i64: 1, 8, 8>}, {transform_indices = @transform_2, window_bounds = array<i64: 1, 8, 32>}]} {
    %c0 = arith.constant 0 : index
    %c0_0 = arith.constant 0 : index
    %c0_1 = arith.constant 0 : index
    %c0_2 = arith.constant 0 : index
    %0 = vector.load %arg1[%c0, %c0_0, %c0_1, %c0_2] : memref<1x8x3x32xbf16, #tpu.memory_space<vmem>>, vector<1x8x1x32xbf16>
    %1 = vector.shape_cast %0 : vector<1x8x1x32xbf16> to vector<8x32xbf16>
    %c0_3 = arith.constant 0 : index
    %c0_4 = arith.constant 0 : index
    %c1 = arith.constant 1 : index
    %c0_5 = arith.constant 0 : index
    %2 = vector.load %arg1[%c0_3, %c0_4, %c1, %c0_5] : memref<1x8x3x32xbf16, #tpu.memory_space<vmem>>, vector<1x8x1x32xbf16>
    %3 = vector.shape_cast %2 : vector<1x8x1x32xbf16> to vector<8x32xbf16>
    %c0_6 = arith.constant 0 : index
    %c0_7 = arith.constant 0 : index
    %c2 = arith.constant 2 : index
    %c0_8 = arith.constant 0 : index
    %4 = vector.load %arg1[%c0_6, %c0_7, %c2, %c0_8] : memref<1x8x3x32xbf16, #tpu.memory_space<vmem>>, vector<1x8x1x32xbf16>
    %5 = vector.shape_cast %4 : vector<1x8x1x32xbf16> to vector<8x32xbf16>
    %c0_9 = arith.constant 0 : index
    %c0_10 = arith.constant 0 : index
    %c0_11 = arith.constant 0 : index
    %6 = vector.load %arg2[%c0_9, %c0_10, %c0_11] : memref<1x8x8xi8, #tpu.memory_space<vmem>>, vector<1x8x8xi8>
    %7 = vector.shape_cast %6 : vector<1x8x8xi8> to vector<8x8xi8>
    %c0_i8 = arith.constant 0 : i8
    %8 = vector.broadcast %c0_i8 : i8 to vector<8x8xi8>
    %9 = arith.cmpi ne, %7, %8 : vector<8x8xi8>
    %10 = vector.extract_strided_slice %1 {offsets = [0, 0], sizes = [8, 8], strides = [1, 1]} : vector<8x32xbf16> to vector<8x8xbf16>
    %11 = vector.extract_strided_slice %3 {offsets = [0, 0], sizes = [8, 8], strides = [1, 1]} : vector<8x32xbf16> to vector<8x8xbf16>
    %cst = arith.constant dense<0.000000e+00> : vector<8x8xf32>
    %12 = tpu.matmul %10, %11, %cst {dimension_numbers = #tpu.dot_dimension_numbers<[1], [1], [0], [0], [0, 0, 1, 0], [], []>} : vector<8x8xbf16>, vector<8x8xbf16>, vector<8x8xf32> -> vector<8x8xf32>
    %cst_12 = arith.constant -1.000000e+09 : f32
    %13 = vector.broadcast %cst_12 : f32 to vector<8x8xf32>
    %14 = arith.select %9, %12, %13 : vector<8x8xi1>, vector<8x8xf32>
    %cst_13 = arith.constant dense<0xFF800000> : vector<8xf32>
    %15 = vector.multi_reduction <maximumf>, %14, %cst_13 [1] : vector<8x8xf32> to vector<8xf32>
    %16 = vector.shape_cast %15 : vector<8xf32> to vector<8x1xf32>
    %17 = vector.broadcast %16 : vector<8x1xf32> to vector<8x8xf32>
    %18 = arith.subf %14, %17 : vector<8x8xf32>
    %19 = math.exp %18 : vector<8x8xf32>
    %cst_14 = arith.constant dense<0.000000e+00> : vector<8xf32>
    %20 = vector.multi_reduction <add>, %19, %cst_14 [1] : vector<8x8xf32> to vector<8xf32>
    %21 = vector.shape_cast %20 : vector<8xf32> to vector<8x1xf32>
    %22 = tpu.reciprocal %21 {approx = true} : vector<8x1xf32> -> vector<8x1xf32>
    %23 = vector.broadcast %22 : vector<8x1xf32> to vector<8x8xf32>
    %24 = arith.mulf %19, %23 : vector<8x8xf32>
    %25 = arith.truncf %24 : vector<8x8xf32> to vector<8x8xbf16>
    %26 = vector.extract_strided_slice %5 {offsets = [0, 0], sizes = [8, 8], strides = [1, 1]} : vector<8x32xbf16> to vector<8x8xbf16>
    %cst_15 = arith.constant dense<0.000000e+00> : vector<8x8xf32>
    %27 = tpu.matmul %25, %26, %cst_15 {dimension_numbers = #tpu.dot_dimension_numbers<[1], [0], [0], [1], [0, 0, 1, 1], [], []>} : vector<8x8xbf16>, vector<8x8xbf16>, vector<8x8xf32> -> vector<8x8xf32>
    %c0_16 = arith.constant 0 : index
    %c0_17 = arith.constant 0 : index
    %28 = vector.load %arg4[%c0_16, %c0_17] : memref<8x32xf32, #tpu.memory_space<vmem>>, vector<8x8xf32>
    tpu.vector_store %arg4[%c0_16, %c0_17], %27 {strides = array<i32>} : memref<8x32xf32, #tpu.memory_space<vmem>>, vector<8x8xf32>,
    %29 = vector.extract_strided_slice %1 {offsets = [0, 8], sizes = [8, 8], strides = [1, 1]} : vector<8x32xbf16> to vector<8x8xbf16>
    %30 = vector.extract_strided_slice %3 {offsets = [0, 8], sizes = [8, 8], strides = [1, 1]} : vector<8x32xbf16> to vector<8x8xbf16>
    %cst_18 = arith.constant dense<0.000000e+00> : vector<8x8xf32>
    %31 = tpu.matmul %29, %30, %cst_18 {dimension_numbers = #tpu.dot_dimension_numbers<[1], [1], [0], [0], [0, 0, 1, 0], [], []>} : vector<8x8xbf16>, vector<8x8xbf16>, vector<8x8xf32> -> vector<8x8xf32>
    %cst_19 = arith.constant -1.000000e+09 : f32
    %32 = vector.broadcast %cst_19 : f32 to vector<8x8xf32>
    %33 = arith.select %9, %31, %32 : vector<8x8xi1>, vector<8x8xf32>
    %cst_20 = arith.constant dense<0xFF800000> : vector<8xf32>
    %34 = vector.multi_reduction <maximumf>, %33, %cst_20 [1] : vector<8x8xf32> to vector<8xf32>
    %35 = vector.shape_cast %34 : vector<8xf32> to vector<8x1xf32>
    %36 = vector.broadcast %35 : vector<8x1xf32> to vector<8x8xf32>
    %37 = arith.subf %33, %36 : vector<8x8xf32>
    %38 = math.exp %37 : vector<8x8xf32>
    %cst_21 = arith.constant dense<0.000000e+00> : vector<8xf32>
    %39 = vector.multi_reduction <add>, %38, %cst_21 [1] : vector<8x8xf32> to vector<8xf32>
    %40 = vector.shape_cast %39 : vector<8xf32> to vector<8x1xf32>
    %41 = tpu.reciprocal %40 {approx = true} : vector<8x1xf32> -> vector<8x1xf32>
    %42 = vector.broadcast %41 : vector<8x1xf32> to vector<8x8xf32>
    %43 = arith.mulf %38, %42 : vector<8x8xf32>
    %44 = arith.truncf %43 : vector<8x8xf32> to vector<8x8xbf16>
    %45 = vector.extract_strided_slice %5 {offsets = [0, 8], sizes = [8, 8], strides = [1, 1]} : vector<8x32xbf16> to vector<8x8xbf16>
    %cst_22 = arith.constant dense<0.000000e+00> : vector<8x8xf32>
    %46 = tpu.matmul %44, %45, %cst_22 {dimension_numbers = #tpu.dot_dimension_numbers<[1], [0], [0], [1], [0, 0, 1, 1], [], []>} : vector<8x8xbf16>, vector<8x8xbf16>, vector<8x8xf32> -> vector<8x8xf32>
    %c0_23 = arith.constant 0 : index
    %c8 = arith.constant 8 : index
    %47 = vector.load %arg4[%c0_23, %c8] : memref<8x32xf32, #tpu.memory_space<vmem>>, vector<8x8xf32>
    tpu.vector_store %arg4[%c0_23, %c8], %46 {strides = array<i32>} : memref<8x32xf32, #tpu.memory_space<vmem>>, vector<8x8xf32>,
    %48 = vector.extract_strided_slice %1 {offsets = [0, 16], sizes = [8, 8], strides = [1, 1]} : vector<8x32xbf16> to vector<8x8xbf16>
    %49 = vector.extract_strided_slice %3 {offsets = [0, 16], sizes = [8, 8], strides = [1, 1]} : vector<8x32xbf16> to vector<8x8xbf16>
    %cst_24 = arith.constant dense<0.000000e+00> : vector<8x8xf32>
    %50 = tpu.matmul %48, %49, %cst_24 {dimension_numbers = #tpu.dot_dimension_numbers<[1], [1], [0], [0], [0, 0, 1, 0], [], []>} : vector<8x8xbf16>, vector<8x8xbf16>, vector<8x8xf32> -> vector<8x8xf32>
    %cst_25 = arith.constant -1.000000e+09 : f32
    %51 = vector.broadcast %cst_25 : f32 to vector<8x8xf32>
    %52 = arith.select %9, %50, %51 : vector<8x8xi1>, vector<8x8xf32>
    %cst_26 = arith.constant dense<0xFF800000> : vector<8xf32>
    %53 = vector.multi_reduction <maximumf>, %52, %cst_26 [1] : vector<8x8xf32> to vector<8xf32>
    %54 = vector.shape_cast %53 : vector<8xf32> to vector<8x1xf32>
    %55 = vector.broadcast %54 : vector<8x1xf32> to vector<8x8xf32>
    %56 = arith.subf %52, %55 : vector<8x8xf32>
    %57 = math.exp %56 : vector<8x8xf32>
    %cst_27 = arith.constant dense<0.000000e+00> : vector<8xf32>
    %58 = vector.multi_reduction <add>, %57, %cst_27 [1] : vector<8x8xf32> to vector<8xf32>
    %59 = vector.shape_cast %58 : vector<8xf32> to vector<8x1xf32>
    %60 = tpu.reciprocal %59 {approx = true} : vector<8x1xf32> -> vector<8x1xf32>
    %61 = vector.broadcast %60 : vector<8x1xf32> to vector<8x8xf32>
    %62 = arith.mulf %57, %61 : vector<8x8xf32>
    %63 = arith.truncf %62 : vector<8x8xf32> to vector<8x8xbf16>
    %64 = vector.extract_strided_slice %5 {offsets = [0, 16], sizes = [8, 8], strides = [1, 1]} : vector<8x32xbf16> to vector<8x8xbf16>
    %cst_28 = arith.constant dense<0.000000e+00> : vector<8x8xf32>
    %65 = tpu.matmul %63, %64, %cst_28 {dimension_numbers = #tpu.dot_dimension_numbers<[1], [0], [0], [1], [0, 0, 1, 1], [], []>} : vector<8x8xbf16>, vector<8x8xbf16>, vector<8x8xf32> -> vector<8x8xf32>
    %c0_29 = arith.constant 0 : index
    %c16 = arith.constant 16 : index
    %66 = vector.load %arg4[%c0_29, %c16] : memref<8x32xf32, #tpu.memory_space<vmem>>, vector<8x8xf32>
    tpu.vector_store %arg4[%c0_29, %c16], %65 {strides = array<i32>} : memref<8x32xf32, #tpu.memory_space<vmem>>, vector<8x8xf32>,
    %67 = vector.extract_strided_slice %1 {offsets = [0, 24], sizes = [8, 8], strides = [1, 1]} : vector<8x32xbf16> to vector<8x8xbf16>
    %68 = vector.extract_strided_slice %3 {offsets = [0, 24], sizes = [8, 8], strides = [1, 1]} : vector<8x32xbf16> to vector<8x8xbf16>
    %cst_30 = arith.constant dense<0.000000e+00> : vector<8x8xf32>
    %69 = tpu.matmul %67, %68, %cst_30 {dimension_numbers = #tpu.dot_dimension_numbers<[1], [1], [0], [0], [0, 0, 1, 0], [], []>} : vector<8x8xbf16>, vector<8x8xbf16>, vector<8x8xf32> -> vector<8x8xf32>
    %cst_31 = arith.constant -1.000000e+09 : f32
    %70 = vector.broadcast %cst_31 : f32 to vector<8x8xf32>
    %71 = arith.select %9, %69, %70 : vector<8x8xi1>, vector<8x8xf32>
    %cst_32 = arith.constant dense<0xFF800000> : vector<8xf32>
    %72 = vector.multi_reduction <maximumf>, %71, %cst_32 [1] : vector<8x8xf32> to vector<8xf32>
    %73 = vector.shape_cast %72 : vector<8xf32> to vector<8x1xf32>
    %74 = vector.broadcast %73 : vector<8x1xf32> to vector<8x8xf32>
    %75 = arith.subf %71, %74 : vector<8x8xf32>
    %76 = math.exp %75 : vector<8x8xf32>
    %cst_33 = arith.constant dense<0.000000e+00> : vector<8xf32>
    %77 = vector.multi_reduction <add>, %76, %cst_33 [1] : vector<8x8xf32> to vector<8xf32>
    %78 = vector.shape_cast %77 : vector<8xf32> to vector<8x1xf32>
    %79 = tpu.reciprocal %78 {approx = true} : vector<8x1xf32> -> vector<8x1xf32>
    %80 = vector.broadcast %79 : vector<8x1xf32> to vector<8x8xf32>
    %81 = arith.mulf %76, %80 : vector<8x8xf32>
    %82 = arith.truncf %81 : vector<8x8xf32> to vector<8x8xbf16>
    %83 = vector.extract_strided_slice %5 {offsets = [0, 24], sizes = [8, 8], strides = [1, 1]} : vector<8x32xbf16> to vector<8x8xbf16>
    %cst_34 = arith.constant dense<0.000000e+00> : vector<8x8xf32>
    %84 = tpu.matmul %82, %83, %cst_34 {dimension_numbers = #tpu.dot_dimension_numbers<[1], [0], [0], [1], [0, 0, 1, 1], [], []>} : vector<8x8xbf16>, vector<8x8xbf16>, vector<8x8xf32> -> vector<8x8xf32>
    %c0_35 = arith.constant 0 : index
    %c24 = arith.constant 24 : index
    %85 = vector.load %arg4[%c0_35, %c24] : memref<8x32xf32, #tpu.memory_space<vmem>>, vector<8x8xf32>
    tpu.vector_store %arg4[%c0_35, %c24], %84 {strides = array<i32>} : memref<8x32xf32, #tpu.memory_space<vmem>>, vector<8x8xf32>,
    %c0_36 = arith.constant 0 : index
    %c0_37 = arith.constant 0 : index
    %86 = vector.load %arg4[%c0_36, %c0_37] : memref<8x32xf32, #tpu.memory_space<vmem>>, vector<8x32xf32>
    %87 = arith.truncf %86 : vector<8x32xf32> to vector<8x32xbf16>
    %c0_38 = arith.constant 0 : index
    %c0_39 = arith.constant 0 : index
    %c0_40 = arith.constant 0 : index
    %88 = vector.load %arg3[%c0_38, %c0_39, %c0_40] : memref<1x8x32xbf16, #tpu.memory_space<vmem>>, vector<1x8x32xbf16>
    %89 = vector.shape_cast %88 : vector<1x8x32xbf16> to vector<8x32xbf16>
    %90 = vector.shape_cast %87 : vector<8x32xbf16> to vector<1x8x32xbf16>
    tpu.vector_store %arg3[%c0_38, %c0_39, %c0_40], %90 {strides = array<i32>} : memref<1x8x32xbf16, #tpu.memory_space<vmem>>, vector<1x8x32xbf16>,
    return
  }
  func.func @transform_0(%arg0: i32) -> (i32, i32, i32, i32) {
    %c0_i32 = arith.constant 0 : i32
    %c0_i32_0 = arith.constant 0 : i32
    %c0_i32_1 = arith.constant 0 : i32
    %c0_i32_2 = arith.constant 0 : i32
    return %arg0, %c0_i32, %c0_i32_0, %c0_i32_1 : i32, i32, i32, i32
  }
  func.func @transform_1(%arg0: i32) -> (i32, i32, i32) {
    %c0_i32 = arith.constant 0 : i32
    %c0_i32_0 = arith.constant 0 : i32
    %c0_i32_1 = arith.constant 0 : i32
    return %arg0, %c0_i32, %c0_i32_0 : i32, i32, i32
  }
  func.func @transform_2(%arg0: i32) -> (i32, i32, i32) {
    %c0_i32 = arith.constant 0 : i32
    %c0_i32_0 = arith.constant 0 : i32
    %c0_i32_1 = arith.constant 0 : i32
    return %arg0, %c0_i32, %c0_i32_0 : i32, i32, i32
  }
}

module attributes {stable_mosaic.version = 11 : i64} {
  func.func @linear_kernel(%arg0: i32, %arg1: i32, %arg2: i32, %arg3: memref<16x32xbf16, #tpu.memory_space<vmem>>, %arg4: memref<32x32xbf16, #tpu.memory_space<vmem>>, %arg5: memref<1x32xf32, #tpu.memory_space<vmem>>, %arg6: memref<16x32xbf16, #tpu.memory_space<vmem>>, %arg7: memref<16x32xf32, #tpu.memory_space<vmem>>) attributes {dimension_semantics = [#tpu.dimension_semantics<parallel>, #tpu.dimension_semantics<parallel>, #tpu.dimension_semantics<arbitrary>], iteration_bounds = array<i64: 1, 1, 1>, scalar_prefetch = 0 : i64, scratch_operands = 1 : i64, tpu.core_type = #tpu.core_type<tc>, window_params = [{transform_indices = @transform_0, window_bounds = array<i64: 16, 32>}, {transform_indices = @transform_1, window_bounds = array<i64: 32, 32>}, {transform_indices = @transform_2, window_bounds = array<i64: 1, 32>}, {transform_indices = @transform_3, window_bounds = array<i64: 16, 32>}]} {
    %c0_i32 = arith.constant 0 : i32
    %0 = arith.cmpi eq, %arg2, %c0_i32 : i32
    %1 = arith.extui %0 : i1 to i32
    %c0_i32_0 = arith.constant 0 : i32
    %2 = arith.cmpi ne, %1, %c0_i32_0 : i32
    scf.if %2 {
      %cst_10 = arith.constant 0.000000e+00 : f32
      %12 = vector.broadcast %cst_10 : f32 to vector<16x32xf32>
      %c0_11 = arith.constant 0 : index
      %c0_12 = arith.constant 0 : index
      %13 = vector.load %arg7[%c0_11, %c0_12] : memref<16x32xf32, #tpu.memory_space<vmem>>, vector<16x32xf32>
      tpu.vector_store %arg7[%c0_11, %c0_12], %12 {strides = array<i32>} : memref<16x32xf32, #tpu.memory_space<vmem>>, vector<16x32xf32>,
    } else {
    }
    %c0 = arith.constant 0 : index
    %c0_1 = arith.constant 0 : index
    %3 = vector.load %arg7[%c0, %c0_1] : memref<16x32xf32, #tpu.memory_space<vmem>>, vector<16x32xf32>
    %c0_2 = arith.constant 0 : index
    %c0_3 = arith.constant 0 : index
    %4 = vector.load %arg3[%c0_2, %c0_3] : memref<16x32xbf16, #tpu.memory_space<vmem>>, vector<16x32xbf16>
    %c0_4 = arith.constant 0 : index
    %c0_5 = arith.constant 0 : index
    %5 = vector.load %arg4[%c0_4, %c0_5] : memref<32x32xbf16, #tpu.memory_space<vmem>>, vector<32x32xbf16>
    %cst = arith.constant dense<0.000000e+00> : vector<16x32xf32>
    %6 = tpu.matmul %4, %5, %cst {dimension_numbers = #tpu.dot_dimension_numbers<[1], [0], [0], [1], [0, 0, 1, 1], [], []>} : vector<16x32xbf16>, vector<32x32xbf16>, vector<16x32xf32> -> vector<16x32xf32>
    %7 = arith.addf %3, %6 : vector<16x32xf32>
    %c0_6 = arith.constant 0 : index
    %c0_7 = arith.constant 0 : index
    %8 = vector.load %arg7[%c0_6, %c0_7] : memref<16x32xf32, #tpu.memory_space<vmem>>, vector<16x32xf32>
    tpu.vector_store %arg7[%c0_6, %c0_7], %7 {strides = array<i32>} : memref<16x32xf32, #tpu.memory_space<vmem>>, vector<16x32xf32>,
    %c0_i32_8 = arith.constant 0 : i32
    %9 = arith.cmpi eq, %arg2, %c0_i32_8 : i32
    %10 = arith.extui %9 : i1 to i32
    %c0_i32_9 = arith.constant 0 : i32
    %11 = arith.cmpi ne, %10, %c0_i32_9 : i32
    scf.if %11 {
      %c0_10 = arith.constant 0 : index
      %c0_11 = arith.constant 0 : index
      %12 = vector.load %arg7[%c0_10, %c0_11] : memref<16x32xf32, #tpu.memory_space<vmem>>, vector<16x32xf32>
      %c0_12 = arith.constant 0 : index
      %c0_13 = arith.constant 0 : index
      %13 = vector.load %arg5[%c0_12, %c0_13] : memref<1x32xf32, #tpu.memory_space<vmem>>, vector<1x32xf32>
      %14 = vector.broadcast %13 : vector<1x32xf32> to vector<16x32xf32>
      %15 = arith.addf %12, %14 : vector<16x32xf32>
      %16 = arith.truncf %15 : vector<16x32xf32> to vector<16x32xbf16>
      %c0_14 = arith.constant 0 : index
      %c0_15 = arith.constant 0 : index
      %17 = vector.load %arg6[%c0_14, %c0_15] : memref<16x32xbf16, #tpu.memory_space<vmem>>, vector<16x32xbf16>
      tpu.vector_store %arg6[%c0_14, %c0_15], %16 {strides = array<i32>} : memref<16x32xbf16, #tpu.memory_space<vmem>>, vector<16x32xbf16>,
    } else {
    }
    return
  }
  func.func @transform_0(%arg0: i32, %arg1: i32, %arg2: i32) -> (i32, i32) {
    %c0_i32 = arith.constant 0 : i32
    return %arg0, %arg2 : i32, i32
  }
  func.func @transform_1(%arg0: i32, %arg1: i32, %arg2: i32) -> (i32, i32) {
    %c0_i32 = arith.constant 0 : i32
    return %arg2, %arg1 : i32, i32
  }
  func.func @transform_2(%arg0: i32, %arg1: i32, %arg2: i32) -> (i32, i32) {
    %c0_i32 = arith.constant 0 : i32
    %c0_i32_0 = arith.constant 0 : i32
    return %c0_i32, %arg1 : i32, i32
  }
  func.func @transform_3(%arg0: i32, %arg1: i32, %arg2: i32) -> (i32, i32) {
    %c0_i32 = arith.constant 0 : i32
    return %arg0, %arg1 : i32, i32
  }
}

module attributes {stable_mosaic.version = 11 : i64} {
  func.func @cross_attention_kernel(%arg0: i32, %arg1: memref<1x8x32xbf16, #tpu.memory_space<vmem>>, %arg2: memref<1x8x2x32xbf16, #tpu.memory_space<vmem>>, %arg3: memref<1x8x8xi8, #tpu.memory_space<vmem>>, %arg4: memref<1x8x32xbf16, #tpu.memory_space<vmem>>, %arg5: memref<8x32xf32, #tpu.memory_space<vmem>>) attributes {dimension_semantics = [#tpu.dimension_semantics<parallel>], iteration_bounds = array<i64: 2>, scalar_prefetch = 0 : i64, scratch_operands = 1 : i64, tpu.core_type = #tpu.core_type<tc>, window_params = [{transform_indices = @transform_0, window_bounds = array<i64: 1, 8, 32>}, {transform_indices = @transform_1, window_bounds = array<i64: 1, 8, 2, 32>}, {transform_indices = @transform_2, window_bounds = array<i64: 1, 8, 8>}, {transform_indices = @transform_3, window_bounds = array<i64: 1, 8, 32>}]} {
    %c0 = arith.constant 0 : index
    %c0_0 = arith.constant 0 : index
    %c0_1 = arith.constant 0 : index
    %0 = vector.load %arg1[%c0, %c0_0, %c0_1] : memref<1x8x32xbf16, #tpu.memory_space<vmem>>, vector<1x8x32xbf16>
    %1 = vector.shape_cast %0 : vector<1x8x32xbf16> to vector<8x32xbf16>
    %c0_2 = arith.constant 0 : index
    %c0_3 = arith.constant 0 : index
    %c0_4 = arith.constant 0 : index
    %c0_5 = arith.constant 0 : index
    %2 = vector.load %arg2[%c0_2, %c0_3, %c0_4, %c0_5] : memref<1x8x2x32xbf16, #tpu.memory_space<vmem>>, vector<1x8x1x32xbf16>
    %3 = vector.shape_cast %2 : vector<1x8x1x32xbf16> to vector<8x32xbf16>
    %c0_6 = arith.constant 0 : index
    %c0_7 = arith.constant 0 : index
    %c1 = arith.constant 1 : index
    %c0_8 = arith.constant 0 : index
    %4 = vector.load %arg2[%c0_6, %c0_7, %c1, %c0_8] : memref<1x8x2x32xbf16, #tpu.memory_space<vmem>>, vector<1x8x1x32xbf16>
    %5 = vector.shape_cast %4 : vector<1x8x1x32xbf16> to vector<8x32xbf16>
    %c0_9 = arith.constant 0 : index
    %c0_10 = arith.constant 0 : index
    %c0_11 = arith.constant 0 : index
    %6 = vector.load %arg3[%c0_9, %c0_10, %c0_11] : memref<1x8x8xi8, #tpu.memory_space<vmem>>, vector<1x8x8xi8>
    %7 = vector.shape_cast %6 : vector<1x8x8xi8> to vector<8x8xi8>
    %c0_i8 = arith.constant 0 : i8
    %8 = vector.broadcast %c0_i8 : i8 to vector<8x8xi8>
    %9 = arith.cmpi ne, %7, %8 : vector<8x8xi8>
    %10 = vector.extract_strided_slice %1 {offsets = [0, 0], sizes = [8, 8], strides = [1, 1]} : vector<8x32xbf16> to vector<8x8xbf16>
    %11 = vector.extract_strided_slice %3 {offsets = [0, 0], sizes = [8, 8], strides = [1, 1]} : vector<8x32xbf16> to vector<8x8xbf16>
    %cst = arith.constant dense<0.000000e+00> : vector<8x8xf32>
    %12 = tpu.matmul %10, %11, %cst {dimension_numbers = #tpu.dot_dimension_numbers<[1], [1], [0], [0], [0, 0, 1, 0], [], []>} : vector<8x8xbf16>, vector<8x8xbf16>, vector<8x8xf32> -> vector<8x8xf32>
    %cst_12 = arith.constant -1.000000e+09 : f32
    %13 = vector.broadcast %cst_12 : f32 to vector<8x8xf32>
    %14 = arith.select %9, %12, %13 : vector<8x8xi1>, vector<8x8xf32>
    %cst_13 = arith.constant dense<0xFF800000> : vector<8xf32>
    %15 = vector.multi_reduction <maximumf>, %14, %cst_13 [1] : vector<8x8xf32> to vector<8xf32>
    %16 = vector.shape_cast %15 : vector<8xf32> to vector<8x1xf32>
    %17 = vector.broadcast %16 : vector<8x1xf32> to vector<8x8xf32>
    %18 = arith.subf %14, %17 : vector<8x8xf32>
    %19 = math.exp %18 : vector<8x8xf32>
    %cst_14 = arith.constant dense<0.000000e+00> : vector<8xf32>
    %20 = vector.multi_reduction <add>, %19, %cst_14 [1] : vector<8x8xf32> to vector<8xf32>
    %21 = vector.shape_cast %20 : vector<8xf32> to vector<8x1xf32>
    %22 = tpu.reciprocal %21 {approx = true} : vector<8x1xf32> -> vector<8x1xf32>
    %23 = vector.broadcast %22 : vector<8x1xf32> to vector<8x8xf32>
    %24 = arith.mulf %19, %23 : vector<8x8xf32>
    %25 = arith.truncf %24 : vector<8x8xf32> to vector<8x8xbf16>
    %26 = vector.extract_strided_slice %5 {offsets = [0, 0], sizes = [8, 8], strides = [1, 1]} : vector<8x32xbf16> to vector<8x8xbf16>
    %cst_15 = arith.constant dense<0.000000e+00> : vector<8x8xf32>
    %27 = tpu.matmul %25, %26, %cst_15 {dimension_numbers = #tpu.dot_dimension_numbers<[1], [0], [0], [1], [0, 0, 1, 1], [], []>} : vector<8x8xbf16>, vector<8x8xbf16>, vector<8x8xf32> -> vector<8x8xf32>
    %c0_16 = arith.constant 0 : index
    %c0_17 = arith.constant 0 : index
    %28 = vector.load %arg5[%c0_16, %c0_17] : memref<8x32xf32, #tpu.memory_space<vmem>>, vector<8x8xf32>
    tpu.vector_store %arg5[%c0_16, %c0_17], %27 {strides = array<i32>} : memref<8x32xf32, #tpu.memory_space<vmem>>, vector<8x8xf32>,
    %29 = vector.extract_strided_slice %1 {offsets = [0, 8], sizes = [8, 8], strides = [1, 1]} : vector<8x32xbf16> to vector<8x8xbf16>
    %30 = vector.extract_strided_slice %3 {offsets = [0, 8], sizes = [8, 8], strides = [1, 1]} : vector<8x32xbf16> to vector<8x8xbf16>
    %cst_18 = arith.constant dense<0.000000e+00> : vector<8x8xf32>
    %31 = tpu.matmul %29, %30, %cst_18 {dimension_numbers = #tpu.dot_dimension_numbers<[1], [1], [0], [0], [0, 0, 1, 0], [], []>} : vector<8x8xbf16>, vector<8x8xbf16>, vector<8x8xf32> -> vector<8x8xf32>
    %cst_19 = arith.constant -1.000000e+09 : f32
    %32 = vector.broadcast %cst_19 : f32 to vector<8x8xf32>
    %33 = arith.select %9, %31, %32 : vector<8x8xi1>, vector<8x8xf32>
    %cst_20 = arith.constant dense<0xFF800000> : vector<8xf32>
    %34 = vector.multi_reduction <maximumf>, %33, %cst_20 [1] : vector<8x8xf32> to vector<8xf32>
    %35 = vector.shape_cast %34 : vector<8xf32> to vector<8x1xf32>
    %36 = vector.broadcast %35 : vector<8x1xf32> to vector<8x8xf32>
    %37 = arith.subf %33, %36 : vector<8x8xf32>
    %38 = math.exp %37 : vector<8x8xf32>
    %cst_21 = arith.constant dense<0.000000e+00> : vector<8xf32>
    %39 = vector.multi_reduction <add>, %38, %cst_21 [1] : vector<8x8xf32> to vector<8xf32>
    %40 = vector.shape_cast %39 : vector<8xf32> to vector<8x1xf32>
    %41 = tpu.reciprocal %40 {approx = true} : vector<8x1xf32> -> vector<8x1xf32>
    %42 = vector.broadcast %41 : vector<8x1xf32> to vector<8x8xf32>
    %43 = arith.mulf %38, %42 : vector<8x8xf32>
    %44 = arith.truncf %43 : vector<8x8xf32> to vector<8x8xbf16>
    %45 = vector.extract_strided_slice %5 {offsets = [0, 8], sizes = [8, 8], strides = [1, 1]} : vector<8x32xbf16> to vector<8x8xbf16>
    %cst_22 = arith.constant dense<0.000000e+00> : vector<8x8xf32>
    %46 = tpu.matmul %44, %45, %cst_22 {dimension_numbers = #tpu.dot_dimension_numbers<[1], [0], [0], [1], [0, 0, 1, 1], [], []>} : vector<8x8xbf16>, vector<8x8xbf16>, vector<8x8xf32> -> vector<8x8xf32>
    %c0_23 = arith.constant 0 : index
    %c8 = arith.constant 8 : index
    %47 = vector.load %arg5[%c0_23, %c8] : memref<8x32xf32, #tpu.memory_space<vmem>>, vector<8x8xf32>
    tpu.vector_store %arg5[%c0_23, %c8], %46 {strides = array<i32>} : memref<8x32xf32, #tpu.memory_space<vmem>>, vector<8x8xf32>,
    %48 = vector.extract_strided_slice %1 {offsets = [0, 16], sizes = [8, 8], strides = [1, 1]} : vector<8x32xbf16> to vector<8x8xbf16>
    %49 = vector.extract_strided_slice %3 {offsets = [0, 16], sizes = [8, 8], strides = [1, 1]} : vector<8x32xbf16> to vector<8x8xbf16>
    %cst_24 = arith.constant dense<0.000000e+00> : vector<8x8xf32>
    %50 = tpu.matmul %48, %49, %cst_24 {dimension_numbers = #tpu.dot_dimension_numbers<[1], [1], [0], [0], [0, 0, 1, 0], [], []>} : vector<8x8xbf16>, vector<8x8xbf16>, vector<8x8xf32> -> vector<8x8xf32>
    %cst_25 = arith.constant -1.000000e+09 : f32
    %51 = vector.broadcast %cst_25 : f32 to vector<8x8xf32>
    %52 = arith.select %9, %50, %51 : vector<8x8xi1>, vector<8x8xf32>
    %cst_26 = arith.constant dense<0xFF800000> : vector<8xf32>
    %53 = vector.multi_reduction <maximumf>, %52, %cst_26 [1] : vector<8x8xf32> to vector<8xf32>
    %54 = vector.shape_cast %53 : vector<8xf32> to vector<8x1xf32>
    %55 = vector.broadcast %54 : vector<8x1xf32> to vector<8x8xf32>
    %56 = arith.subf %52, %55 : vector<8x8xf32>
    %57 = math.exp %56 : vector<8x8xf32>
    %cst_27 = arith.constant dense<0.000000e+00> : vector<8xf32>
    %58 = vector.multi_reduction <add>, %57, %cst_27 [1] : vector<8x8xf32> to vector<8xf32>
    %59 = vector.shape_cast %58 : vector<8xf32> to vector<8x1xf32>
    %60 = tpu.reciprocal %59 {approx = true} : vector<8x1xf32> -> vector<8x1xf32>
    %61 = vector.broadcast %60 : vector<8x1xf32> to vector<8x8xf32>
    %62 = arith.mulf %57, %61 : vector<8x8xf32>
    %63 = arith.truncf %62 : vector<8x8xf32> to vector<8x8xbf16>
    %64 = vector.extract_strided_slice %5 {offsets = [0, 16], sizes = [8, 8], strides = [1, 1]} : vector<8x32xbf16> to vector<8x8xbf16>
    %cst_28 = arith.constant dense<0.000000e+00> : vector<8x8xf32>
    %65 = tpu.matmul %63, %64, %cst_28 {dimension_numbers = #tpu.dot_dimension_numbers<[1], [0], [0], [1], [0, 0, 1, 1], [], []>} : vector<8x8xbf16>, vector<8x8xbf16>, vector<8x8xf32> -> vector<8x8xf32>
    %c0_29 = arith.constant 0 : index
    %c16 = arith.constant 16 : index
    %66 = vector.load %arg5[%c0_29, %c16] : memref<8x32xf32, #tpu.memory_space<vmem>>, vector<8x8xf32>
    tpu.vector_store %arg5[%c0_29, %c16], %65 {strides = array<i32>} : memref<8x32xf32, #tpu.memory_space<vmem>>, vector<8x8xf32>,
    %67 = vector.extract_strided_slice %1 {offsets = [0, 24], sizes = [8, 8], strides = [1, 1]} : vector<8x32xbf16> to vector<8x8xbf16>
    %68 = vector.extract_strided_slice %3 {offsets = [0, 24], sizes = [8, 8], strides = [1, 1]} : vector<8x32xbf16> to vector<8x8xbf16>
    %cst_30 = arith.constant dense<0.000000e+00> : vector<8x8xf32>
    %69 = tpu.matmul %67, %68, %cst_30 {dimension_numbers = #tpu.dot_dimension_numbers<[1], [1], [0], [0], [0, 0, 1, 0], [], []>} : vector<8x8xbf16>, vector<8x8xbf16>, vector<8x8xf32> -> vector<8x8xf32>
    %cst_31 = arith.constant -1.000000e+09 : f32
    %70 = vector.broadcast %cst_31 : f32 to vector<8x8xf32>
    %71 = arith.select %9, %69, %70 : vector<8x8xi1>, vector<8x8xf32>
    %cst_32 = arith.constant dense<0xFF800000> : vector<8xf32>
    %72 = vector.multi_reduction <maximumf>, %71, %cst_32 [1] : vector<8x8xf32> to vector<8xf32>
    %73 = vector.shape_cast %72 : vector<8xf32> to vector<8x1xf32>
    %74 = vector.broadcast %73 : vector<8x1xf32> to vector<8x8xf32>
    %75 = arith.subf %71, %74 : vector<8x8xf32>
    %76 = math.exp %75 : vector<8x8xf32>
    %cst_33 = arith.constant dense<0.000000e+00> : vector<8xf32>
    %77 = vector.multi_reduction <add>, %76, %cst_33 [1] : vector<8x8xf32> to vector<8xf32>
    %78 = vector.shape_cast %77 : vector<8xf32> to vector<8x1xf32>
    %79 = tpu.reciprocal %78 {approx = true} : vector<8x1xf32> -> vector<8x1xf32>
    %80 = vector.broadcast %79 : vector<8x1xf32> to vector<8x8xf32>
    %81 = arith.mulf %76, %80 : vector<8x8xf32>
    %82 = arith.truncf %81 : vector<8x8xf32> to vector<8x8xbf16>
    %83 = vector.extract_strided_slice %5 {offsets = [0, 24], sizes = [8, 8], strides = [1, 1]} : vector<8x32xbf16> to vector<8x8xbf16>
    %cst_34 = arith.constant dense<0.000000e+00> : vector<8x8xf32>
    %84 = tpu.matmul %82, %83, %cst_34 {dimension_numbers = #tpu.dot_dimension_numbers<[1], [0], [0], [1], [0, 0, 1, 1], [], []>} : vector<8x8xbf16>, vector<8x8xbf16>, vector<8x8xf32> -> vector<8x8xf32>
    %c0_35 = arith.constant 0 : index
    %c24 = arith.constant 24 : index
    %85 = vector.load %arg5[%c0_35, %c24] : memref<8x32xf32, #tpu.memory_space<vmem>>, vector<8x8xf32>
    tpu.vector_store %arg5[%c0_35, %c24], %84 {strides = array<i32>} : memref<8x32xf32, #tpu.memory_space<vmem>>, vector<8x8xf32>,
    %c0_36 = arith.constant 0 : index
    %c0_37 = arith.constant 0 : index
    %86 = vector.load %arg5[%c0_36, %c0_37] : memref<8x32xf32, #tpu.memory_space<vmem>>, vector<8x32xf32>
    %87 = arith.truncf %86 : vector<8x32xf32> to vector<8x32xbf16>
    %c0_38 = arith.constant 0 : index
    %c0_39 = arith.constant 0 : index
    %c0_40 = arith.constant 0 : index
    %88 = vector.load %arg4[%c0_38, %c0_39, %c0_40] : memref<1x8x32xbf16, #tpu.memory_space<vmem>>, vector<1x8x32xbf16>
    %89 = vector.shape_cast %88 : vector<1x8x32xbf16> to vector<8x32xbf16>
    %90 = vector.shape_cast %87 : vector<8x32xbf16> to vector<1x8x32xbf16>
    tpu.vector_store %arg4[%c0_38, %c0_39, %c0_40], %90 {strides = array<i32>} : memref<1x8x32xbf16, #tpu.memory_space<vmem>>, vector<1x8x32xbf16>,
    return
  }
  func.func @transform_0(%arg0: i32) -> (i32, i32, i32) {
    %c0_i32 = arith.constant 0 : i32
    %c0_i32_0 = arith.constant 0 : i32
    %c0_i32_1 = arith.constant 0 : i32
    return %arg0, %c0_i32, %c0_i32_0 : i32, i32, i32
  }
  func.func @transform_1(%arg0: i32) -> (i32, i32, i32, i32) {
    %c0_i32 = arith.constant 0 : i32
    %c0_i32_0 = arith.constant 0 : i32
    %c0_i32_1 = arith.constant 0 : i32
    %c0_i32_2 = arith.constant 0 : i32
    return %arg0, %c0_i32, %c0_i32_0, %c0_i32_1 : i32, i32, i32, i32
  }
  func.func @transform_2(%arg0: i32) -> (i32, i32, i32) {
    %c0_i32 = arith.constant 0 : i32
    %c0_i32_0 = arith.constant 0 : i32
    %c0_i32_1 = arith.constant 0 : i32
    return %arg0, %c0_i32, %c0_i32_0 : i32, i32, i32
  }
  func.func @transform_3(%arg0: i32) -> (i32, i32, i32) {
    %c0_i32 = arith.constant 0 : i32
    %c0_i32_0 = arith.constant 0 : i32
    %c0_i32_1 = arith.constant 0 : i32
    return %arg0, %c0_i32, %c0_i32_0 : i32, i32, i32
  }
}

module attributes {stable_mosaic.version = 11 : i64} {
  func.func @linear_kernel(%arg0: i32, %arg1: i32, %arg2: i32, %arg3: memref<16x32xbf16, #tpu.memory_space<vmem>>, %arg4: memref<32x64xbf16, #tpu.memory_space<vmem>>, %arg5: memref<1x64xf32, #tpu.memory_space<vmem>>, %arg6: memref<16x64xbf16, #tpu.memory_space<vmem>>, %arg7: memref<16x64xf32, #tpu.memory_space<vmem>>) attributes {dimension_semantics = [#tpu.dimension_semantics<parallel>, #tpu.dimension_semantics<parallel>, #tpu.dimension_semantics<arbitrary>], iteration_bounds = array<i64: 1, 1, 1>, scalar_prefetch = 0 : i64, scratch_operands = 1 : i64, tpu.core_type = #tpu.core_type<tc>, window_params = [{transform_indices = @transform_0, window_bounds = array<i64: 16, 32>}, {transform_indices = @transform_1, window_bounds = array<i64: 32, 64>}, {transform_indices = @transform_2, window_bounds = array<i64: 1, 64>}, {transform_indices = @transform_3, window_bounds = array<i64: 16, 64>}]} {
    %c0_i32 = arith.constant 0 : i32
    %0 = arith.cmpi eq, %arg2, %c0_i32 : i32
    %1 = arith.extui %0 : i1 to i32
    %c0_i32_0 = arith.constant 0 : i32
    %2 = arith.cmpi ne, %1, %c0_i32_0 : i32
    scf.if %2 {
      %cst_10 = arith.constant 0.000000e+00 : f32
      %12 = vector.broadcast %cst_10 : f32 to vector<16x64xf32>
      %c0_11 = arith.constant 0 : index
      %c0_12 = arith.constant 0 : index
      %13 = vector.load %arg7[%c0_11, %c0_12] : memref<16x64xf32, #tpu.memory_space<vmem>>, vector<16x64xf32>
      tpu.vector_store %arg7[%c0_11, %c0_12], %12 {strides = array<i32>} : memref<16x64xf32, #tpu.memory_space<vmem>>, vector<16x64xf32>,
    } else {
    }
    %c0 = arith.constant 0 : index
    %c0_1 = arith.constant 0 : index
    %3 = vector.load %arg7[%c0, %c0_1] : memref<16x64xf32, #tpu.memory_space<vmem>>, vector<16x64xf32>
    %c0_2 = arith.constant 0 : index
    %c0_3 = arith.constant 0 : index
    %4 = vector.load %arg3[%c0_2, %c0_3] : memref<16x32xbf16, #tpu.memory_space<vmem>>, vector<16x32xbf16>
    %c0_4 = arith.constant 0 : index
    %c0_5 = arith.constant 0 : index
    %5 = vector.load %arg4[%c0_4, %c0_5] : memref<32x64xbf16, #tpu.memory_space<vmem>>, vector<32x64xbf16>
    %cst = arith.constant dense<0.000000e+00> : vector<16x64xf32>
    %6 = tpu.matmul %4, %5, %cst {dimension_numbers = #tpu.dot_dimension_numbers<[1], [0], [0], [1], [0, 0, 1, 1], [], []>} : vector<16x32xbf16>, vector<32x64xbf16>, vector<16x64xf32> -> vector<16x64xf32>
    %7 = arith.addf %3, %6 : vector<16x64xf32>
    %c0_6 = arith.constant 0 : index
    %c0_7 = arith.constant 0 : index
    %8 = vector.load %arg7[%c0_6, %c0_7] : memref<16x64xf32, #tpu.memory_space<vmem>>, vector<16x64xf32>
    tpu.vector_store %arg7[%c0_6, %c0_7], %7 {strides = array<i32>} : memref<16x64xf32, #tpu.memory_space<vmem>>, vector<16x64xf32>,
    %c0_i32_8 = arith.constant 0 : i32
    %9 = arith.cmpi eq, %arg2, %c0_i32_8 : i32
    %10 = arith.extui %9 : i1 to i32
    %c0_i32_9 = arith.constant 0 : i32
    %11 = arith.cmpi ne, %10, %c0_i32_9 : i32
    scf.if %11 {
      %c0_10 = arith.constant 0 : index
      %c0_11 = arith.constant 0 : index
      %12 = vector.load %arg7[%c0_10, %c0_11] : memref<16x64xf32, #tpu.memory_space<vmem>>, vector<16x64xf32>
      %c0_12 = arith.constant 0 : index
      %c0_13 = arith.constant 0 : index
      %13 = vector.load %arg5[%c0_12, %c0_13] : memref<1x64xf32, #tpu.memory_space<vmem>>, vector<1x64xf32>
      %14 = vector.broadcast %13 : vector<1x64xf32> to vector<16x64xf32>
      %15 = arith.addf %12, %14 : vector<16x64xf32>
      %cst_14 = arith.constant 0.000000e+00 : f32
      %16 = vector.broadcast %cst_14 : f32 to vector<16x64xf32>
      %17 = arith.maximumf %15, %16 : vector<16x64xf32>
      %18 = arith.truncf %17 : vector<16x64xf32> to vector<16x64xbf16>
      %c0_15 = arith.constant 0 : index
      %c0_16 = arith.constant 0 : index
      %19 = vector.load %arg6[%c0_15, %c0_16] : memref<16x64xbf16, #tpu.memory_space<vmem>>, vector<16x64xbf16>
      tpu.vector_store %arg6[%c0_15, %c0_16], %18 {strides = array<i32>} : memref<16x64xbf16, #tpu.memory_space<vmem>>, vector<16x64xbf16>,
    } else {
    }
    return
  }
  func.func @transform_0(%arg0: i32, %arg1: i32, %arg2: i32) -> (i32, i32) {
    %c0_i32 = arith.constant 0 : i32
    return %arg0, %arg2 : i32, i32
  }
  func.func @transform_1(%arg0: i32, %arg1: i32, %arg2: i32) -> (i32, i32) {
    %c0_i32 = arith.constant 0 : i32
    return %arg2, %arg1 : i32, i32
  }
  func.func @transform_2(%arg0: i32, %arg1: i32, %arg2: i32) -> (i32, i32) {
    %c0_i32 = arith.constant 0 : i32
    %c0_i32_0 = arith.constant 0 : i32
    return %c0_i32, %arg1 : i32, i32
  }
  func.func @transform_3(%arg0: i32, %arg1: i32, %arg2: i32) -> (i32, i32) {
    %c0_i32 = arith.constant 0 : i32
    return %arg0, %arg1 : i32, i32
  }
}

module attributes {stable_mosaic.version = 11 : i64} {
  func.func @linear_kernel(%arg0: i32, %arg1: i32, %arg2: i32, %arg3: memref<16x32xbf16, #tpu.memory_space<vmem>>, %arg4: memref<32x64xbf16, #tpu.memory_space<vmem>>, %arg5: memref<1x64xf32, #tpu.memory_space<vmem>>, %arg6: memref<16x64xbf16, #tpu.memory_space<vmem>>, %arg7: memref<16x64xf32, #tpu.memory_space<vmem>>) attributes {dimension_semantics = [#tpu.dimension_semantics<parallel>, #tpu.dimension_semantics<parallel>, #tpu.dimension_semantics<arbitrary>], iteration_bounds = array<i64: 1, 1, 1>, scalar_prefetch = 0 : i64, scratch_operands = 1 : i64, tpu.core_type = #tpu.core_type<tc>, window_params = [{transform_indices = @transform_0, window_bounds = array<i64: 16, 32>}, {transform_indices = @transform_1, window_bounds = array<i64: 32, 64>}, {transform_indices = @transform_2, window_bounds = array<i64: 1, 64>}, {transform_indices = @transform_3, window_bounds = array<i64: 16, 64>}]} {
    %c0_i32 = arith.constant 0 : i32
    %0 = arith.cmpi eq, %arg2, %c0_i32 : i32
    %1 = arith.extui %0 : i1 to i32
    %c0_i32_0 = arith.constant 0 : i32
    %2 = arith.cmpi ne, %1, %c0_i32_0 : i32
    scf.if %2 {
      %cst_10 = arith.constant 0.000000e+00 : f32
      %12 = vector.broadcast %cst_10 : f32 to vector<16x64xf32>
      %c0_11 = arith.constant 0 : index
      %c0_12 = arith.constant 0 : index
      %13 = vector.load %arg7[%c0_11, %c0_12] : memref<16x64xf32, #tpu.memory_space<vmem>>, vector<16x64xf32>
      tpu.vector_store %arg7[%c0_11, %c0_12], %12 {strides = array<i32>} : memref<16x64xf32, #tpu.memory_space<vmem>>, vector<16x64xf32>,
    } else {
    }
    %c0 = arith.constant 0 : index
    %c0_1 = arith.constant 0 : index
    %3 = vector.load %arg7[%c0, %c0_1] : memref<16x64xf32, #tpu.memory_space<vmem>>, vector<16x64xf32>
    %c0_2 = arith.constant 0 : index
    %c0_3 = arith.constant 0 : index
    %4 = vector.load %arg3[%c0_2, %c0_3] : memref<16x32xbf16, #tpu.memory_space<vmem>>, vector<16x32xbf16>
    %c0_4 = arith.constant 0 : index
    %c0_5 = arith.constant 0 : index
    %5 = vector.load %arg4[%c0_4, %c0_5] : memref<32x64xbf16, #tpu.memory_space<vmem>>, vector<32x64xbf16>
    %cst = arith.constant dense<0.000000e+00> : vector<16x64xf32>
    %6 = tpu.matmul %4, %5, %cst {dimension_numbers = #tpu.dot_dimension_numbers<[1], [0], [0], [1], [0, 0, 1, 1], [], []>} : vector<16x32xbf16>, vector<32x64xbf16>, vector<16x64xf32> -> vector<16x64xf32>
    %7 = arith.addf %3, %6 : vector<16x64xf32>
    %c0_6 = arith.constant 0 : index
    %c0_7 = arith.constant 0 : index
    %8 = vector.load %arg7[%c0_6, %c0_7] : memref<16x64xf32, #tpu.memory_space<vmem>>, vector<16x64xf32>
    tpu.vector_store %arg7[%c0_6, %c0_7], %7 {strides = array<i32>} : memref<16x64xf32, #tpu.memory_space<vmem>>, vector<16x64xf32>,
    %c0_i32_8 = arith.constant 0 : i32
    %9 = arith.cmpi eq, %arg2, %c0_i32_8 : i32
    %10 = arith.extui %9 : i1 to i32
    %c0_i32_9 = arith.constant 0 : i32
    %11 = arith.cmpi ne, %10, %c0_i32_9 : i32
    scf.if %11 {
      %c0_10 = arith.constant 0 : index
      %c0_11 = arith.constant 0 : index
      %12 = vector.load %arg7[%c0_10, %c0_11] : memref<16x64xf32, #tpu.memory_space<vmem>>, vector<16x64xf32>
      %c0_12 = arith.constant 0 : index
      %c0_13 = arith.constant 0 : index
      %13 = vector.load %arg5[%c0_12, %c0_13] : memref<1x64xf32, #tpu.memory_space<vmem>>, vector<1x64xf32>
      %14 = vector.broadcast %13 : vector<1x64xf32> to vector<16x64xf32>
      %15 = arith.addf %12, %14 : vector<16x64xf32>
      %16 = arith.truncf %15 : vector<16x64xf32> to vector<16x64xbf16>
      %c0_14 = arith.constant 0 : index
      %c0_15 = arith.constant 0 : index
      %17 = vector.load %arg6[%c0_14, %c0_15] : memref<16x64xbf16, #tpu.memory_space<vmem>>, vector<16x64xbf16>
      tpu.vector_store %arg6[%c0_14, %c0_15], %16 {strides = array<i32>} : memref<16x64xbf16, #tpu.memory_space<vmem>>, vector<16x64xbf16>,
    } else {
    }
    return
  }
  func.func @transform_0(%arg0: i32, %arg1: i32, %arg2: i32) -> (i32, i32) {
    %c0_i32 = arith.constant 0 : i32
    return %arg0, %arg2 : i32, i32
  }
  func.func @transform_1(%arg0: i32, %arg1: i32, %arg2: i32) -> (i32, i32) {
    %c0_i32 = arith.constant 0 : i32
    return %arg2, %arg1 : i32, i32
  }
  func.func @transform_2(%arg0: i32, %arg1: i32, %arg2: i32) -> (i32, i32) {
    %c0_i32 = arith.constant 0 : i32
    %c0_i32_0 = arith.constant 0 : i32
    return %c0_i32, %arg1 : i32, i32
  }
  func.func @transform_3(%arg0: i32, %arg1: i32, %arg2: i32) -> (i32, i32) {
    %c0_i32 = arith.constant 0 : i32
    return %arg0, %arg1 : i32, i32
  }
}

module attributes {stable_mosaic.version = 11 : i64} {
  func.func @linear_add_ln_kernel(%arg0: i32, %arg1: i32, %arg2: memref<16x64xbf16, #tpu.memory_space<vmem>>, %arg3: memref<64x32xbf16, #tpu.memory_space<vmem>>, %arg4: memref<1x32xf32, #tpu.memory_space<vmem>>, %arg5: memref<16x32xf32, #tpu.memory_space<vmem>>, %arg6: memref<1x32xf32, #tpu.memory_space<vmem>>, %arg7: memref<1x32xf32, #tpu.memory_space<vmem>>, %arg8: memref<16x32xf32, #tpu.memory_space<vmem>>, %arg9: memref<16x32xf32, #tpu.memory_space<vmem>>) attributes {dimension_semantics = [#tpu.dimension_semantics<parallel>, #tpu.dimension_semantics<arbitrary>], iteration_bounds = array<i64: 1, 1>, scalar_prefetch = 0 : i64, scratch_operands = 1 : i64, tpu.core_type = #tpu.core_type<tc>, window_params = [{transform_indices = @transform_0, window_bounds = array<i64: 16, 64>}, {transform_indices = @transform_1, window_bounds = array<i64: 64, 32>}, {pipeline_mode = #tpu.pipeline_mode<synchronous>, transform_indices = @transform_2, window_bounds = array<i64: 1, 32>}, {transform_indices = @transform_3, window_bounds = array<i64: 16, 32>}, {pipeline_mode = #tpu.pipeline_mode<synchronous>, transform_indices = @transform_4, window_bounds = array<i64: 1, 32>}, {pipeline_mode = #tpu.pipeline_mode<synchronous>, transform_indices = @transform_5, window_bounds = array<i64: 1, 32>}, {transform_indices = @transform_6, window_bounds = array<i64: 16, 32>}]} {
    %c0_i32 = arith.constant 0 : i32
    %0 = arith.cmpi eq, %arg1, %c0_i32 : i32
    %1 = arith.extui %0 : i1 to i32
    %c0_i32_0 = arith.constant 0 : i32
    %2 = arith.cmpi ne, %1, %c0_i32_0 : i32
    scf.if %2 {
      %cst_10 = arith.constant 0.000000e+00 : f32
      %12 = vector.broadcast %cst_10 : f32 to vector<16x32xf32>
      %c0_11 = arith.constant 0 : index
      %c0_12 = arith.constant 0 : index
      %13 = vector.load %arg9[%c0_11, %c0_12] : memref<16x32xf32, #tpu.memory_space<vmem>>, vector<16x32xf32>
      tpu.vector_store %arg9[%c0_11, %c0_12], %12 {strides = array<i32>} : memref<16x32xf32, #tpu.memory_space<vmem>>, vector<16x32xf32>,
    } else {
    }
    %c0 = arith.constant 0 : index
    %c0_1 = arith.constant 0 : index
    %3 = vector.load %arg9[%c0, %c0_1] : memref<16x32xf32, #tpu.memory_space<vmem>>, vector<16x32xf32>
    %c0_2 = arith.constant 0 : index
    %c0_3 = arith.constant 0 : index
    %4 = vector.load %arg2[%c0_2, %c0_3] : memref<16x64xbf16, #tpu.memory_space<vmem>>, vector<16x64xbf16>
    %c0_4 = arith.constant 0 : index
    %c0_5 = arith.constant 0 : index
    %5 = vector.load %arg3[%c0_4, %c0_5] : memref<64x32xbf16, #tpu.memory_space<vmem>>, vector<64x32xbf16>
    %cst = arith.constant dense<0.000000e+00> : vector<16x32xf32>
    %6 = tpu.matmul %4, %5, %cst {dimension_numbers = #tpu.dot_dimension_numbers<[1], [0], [0], [1], [0, 0, 1, 1], [], []>} : vector<16x64xbf16>, vector<64x32xbf16>, vector<16x32xf32> -> vector<16x32xf32>
    %7 = arith.addf %3, %6 : vector<16x32xf32>
    %c0_6 = arith.constant 0 : index
    %c0_7 = arith.constant 0 : index
    %8 = vector.load %arg9[%c0_6, %c0_7] : memref<16x32xf32, #tpu.memory_space<vmem>>, vector<16x32xf32>
    tpu.vector_store %arg9[%c0_6, %c0_7], %7 {strides = array<i32>} : memref<16x32xf32, #tpu.memory_space<vmem>>, vector<16x32xf32>,
    %c0_i32_8 = arith.constant 0 : i32
    %9 = arith.cmpi eq, %arg1, %c0_i32_8 : i32
    %10 = arith.extui %9 : i1 to i32
    %c0_i32_9 = arith.constant 0 : i32
    %11 = arith.cmpi ne, %10, %c0_i32_9 : i32
    scf.if %11 {
      %c0_10 = arith.constant 0 : index
      %c0_11 = arith.constant 0 : index
      %12 = vector.load %arg9[%c0_10, %c0_11] : memref<16x32xf32, #tpu.memory_space<vmem>>, vector<16x32xf32>
      %c0_12 = arith.constant 0 : index
      %c0_13 = arith.constant 0 : index
      %13 = vector.load %arg4[%c0_12, %c0_13] : memref<1x32xf32, #tpu.memory_space<vmem>>, vector<1x32xf32>
      %14 = vector.broadcast %13 : vector<1x32xf32> to vector<16x32xf32>
      %15 = arith.addf %12, %14 : vector<16x32xf32>
      %c0_14 = arith.constant 0 : index
      %c0_15 = arith.constant 0 : index
      %16 = vector.load %arg5[%c0_14, %c0_15] : memref<16x32xf32, #tpu.memory_space<vmem>>, vector<16x32xf32>
      %17 = arith.addf %15, %16 : vector<16x32xf32>
      %cst_16 = arith.constant dense<0.000000e+00> : vector<16xf32>
      %18 = vector.multi_reduction <add>, %17, %cst_16 [1] : vector<16x32xf32> to vector<16xf32>
      %19 = vector.shape_cast %18 : vector<16xf32> to vector<16x1xf32>
      %cst_17 = arith.constant 3.200000e+01 : f32
      %20 = vector.broadcast %cst_17 : f32 to vector<16x1xf32>
      %21 = arith.divf %19, %20 : vector<16x1xf32>
      %22 = vector.broadcast %21 : vector<16x1xf32> to vector<16x32xf32>
      %23 = arith.subf %17, %22 : vector<16x32xf32>
      %24 = arith.mulf %23, %23 : vector<16x32xf32>
      %cst_18 = arith.constant dense<0.000000e+00> : vector<16xf32>
      %25 = vector.multi_reduction <add>, %24, %cst_18 [1] : vector<16x32xf32> to vector<16xf32>
      %26 = vector.shape_cast %25 : vector<16xf32> to vector<16x1xf32>
      %cst_19 = arith.constant 3.200000e+01 : f32
      %27 = vector.broadcast %cst_19 : f32 to vector<16x1xf32>
      %28 = arith.divf %26, %27 : vector<16x1xf32>
      %29 = vector.broadcast %21 : vector<16x1xf32> to vector<16x32xf32>
      %30 = arith.subf %17, %29 : vector<16x32xf32>
      %cst_20 = arith.constant 9.99999974E-6 : f32
      %31 = vector.broadcast %cst_20 : f32 to vector<16x1xf32>
      %32 = arith.addf %28, %31 : vector<16x1xf32>
      %33 = math.rsqrt %32 : vector<16x1xf32>
      %34 = vector.broadcast %33 : vector<16x1xf32> to vector<16x32xf32>
      %35 = arith.mulf %30, %34 : vector<16x32xf32>
      %c0_21 = arith.constant 0 : index
      %c0_22 = arith.constant 0 : index
      %36 = vector.load %arg6[%c0_21, %c0_22] : memref<1x32xf32, #tpu.memory_space<vmem>>, vector<1x32xf32>
      %37 = vector.broadcast %36 : vector<1x32xf32> to vector<16x32xf32>
      %38 = arith.mulf %35, %37 : vector<16x32xf32>
      %c0_23 = arith.constant 0 : index
      %c0_24 = arith.constant 0 : index
      %39 = vector.load %arg7[%c0_23, %c0_24] : memref<1x32xf32, #tpu.memory_space<vmem>>, vector<1x32xf32>
      %40 = vector.broadcast %39 : vector<1x32xf32> to vector<16x32xf32>
      %41 = arith.addf %38, %40 : vector<16x32xf32>
      %c0_25 = arith.constant 0 : index
      %c0_26 = arith.constant 0 : index
      %42 = vector.load %arg8[%c0_25, %c0_26] : memref<16x32xf32, #tpu.memory_space<vmem>>, vector<16x32xf32>
      tpu.vector_store %arg8[%c0_25, %c0_26], %41 {strides = array<i32>} : memref<16x32xf32, #tpu.memory_space<vmem>>, vector<16x32xf32>,
    } else {
    }
    return
  }
  func.func @transform_0(%arg0: i32, %arg1: i32) -> (i32, i32) {
    %c0_i32 = arith.constant 0 : i32
    return %arg0, %arg1 : i32, i32
  }
  func.func @transform_1(%arg0: i32, %arg1: i32) -> (i32, i32) {
    %c0_i32 = arith.constant 0 : i32
    %c0_i32_0 = arith.constant 0 : i32
    return %arg1, %c0_i32 : i32, i32
  }
  func.func @transform_2(%arg0: i32, %arg1: i32) -> (i32, i32) {
    %c0_i32 = arith.constant 0 : i32
    %c0_i32_0 = arith.constant 0 : i32
    %c0_i32_1 = arith.constant 0 : i32
    return %c0_i32, %c0_i32_0 : i32, i32
  }
  func.func @transform_3(%arg0: i32, %arg1: i32) -> (i32, i32) {
    %c0_i32 = arith.constant 0 : i32
    %c0_i32_0 = arith.constant 0 : i32
    return %arg0, %c0_i32 : i32, i32
  }
  func.func @transform_4(%arg0: i32, %arg1: i32) -> (i32, i32) {
    %c0_i32 = arith.constant 0 : i32
    %c0_i32_0 = arith.constant 0 : i32
    %c0_i32_1 = arith.constant 0 : i32
    return %c0_i32, %c0_i32_0 : i32, i32
  }
  func.func @transform_5(%arg0: i32, %arg1: i32) -> (i32, i32) {
    %c0_i32 = arith.constant 0 : i32
    %c0_i32_0 = arith.constant 0 : i32
    %c0_i32_1 = arith.constant 0 : i32
    return %c0_i32, %c0_i32_0 : i32, i32
  }
  func.func @transform_6(%arg0: i32, %arg1: i32) -> (i32, i32) {
    %c0_i32 = arith.constant 0 : i32
    %c0_i32_0 = arith.constant 0 : i32
    return %arg0, %c0_i32 : i32, i32
  }
}

module attributes {stable_mosaic.version = 11 : i64} {
  func.func @linear_kernel(%arg0: i32, %arg1: i32, %arg2: i32, %arg3: memref<16x32xbf16, #tpu.memory_space<vmem>>, %arg4: memref<32x128xbf16, #tpu.memory_space<vmem>>, %arg5: memref<1x128xf32, #tpu.memory_space<vmem>>, %arg6: memref<16x128xf32, #tpu.memory_space<vmem>>, %arg7: memref<16x128xf32, #tpu.memory_space<vmem>>) attributes {dimension_semantics = [#tpu.dimension_semantics<parallel>, #tpu.dimension_semantics<parallel>, #tpu.dimension_semantics<arbitrary>], iteration_bounds = array<i64: 1, 1, 1>, scalar_prefetch = 0 : i64, scratch_operands = 1 : i64, tpu.core_type = #tpu.core_type<tc>, window_params = [{transform_indices = @transform_0, window_bounds = array<i64: 16, 32>}, {transform_indices = @transform_1, window_bounds = array<i64: 32, 128>}, {transform_indices = @transform_2, window_bounds = array<i64: 1, 128>}, {transform_indices = @transform_3, window_bounds = array<i64: 16, 128>}]} {
    %c0_i32 = arith.constant 0 : i32
    %0 = arith.cmpi eq, %arg2, %c0_i32 : i32
    %1 = arith.extui %0 : i1 to i32
    %c0_i32_0 = arith.constant 0 : i32
    %2 = arith.cmpi ne, %1, %c0_i32_0 : i32
    scf.if %2 {
      %cst_10 = arith.constant 0.000000e+00 : f32
      %12 = vector.broadcast %cst_10 : f32 to vector<16x128xf32>
      %c0_11 = arith.constant 0 : index
      %c0_12 = arith.constant 0 : index
      %13 = vector.load %arg7[%c0_11, %c0_12] : memref<16x128xf32, #tpu.memory_space<vmem>>, vector<16x128xf32>
      tpu.vector_store %arg7[%c0_11, %c0_12], %12 {strides = array<i32>} : memref<16x128xf32, #tpu.memory_space<vmem>>, vector<16x128xf32>,
    } else {
    }
    %c0 = arith.constant 0 : index
    %c0_1 = arith.constant 0 : index
    %3 = vector.load %arg7[%c0, %c0_1] : memref<16x128xf32, #tpu.memory_space<vmem>>, vector<16x128xf32>
    %c0_2 = arith.constant 0 : index
    %c0_3 = arith.constant 0 : index
    %4 = vector.load %arg3[%c0_2, %c0_3] : memref<16x32xbf16, #tpu.memory_space<vmem>>, vector<16x32xbf16>
    %c0_4 = arith.constant 0 : index
    %c0_5 = arith.constant 0 : index
    %5 = vector.load %arg4[%c0_4, %c0_5] : memref<32x128xbf16, #tpu.memory_space<vmem>>, vector<32x128xbf16>
    %cst = arith.constant dense<0.000000e+00> : vector<16x128xf32>
    %6 = tpu.matmul %4, %5, %cst {dimension_numbers = #tpu.dot_dimension_numbers<[1], [0], [0], [1], [0, 0, 1, 1], [], []>} : vector<16x32xbf16>, vector<32x128xbf16>, vector<16x128xf32> -> vector<16x128xf32>
    %7 = arith.addf %3, %6 : vector<16x128xf32>
    %c0_6 = arith.constant 0 : index
    %c0_7 = arith.constant 0 : index
    %8 = vector.load %arg7[%c0_6, %c0_7] : memref<16x128xf32, #tpu.memory_space<vmem>>, vector<16x128xf32>
    tpu.vector_store %arg7[%c0_6, %c0_7], %7 {strides = array<i32>} : memref<16x128xf32, #tpu.memory_space<vmem>>, vector<16x128xf32>,
    %c0_i32_8 = arith.constant 0 : i32
    %9 = arith.cmpi eq, %arg2, %c0_i32_8 : i32
    %10 = arith.extui %9 : i1 to i32
    %c0_i32_9 = arith.constant 0 : i32
    %11 = arith.cmpi ne, %10, %c0_i32_9 : i32
    scf.if %11 {
      %c0_10 = arith.constant 0 : index
      %c0_11 = arith.constant 0 : index
      %12 = vector.load %arg7[%c0_10, %c0_11] : memref<16x128xf32, #tpu.memory_space<vmem>>, vector<16x128xf32>
      %c0_12 = arith.constant 0 : index
      %c0_13 = arith.constant 0 : index
      %13 = vector.load %arg5[%c0_12, %c0_13] : memref<1x128xf32, #tpu.memory_space<vmem>>, vector<1x128xf32>
      %14 = vector.broadcast %13 : vector<1x128xf32> to vector<16x128xf32>
      %15 = arith.addf %12, %14 : vector<16x128xf32>
      %c0_14 = arith.constant 0 : index
      %c0_15 = arith.constant 0 : index
      %16 = vector.load %arg6[%c0_14, %c0_15] : memref<16x128xf32, #tpu.memory_space<vmem>>, vector<16x128xf32>
      tpu.vector_store %arg6[%c0_14, %c0_15], %15 {strides = array<i32>} : memref<16x128xf32, #tpu.memory_space<vmem>>, vector<16x128xf32>,
    } else {
    }
    return
  }
  func.func @transform_0(%arg0: i32, %arg1: i32, %arg2: i32) -> (i32, i32) {
    %c0_i32 = arith.constant 0 : i32
    return %arg0, %arg2 : i32, i32
  }
  func.func @transform_1(%arg0: i32, %arg1: i32, %arg2: i32) -> (i32, i32) {
    %c0_i32 = arith.constant 0 : i32
    return %arg2, %arg1 : i32, i32
  }
  func.func @transform_2(%arg0: i32, %arg1: i32, %arg2: i32) -> (i32, i32) {
    %c0_i32 = arith.constant 0 : i32
    %c0_i32_0 = arith.constant 0 : i32
    return %c0_i32, %arg1 : i32, i32
  }
  func.func @transform_3(%arg0: i32, %arg1: i32, %arg2: i32) -> (i32, i32) {
    %c0_i32 = arith.constant 0 : i32
    return %arg0, %arg1 : i32, i32
  }
}

</mosaic_0001>

<llo_original>
// kernel: decoder_forward.22
$region0: #{decoder_forward.22}
  #allocation0 [shape = 'u32[]', space=smem, size = 0x4, offset = 0x4, fixed_abs, tag = 'smem constant byte address 0x4 - core index']
  #allocation1 [shape = 'u32[144,128]{1,0:T(1,128)}', space=vmem, size = 0x12000, scoped, tag = 'internal scratch']
  #allocation2 [shape = 'f32[16,32]{1,0:T(8,128)}', space=vmem, size = 0x2000, scoped, tag = 'scratch operand']
  %s0 = inlined_call_operand.vmem [shape: bf16[16,32], index: 0, kind: input, shape index: {}]
  %s1 = inlined_call_operand.vmem [shape: bf16[32,32], index: 1, kind: input, shape index: {}]
  %s2 = inlined_call_operand.vmem [shape: f32[1,32], index: 2, kind: input, shape index: {}]
  %s3 = inlined_call_operand.vmem [shape: bf16[16,32], index: 3, kind: output, shape index: {}]
  %s4 = sld [smem:[#allocation0]]
  $region30: #{decoder_forward.22} parent=0
    _
  %s6 = ssub.s32 1, %s4
  %s7 = scalar_select 0, %s6, %s4
  // Predicated region
  $region2: #{decoder_forward.22} parent=0 // pred_check
    _
  $region3: #{decoder_forward.22} parent=0 // pred_check_branch
    %9 = sbr.rel (0) target = $region5
  $region4: #{decoder_forward.22} parent=0 // pred_region
    _
  $region5: #{decoder_forward.22} parent=0 // pred_fallthru
    _
  // Predicated region
  $region6: #{decoder_forward.22} parent=0 // pred_check
    _
  $region7: #{decoder_forward.22} parent=0 // pred_check_branch
    %11 = sbr.rel (0) target = $region9
  $region8: #{decoder_forward.22} parent=0 // pred_region
    _
  $region9: #{decoder_forward.22} parent=0 // pred_fallthru
    _
  // Predicated region
  $region10: #{decoder_forward.22} parent=0 // pred_check
    _
  $region11: #{decoder_forward.22} parent=0 // pred_check_branch
    %13 = sbr.rel (0) target = $region13
  $region12: #{decoder_forward.22} parent=0 // pred_region
    _
  $region13: #{decoder_forward.22} parent=0 // pred_fallthru
    _
  %p15 = scmp.eq.s32.totalorder 0, 0
  // Predicated region
  $region14: #{decoder_forward.22} parent=0 // pred_check
    %p16 = pneg %p15
  $region15: #{decoder_forward.22} parent=0 // pred_check_branch
    %18 = sbr.rel (%p16) target = $region17
  $region16: #{decoder_forward.22} parent=0 // pred_region
    %vm19 = vcmask 261120
    %20 = vst.msk [vmem:[#allocation2] sm:$0xff] %vm19, 0.0
    %21 = vst.msk [vmem:[#allocation2 + $0x8] sm:$0xff] %vm19, 0.0
  $region17: #{decoder_forward.22} parent=0 // pred_fallthru
    _
  %v22 = vld [vmem:[#allocation2] sm:$0xff]
  %v23 = vld [vmem:[#allocation2 + $0x8] sm:$0xff]
  %v24 = vld [vmem:[%s0] sm:$0xf]
  %v25 = vld [vmem:[%s0 + $0x4] sm:$0xf]
  %v26 = vld [vmem:[%s1] sm:$0xf]
  %v27 = vld [vmem:[%s1 + $0x4] sm:$0xf]
  %v28 = vld [vmem:[%s1 + $0x8] sm:$0xf]
  %v29 = vld [vmem:[%s1 + $0xc] sm:$0xf]
  %v32 = vunpack.c.l.b16 %v24
  %v33 = vunpack.c.l.b16 %v25
  %v34 = vpack.c.b16 %v33, %v32
  %v39 = vunpack.c.l.b16 %v26
  %v40 = vunpack.c.l.b16 %v27
  %v41 = vunpack.c.l.b16 %v28
  %v42 = vunpack.c.l.b16 %v29
  %v43 = vpack.c.b16 %v40, %v39
  %v44 = vpack.c.b16 %v42, %v41
  %vm47 = vcmask 261120
  %v49 = vsel %vm47, %v34, 0
  %51 = vmatprep.subr.bf16.mxu0 0
  %52 = vmatpush1.bf16.msra.mxu0 0
  %53 = vmatprep.subr.bf16.mxu0 0
  %54 = vmatpush1.bf16.msra.mxu0 0
  %55 = vmatprep.subr.bf16.mxu0 0
  %56 = vmatpush1.bf16.msra.mxu0 0
  %57 = vmatprep.subr.bf16.mxu0 0
  %58 = vmatpush1.bf16.msra.mxu0 0
  %59 = vmatprep.subr.bf16.mxu0 0
  %60 = vmatpush1.bf16.msra.mxu0 0
  %61 = vmatprep.subr.bf16.mxu0 0
  %62 = vmatpush1.bf16.msra.mxu0 0
  %63 = vmatprep.subr.bf16.mxu0 0
  %64 = vmatpush1.bf16.msra.mxu0 %v44
  %65 = vmatprep.subr.bf16.mxu0 0
  %66 = vmatpush1.bf16.msra.mxu0 %v43
  %67 = vmatprep.subr.bf16.mxu0 0
  %68 = vmatpush2.bf16.msra.mxu0 0
  %69 = vmatprep.subr.bf16.mxu0 0
  %70 = vmatpush2.bf16.msra.mxu0 0
  %71 = vmatprep.subr.bf16.mxu0 0
  %72 = vmatpush2.bf16.msra.mxu0 0
  %73 = vmatprep.subr.bf16.mxu0 0
  %74 = vmatpush2.bf16.msra.mxu0 0
  %75 = vmatprep.subr.bf16.mxu0 0
  %76 = vmatpush2.bf16.msra.mxu0 0
  %77 = vmatprep.subr.bf16.mxu0 0
  %78 = vmatpush2.bf16.msra.mxu0 0
  %79 = vmatprep.subr.bf16.mxu0 0
  %80 = vmatpush2.bf16.msra.mxu0 0
  %81 = vmatprep.subr.bf16.mxu0 0
  %82 = vmatpush2.bf16.msra.mxu0 0
  %83 = vmatprep.mubr.bf16.mxu0 0
  %84 = vmatmul.mubr.bf16.gmra.mxu0 %v49
  %v85 = vpop.f32.mrf.mxu0
  %v86 = vadd.f32 0.0, %v85
  %v87 = vpop.f32.mrf.mxu0
  %v88 = vpop.f32.mrf.mxu0
  %v89 = vadd.f32 0.0, %v88
  %v90 = vpop.f32.mrf.mxu0
  %91 = vdwg.mxu0
  %v92 = vadd.f32 %v22, %v86
  %v93 = vadd.f32 %v23, %v89
  %94 = vst.msk [vmem:[#allocation2] sm:$0xff] %vm47, %v92
  %95 = vst.msk [vmem:[#allocation2 + $0x8] sm:$0xff] %vm47, %v93
  // Predicated region
  $region18: #{decoder_forward.22} parent=0 // pred_check
    %p96 = pneg %p15
  $region19: #{decoder_forward.22} parent=0 // pred_check_branch
    %98 = sbr.rel (%p96) target = $region21
  $region20: #{decoder_forward.22} parent=0 // pred_region
    %v99 = vld [vmem:[#allocation2] sm:$0xff]
    %v100 = vld [vmem:[#allocation2 + $0x8] sm:$0xff]
    %v101 = vld [vmem:[%s2] sm:$0x1]
    %v103 = vlaneseq
    %v104 = vshrl.u32 %v103, 7
    %v105 = vsub.s32 0, %v104
    %v106 = vrot.slane %v101, %v105
    %v108 = vadd.f32 %v99, %v106
    %v109 = vadd.f32 %v100, %v106
    %v110 = vpack.c.bf16 %v109, %v108
    %v112 = vunpack.c.l.b16 %v110
    %v113 = vunpack.c.h.b16 %v110
    %v114 = vpack.c.b16 %v112, %v112
    %v115 = vpack.c.b16 %v113, %v113
    %vm118 = vcmask 257024
    %119 = vst.msk [vmem:[%s3] sm:$0xf] %vm118, %v114
    %120 = vst.msk [vmem:[%s3 + $0x4] sm:$0xf] %vm118, %v115
  $region21: #{decoder_forward.22} parent=0 // pred_fallthru
    _
  // Predicated region
  $region22: #{decoder_forward.22} parent=0 // pred_check
    _
  $region23: #{decoder_forward.22} parent=0 // pred_check_branch
    %122 = sbr.rel (0) target = $region25
  $region24: #{decoder_forward.22} parent=0 // pred_region
    _
  $region25: #{decoder_forward.22} parent=0 // pred_fallthru
    _
  // Predicated region
  $region26: #{decoder_forward.22} parent=0 // pred_check
    _
  $region27: #{decoder_forward.22} parent=0 // pred_check_branch
    %124 = sbr.rel (0) target = $region29
  $region28: #{decoder_forward.22} parent=0 // pred_region
    _
  $region29: #{decoder_forward.22} parent=0 // pred_fallthru
    _

// kernel: decoder_forward.21
$region0: #{decoder_forward.21}
  #allocation0 [shape = 'u32[]', space=smem, size = 0x4, offset = 0x4, fixed_abs, tag = 'smem constant byte address 0x4 - core index']
  #allocation1 [shape = 'u32[144,128]{1,0:T(1,128)}', space=vmem, size = 0x12000, scoped, tag = 'internal scratch']
  #allocation2 [shape = 'f32[16,32]{1,0:T(8,128)}', space=vmem, size = 0x2000, scoped, tag = 'scratch operand']
  %s0 = inlined_call_operand.vmem [shape: bf16[16,32], index: 0, kind: input, shape index: {}]
  %s1 = inlined_call_operand.vmem [shape: bf16[32,32], index: 1, kind: input, shape index: {}]
  %s2 = inlined_call_operand.vmem [shape: f32[1,32], index: 2, kind: input, shape index: {}]
  %s3 = inlined_call_operand.vmem [shape: f32[16,32], index: 3, kind: input, shape index: {}]
  %s4 = inlined_call_operand.vmem [shape: f32[1,32], index: 4, kind: input, shape index: {}]
  %s5 = inlined_call_operand.vmem [shape: f32[1,32], index: 5, kind: input, shape index: {}]
  %s6 = inlined_call_operand.vmem [shape: f32[16,32], index: 6, kind: output, shape index: {}]
  %s7 = sld [smem:[#allocation0]]
  $region42: #{decoder_forward.21} parent=0
    _
  %s9 = ssub.s32 1, %s7
  %s10 = scalar_select 0, %s9, %s7
  // Predicated region
  $region2: #{decoder_forward.21} parent=0 // pred_check
    _
  $region3: #{decoder_forward.21} parent=0 // pred_check_branch
    %12 = sbr.rel (0) target = $region5
  $region4: #{decoder_forward.21} parent=0 // pred_region
    _
  $region5: #{decoder_forward.21} parent=0 // pred_fallthru
    _
  // Predicated region
  $region6: #{decoder_forward.21} parent=0 // pred_check
    _
  $region7: #{decoder_forward.21} parent=0 // pred_check_branch
    %14 = sbr.rel (0) target = $region9
  $region8: #{decoder_forward.21} parent=0 // pred_region
    _
  $region9: #{decoder_forward.21} parent=0 // pred_fallthru
    _
  // Predicated region
  $region10: #{decoder_forward.21} parent=0 // pred_check
    _
  $region11: #{decoder_forward.21} parent=0 // pred_check_branch
    %16 = sbr.rel (0) target = $region13
  $region12: #{decoder_forward.21} parent=0 // pred_region
    _
  $region13: #{decoder_forward.21} parent=0 // pred_fallthru
    _
  // Predicated region
  $region14: #{decoder_forward.21} parent=0 // pred_check
    _
  $region15: #{decoder_forward.21} parent=0 // pred_check_branch
    %18 = sbr.rel (0) target = $region17
  $region16: #{decoder_forward.21} parent=0 // pred_region
    _
  $region17: #{decoder_forward.21} parent=0 // pred_fallthru
    _
  // Predicated region
  $region18: #{decoder_forward.21} parent=0 // pred_check
    _
  $region19: #{decoder_forward.21} parent=0 // pred_check_branch
    %20 = sbr.rel (0) target = $region21
  $region20: #{decoder_forward.21} parent=0 // pred_region
    _
  $region21: #{decoder_forward.21} parent=0 // pred_fallthru
    _
  // Predicated region
  $region22: #{decoder_forward.21} parent=0 // pred_check
    _
  $region23: #{decoder_forward.21} parent=0 // pred_check_branch
    %22 = sbr.rel (0) target = $region25
  $region24: #{decoder_forward.21} parent=0 // pred_region
    _
  $region25: #{decoder_forward.21} parent=0 // pred_fallthru
    _
  %p24 = scmp.eq.s32.totalorder 0, 0
  // Predicated region
  $region26: #{decoder_forward.21} parent=0 // pred_check
    %p25 = pneg %p24
  $region27: #{decoder_forward.21} parent=0 // pred_check_branch
    %27 = sbr.rel (%p25) target = $region29
  $region28: #{decoder_forward.21} parent=0 // pred_region
    %vm28 = vcmask 261120
    %29 = vst.msk [vmem:[#allocation2] sm:$0xff] %vm28, 0.0
    %30 = vst.msk [vmem:[#allocation2 + $0x8] sm:$0xff] %vm28, 0.0
  $region29: #{decoder_forward.21} parent=0 // pred_fallthru
    _
  %v31 = vld [vmem:[#allocation2] sm:$0xff]
  %v32 = vld [vmem:[#allocation2 + $0x8] sm:$0xff]
  %v33 = vld [vmem:[%s0] sm:$0xf]
  %v34 = vld [vmem:[%s0 + $0x4] sm:$0xf]
  %v35 = vld [vmem:[%s1] sm:$0xf]
  %v36 = vld [vmem:[%s1 + $0x4] sm:$0xf]
  %v37 = vld [vmem:[%s1 + $0x8] sm:$0xf]
  %v38 = vld [vmem:[%s1 + $0xc] sm:$0xf]
  %v41 = vunpack.c.l.b16 %v33
  %v42 = vunpack.c.l.b16 %v34
  %v43 = vpack.c.b16 %v42, %v41
  %v48 = vunpack.c.l.b16 %v35
  %v49 = vunpack.c.l.b16 %v36
  %v50 = vunpack.c.l.b16 %v37
  %v51 = vunpack.c.l.b16 %v38
  %v52 = vpack.c.b16 %v49, %v48
  %v53 = vpack.c.b16 %v51, %v50
  %vm56 = vcmask 261120
  %v58 = vsel %vm56, %v43, 0
  %60 = vmatprep.subr.bf16.mxu0 0
  %61 = vmatpush1.bf16.msra.mxu0 0
  %62 = vmatprep.subr.bf16.mxu0 0
  %63 = vmatpush1.bf16.msra.mxu0 0
  %64 = vmatprep.subr.bf16.mxu0 0
  %65 = vmatpush1.bf16.msra.mxu0 0
  %66 = vmatprep.subr.bf16.mxu0 0
  %67 = vmatpush1.bf16.msra.mxu0 0
  %68 = vmatprep.subr.bf16.mxu0 0
  %69 = vmatpush1.bf16.msra.mxu0 0
  %70 = vmatprep.subr.bf16.mxu0 0
  %71 = vmatpush1.bf16.msra.mxu0 0
  %72 = vmatprep.subr.bf16.mxu0 0
  %73 = vmatpush1.bf16.msra.mxu0 %v53
  %74 = vmatprep.subr.bf16.mxu0 0
  %75 = vmatpush1.bf16.msra.mxu0 %v52
  %76 = vmatprep.subr.bf16.mxu0 0
  %77 = vmatpush2.bf16.msra.mxu0 0
  %78 = vmatprep.subr.bf16.mxu0 0
  %79 = vmatpush2.bf16.msra.mxu0 0
  %80 = vmatprep.subr.bf16.mxu0 0
  %81 = vmatpush2.bf16.msra.mxu0 0
  %82 = vmatprep.subr.bf16.mxu0 0
  %83 = vmatpush2.bf16.msra.mxu0 0
  %84 = vmatprep.subr.bf16.mxu0 0
  %85 = vmatpush2.bf16.msra.mxu0 0
  %86 = vmatprep.subr.bf16.mxu0 0
  %87 = vmatpush2.bf16.msra.mxu0 0
  %88 = vmatprep.subr.bf16.mxu0 0
  %89 = vmatpush2.bf16.msra.mxu0 0
  %90 = vmatprep.subr.bf16.mxu0 0
  %91 = vmatpush2.bf16.msra.mxu0 0
  %92 = vmatprep.mubr.bf16.mxu0 0
  %93 = vmatmul.mubr.bf16.gmra.mxu0 %v58
  %v94 = vpop.f32.mrf.mxu0
  %v95 = vadd.f32 0.0, %v94
  %v96 = vpop.f32.mrf.mxu0
  %v97 = vpop.f32.mrf.mxu0
  %v98 = vadd.f32 0.0, %v97
  %v99 = vpop.f32.mrf.mxu0
  %100 = vdwg.mxu0
  %v101 = vadd.f32 %v31, %v95
  %v102 = vadd.f32 %v32, %v98
  %103 = vst.msk [vmem:[#allocation2] sm:$0xff] %vm56, %v101
  %104 = vst.msk [vmem:[#allocation2 + $0x8] sm:$0xff] %vm56, %v102
  // Predicated region
  $region30: #{decoder_forward.21} parent=0 // pred_check
    %p105 = pneg %p24
  $region31: #{decoder_forward.21} parent=0 // pred_check_branch
    %107 = sbr.rel (%p105) target = $region33
  $region32: #{decoder_forward.21} parent=0 // pred_region
    %v108 = vld [vmem:[#allocation2] sm:$0xff]
    %v109 = vld [vmem:[#allocation2 + $0x8] sm:$0xff]
    %v110 = vld [vmem:[%s2] sm:$0x1]
    %v112 = vlaneseq
    %v113 = vshrl.u32 %v112, 7
    %v114 = vsub.s32 0, %v113
    %v115 = vrot.slane %v110, %v114
    %v117 = vadd.f32 %v108, %v115
    %v118 = vadd.f32 %v109, %v115
    %v119 = vld [vmem:[%s3] sm:$0xff]
    %v120 = vld [vmem:[%s3 + $0x8] sm:$0xff]
    %v121 = vadd.f32 %v117, %v119
    %v122 = vadd.f32 %v118, %v120
    %v123 = vsel %vm56, %v121, 0.0
    %124 = vadd.xlane.f32.xlu0 %v123
    %v125 = vpop.xlane.xlu0 %124
    %v126 = vsel %vm56, %v122, 0.0
    %127 = vadd.xlane.f32.xlu0 %v126
    %v128 = vpop.xlane.xlu0 %127
    %v129 = vrcp.pop 32.0
    %v130 = vmul.f32 %v125, %v129
    %v131 = vmul.f32 %v128, %v129
    %v132 = vsub.f32 %v121, %v130
    %v133 = vsub.f32 %v122, %v131
    %v134 = vmul.f32 %v132, %v132
    %v135 = vmul.f32 %v133, %v133
    %v136 = vsel %vm56, %v134, 0.0
    %137 = vadd.xlane.f32.xlu0 %v136
    %v138 = vpop.xlane.xlu0 %137
    %v139 = vsel %vm56, %v135, 0.0
    %140 = vadd.xlane.f32.xlu0 %v139
    %v141 = vpop.xlane.xlu0 %140
    %v142 = vmul.f32 %v138, %v129
    %v143 = vmul.f32 %v141, %v129
    %v144 = vadd.f32 %v142, 1e-05
    %v145 = vadd.f32 %v143, 1e-05
    %v146 = vrsqrt.pop %v144
    %v147 = vrsqrt.pop %v145
    %v148 = vmul.f32 %v132, %v146
    %v149 = vmul.f32 %v133, %v147
    %v150 = vld [vmem:[%s4] sm:$0x1]
    %v152 = vlaneseq
    %v153 = vshrl.u32 %v152, 7
    %v154 = vsub.s32 0, %v153
    %v155 = vrot.slane %v150, %v154
    %v157 = vmul.f32 %v148, %v155
    %v158 = vmul.f32 %v149, %v155
    %v159 = vld [vmem:[%s5] sm:$0x1]
    %v161 = vlaneseq
    %v162 = vshrl.u32 %v161, 7
    %v163 = vsub.s32 0, %v162
    %v164 = vrot.slane %v159, %v163
    %v166 = vadd.f32 %v157, %v164
    %v167 = vadd.f32 %v158, %v164
    %168 = vst.msk [vmem:[%s6] sm:$0xff] %vm56, %v166
    %169 = vst.msk [vmem:[%s6 + $0x8] sm:$0xff] %vm56, %v167
  $region33: #{decoder_forward.21} parent=0 // pred_fallthru
    _
  // Predicated region
  $region34: #{decoder_forward.21} parent=0 // pred_check
    _
  $region35: #{decoder_forward.21} parent=0 // pred_check_branch
    %171 = sbr.rel (0) target = $region37
  $region36: #{decoder_forward.21} parent=0 // pred_region
    _
  $region37: #{decoder_forward.21} parent=0 // pred_fallthru
    _
  // Predicated region
  $region38: #{decoder_forward.21} parent=0 // pred_check
    _
  $region39: #{decoder_forward.21} parent=0 // pred_check_branch
    %173 = sbr.rel (0) target = $region41
  $region40: #{decoder_forward.21} parent=0 // pred_region
    _
  $region41: #{decoder_forward.21} parent=0 // pred_fallthru
    _

// kernel: decoder_forward.19
$region0: #{decoder_forward.19}
  #allocation0 [shape = 'u32[]', space=smem, size = 0x4, offset = 0x4, fixed_abs, tag = 'smem constant byte address 0x4 - core index']
  #allocation1 [shape = 'u32[144,128]{1,0:T(1,128)}', space=vmem, size = 0x12000, scoped, tag = 'internal scratch']
  #allocation2 [shape = 'f32[16,96]{1,0:T(8,128)}', space=vmem, size = 0x2000, scoped, tag = 'scratch operand']
  %s0 = inlined_call_operand.vmem [shape: bf16[16,32], index: 0, kind: input, shape index: {}]
  %s1 = inlined_call_operand.vmem [shape: bf16[32,96], index: 1, kind: input, shape index: {}]
  %s2 = inlined_call_operand.vmem [shape: f32[1,96], index: 2, kind: input, shape index: {}]
  %s3 = inlined_call_operand.vmem [shape: bf16[16,96], index: 3, kind: output, shape index: {}]
  %s4 = sld [smem:[#allocation0]]
  $region30: #{decoder_forward.19} parent=0
    _
  %s6 = ssub.s32 1, %s4
  %s7 = scalar_select 0, %s6, %s4
  // Predicated region
  $region2: #{decoder_forward.19} parent=0 // pred_check
    _
  $region3: #{decoder_forward.19} parent=0 // pred_check_branch
    %9 = sbr.rel (0) target = $region5
  $region4: #{decoder_forward.19} parent=0 // pred_region
    _
  $region5: #{decoder_forward.19} parent=0 // pred_fallthru
    _
  // Predicated region
  $region6: #{decoder_forward.19} parent=0 // pred_check
    _
  $region7: #{decoder_forward.19} parent=0 // pred_check_branch
    %11 = sbr.rel (0) target = $region9
  $region8: #{decoder_forward.19} parent=0 // pred_region
    _
  $region9: #{decoder_forward.19} parent=0 // pred_fallthru
    _
  // Predicated region
  $region10: #{decoder_forward.19} parent=0 // pred_check
    _
  $region11: #{decoder_forward.19} parent=0 // pred_check_branch
    %13 = sbr.rel (0) target = $region13
  $region12: #{decoder_forward.19} parent=0 // pred_region
    _
  $region13: #{decoder_forward.19} parent=0 // pred_fallthru
    _
  %p15 = scmp.eq.s32.totalorder 0, 0
  // Predicated region
  $region14: #{decoder_forward.19} parent=0 // pred_check
    %p16 = pneg %p15
  $region15: #{decoder_forward.19} parent=0 // pred_check_branch
    %18 = sbr.rel (%p16) target = $region17
  $region16: #{decoder_forward.19} parent=0 // pred_region
    %vm19 = vcmask 785408
    %20 = vst.msk [vmem:[#allocation2] sm:$0xff] %vm19, 0.0
    %21 = vst.msk [vmem:[#allocation2 + $0x8] sm:$0xff] %vm19, 0.0
  $region17: #{decoder_forward.19} parent=0 // pred_fallthru
    _
  %v22 = vld [vmem:[#allocation2] sm:$0xff]
  %v23 = vld [vmem:[#allocation2 + $0x8] sm:$0xff]
  %v24 = vld [vmem:[%s0] sm:$0xf]
  %v25 = vld [vmem:[%s0 + $0x4] sm:$0xf]
  %v26 = vld [vmem:[%s1] sm:$0xf]
  %v27 = vld [vmem:[%s1 + $0x4] sm:$0xf]
  %v28 = vld [vmem:[%s1 + $0x8] sm:$0xf]
  %v29 = vld [vmem:[%s1 + $0xc] sm:$0xf]
  %v32 = vunpack.c.l.b16 %v24
  %v33 = vunpack.c.l.b16 %v25
  %v34 = vpack.c.b16 %v33, %v32
  %v39 = vunpack.c.l.b16 %v26
  %v40 = vunpack.c.l.b16 %v27
  %v41 = vunpack.c.l.b16 %v28
  %v42 = vunpack.c.l.b16 %v29
  %v43 = vpack.c.b16 %v40, %v39
  %v44 = vpack.c.b16 %v42, %v41
  %vm47 = vcmask 261120
  %v49 = vsel %vm47, %v34, 0
  %51 = vmatprep.subr.bf16.mxu0 0
  %52 = vmatpush1.bf16.msra.mxu0 0
  %53 = vmatprep.subr.bf16.mxu0 0
  %54 = vmatpush1.bf16.msra.mxu0 0
  %55 = vmatprep.subr.bf16.mxu0 0
  %56 = vmatpush1.bf16.msra.mxu0 0
  %57 = vmatprep.subr.bf16.mxu0 0
  %58 = vmatpush1.bf16.msra.mxu0 0
  %59 = vmatprep.subr.bf16.mxu0 0
  %60 = vmatpush1.bf16.msra.mxu0 0
  %61 = vmatprep.subr.bf16.mxu0 0
  %62 = vmatpush1.bf16.msra.mxu0 0
  %63 = vmatprep.subr.bf16.mxu0 0
  %64 = vmatpush1.bf16.msra.mxu0 %v44
  %65 = vmatprep.subr.bf16.mxu0 0
  %66 = vmatpush1.bf16.msra.mxu0 %v43
  %67 = vmatprep.subr.bf16.mxu0 0
  %68 = vmatpush2.bf16.msra.mxu0 0
  %69 = vmatprep.subr.bf16.mxu0 0
  %70 = vmatpush2.bf16.msra.mxu0 0
  %71 = vmatprep.subr.bf16.mxu0 0
  %72 = vmatpush2.bf16.msra.mxu0 0
  %73 = vmatprep.subr.bf16.mxu0 0
  %74 = vmatpush2.bf16.msra.mxu0 0
  %75 = vmatprep.subr.bf16.mxu0 0
  %76 = vmatpush2.bf16.msra.mxu0 0
  %77 = vmatprep.subr.bf16.mxu0 0
  %78 = vmatpush2.bf16.msra.mxu0 0
  %79 = vmatprep.subr.bf16.mxu0 0
  %80 = vmatpush2.bf16.msra.mxu0 0
  %81 = vmatprep.subr.bf16.mxu0 0
  %82 = vmatpush2.bf16.msra.mxu0 0
  %83 = vmatprep.mubr.bf16.mxu0 0
  %84 = vmatmul.mubr.bf16.gmra.mxu0 %v49
  %v85 = vpop.f32.mrf.mxu0
  %v86 = vadd.f32 0.0, %v85
  %v87 = vpop.f32.mrf.mxu0
  %v88 = vpop.f32.mrf.mxu0
  %v89 = vadd.f32 0.0, %v88
  %v90 = vpop.f32.mrf.mxu0
  %91 = vdwg.mxu0
  %v92 = vadd.f32 %v22, %v86
  %v93 = vadd.f32 %v23, %v89
  %vm94 = vcmask 785408
  %95 = vst.msk [vmem:[#allocation2] sm:$0xff] %vm94, %v92
  %96 = vst.msk [vmem:[#allocation2 + $0x8] sm:$0xff] %vm94, %v93
  // Predicated region
  $region18: #{decoder_forward.19} parent=0 // pred_check
    %p97 = pneg %p15
  $region19: #{decoder_forward.19} parent=0 // pred_check_branch
    %99 = sbr.rel (%p97) target = $region21
  $region20: #{decoder_forward.19} parent=0 // pred_region
    %v100 = vld [vmem:[#allocation2] sm:$0xff]
    %v101 = vld [vmem:[#allocation2 + $0x8] sm:$0xff]
    %v102 = vld [vmem:[%s2] sm:$0x1]
    %v104 = vlaneseq
    %v105 = vshrl.u32 %v104, 7
    %v106 = vsub.s32 0, %v105
    %v107 = vrot.slane %v102, %v106
    %v109 = vadd.f32 %v100, %v107
    %v110 = vadd.f32 %v101, %v107
    %v111 = vpack.c.bf16 %v110, %v109
    %v113 = vunpack.c.l.b16 %v111
    %v114 = vunpack.c.h.b16 %v111
    %v115 = vpack.c.b16 %v113, %v113
    %v116 = vpack.c.b16 %v114, %v114
    %vm119 = vcmask 781312
    %120 = vst.msk [vmem:[%s3] sm:$0xf] %vm119, %v115
    %121 = vst.msk [vmem:[%s3 + $0x4] sm:$0xf] %vm119, %v116
  $region21: #{decoder_forward.19} parent=0 // pred_fallthru
    _
  // Predicated region
  $region22: #{decoder_forward.19} parent=0 // pred_check
    _
  $region23: #{decoder_forward.19} parent=0 // pred_check_branch
    %123 = sbr.rel (0) target = $region25
  $region24: #{decoder_forward.19} parent=0 // pred_region
    _
  $region25: #{decoder_forward.19} parent=0 // pred_fallthru
    _
  // Predicated region
  $region26: #{decoder_forward.19} parent=0 // pred_check
    _
  $region27: #{decoder_forward.19} parent=0 // pred_check_branch
    %125 = sbr.rel (0) target = $region29
  $region28: #{decoder_forward.19} parent=0 // pred_region
    _
  $region29: #{decoder_forward.19} parent=0 // pred_fallthru
    _

// kernel: decoder_forward.20
$region0: #{decoder_forward.20}
  #allocation0 [shape = 'u32[]', space=smem, size = 0x4, offset = 0x4, fixed_abs, tag = 'smem constant byte address 0x4 - core index']
  #allocation1 [shape = 'u32[144,128]{1,0:T(1,128)}', space=vmem, size = 0x12000, scoped, tag = 'internal scratch']
  #allocation2 [shape = 'f32[8,32]{1,0:T(8,128)}', space=vmem, size = 0x1000, scoped, tag = 'scratch operand']
  %s0 = inlined_call_operand.vmem [shape: bf16[2,8,3,32], index: 0, kind: input, shape index: {}]
  %s1 = inlined_call_operand.vmem [shape: s8[2,8,8], index: 1, kind: input, shape index: {}]
  %s2 = inlined_call_operand.vmem [shape: bf16[2,8,32], index: 2, kind: output, shape index: {}]
  %s3 = sld [smem:[#allocation0]]
  $region41: #{decoder_forward.20} parent=0
    _
  %s5 = ssub.s32 1, %s3
  %s6 = scalar_select 0, %s5, %s3
  loop: start=0, step=1, limit=4
  $region2: #{decoder_forward.20} parent=0 // loop_pre_header
    _
  $region3: #{decoder_forward.20} parent=0 // loop_header
    %s8 = sphi 0, %s12
    %p9 = scmp.ge.s32.totalorder %s8, 4
    %s18 = sphi 0, %s20
    %s21 = sphi 0, %s18
    %s22 = sphi 0, %s21
    %s38 = sphi 0, %s22
    %s44 = sphi 0, %s46
    %s47 = sphi 0, %s44
    %s48 = sphi 0, %s47
    %s64 = sphi 0, %s48
    %s70 = sphi 0, %s72
    %s73 = sphi 0, %s70
    %s74 = sphi 0, %s73
    %s90 = sphi 0, %s74
  $region4: #{decoder_forward.20} parent=0 // loop_header_branch
    %11 = sbr.rel (%p9) target = $region8
  $region5: #{decoder_forward.20} parent=0 // loop_body
    %s13 = ssub.s32 %s8, 1
    %s14 = ssub.s32 %s8, 2
    %s15 = sadd.s32 %s8, 1
    %s16 = ssub.s32 %s8, %s15
    %p17 = scmp.eq.s32.totalorder %s16, 0
    %s19 = sadd.s32 %s18, 1
    %s20 = scalar_select %p17, %s18, %s19
    %p23 = pneg %p17
    %p24 = scmp.eq.s32.totalorder %s8, 1
    %p25 = por %p23, %p24
    %p26 = scmp.ne.s32.totalorder %s18, %s21
    %p27 = scmp.eq.s32.totalorder %s8, 0
    %p28 = por %p26, %p27
    %p29 = scmp.ne.s32.totalorder %s18, %s21
    %p30 = scmp.eq.s32.totalorder %s13, 1
    %p31 = por %p29, %p30
    %p32 = scmp.ne.s32.totalorder %s21, %s22
    %p33 = scmp.eq.s32.totalorder %s13, 0
    %p34 = por %p32, %p33
    %p35 = scmp.ne.s32.totalorder %s21, %s22
    %p36 = scmp.eq.s32.totalorder %s14, 1
    %p37 = por %p35, %p36
    %p39 = scmp.ne.s32.totalorder %s22, %s38
    %p40 = scmp.eq.s32.totalorder %s14, 0
    %p41 = por %p39, %p40
    %s42 = ssub.s32 %s8, %s15
    %p43 = scmp.eq.s32.totalorder %s42, 0
    %s45 = sadd.s32 %s44, 1
    %s46 = scalar_select %p43, %s44, %s45
    %p49 = pneg %p43
    %p50 = scmp.eq.s32.totalorder %s8, 1
    %p51 = por %p49, %p50
    %p52 = scmp.ne.s32.totalorder %s44, %s47
    %p53 = scmp.eq.s32.totalorder %s8, 0
    %p54 = por %p52, %p53
    %p55 = scmp.ne.s32.totalorder %s44, %s47
    %p56 = scmp.eq.s32.totalorder %s13, 1
    %p57 = por %p55, %p56
    %p58 = scmp.ne.s32.totalorder %s47, %s48
    %p59 = scmp.eq.s32.totalorder %s13, 0
    %p60 = por %p58, %p59
    %p61 = scmp.ne.s32.totalorder %s47, %s48
    %p62 = scmp.eq.s32.totalorder %s14, 1
    %p63 = por %p61, %p62
    %p65 = scmp.ne.s32.totalorder %s48, %s64
    %p66 = scmp.eq.s32.totalorder %s14, 0
    %p67 = por %p65, %p66
    %s68 = ssub.s32 %s8, %s15
    %p69 = scmp.eq.s32.totalorder %s68, 0
    %s71 = sadd.s32 %s70, 1
    %s72 = scalar_select %p69, %s70, %s71
    %p75 = pneg %p69
    %p76 = scmp.eq.s32.totalorder %s8, 1
    %p77 = por %p75, %p76
    %p78 = scmp.ne.s32.totalorder %s70, %s73
    %p79 = scmp.eq.s32.totalorder %s8, 0
    %p80 = por %p78, %p79
    %p81 = scmp.ne.s32.totalorder %s70, %s73
    %p82 = scmp.eq.s32.totalorder %s13, 1
    %p83 = por %p81, %p82
    %p84 = scmp.ne.s32.totalorder %s73, %s74
    %p85 = scmp.eq.s32.totalorder %s13, 0
    %p86 = por %p84, %p85
    %p87 = scmp.ne.s32.totalorder %s73, %s74
    %p88 = scmp.eq.s32.totalorder %s14, 1
    %p89 = por %p87, %p88
    %p91 = scmp.ne.s32.totalorder %s74, %s90
    %p92 = scmp.eq.s32.totalorder %s14, 0
    %p93 = por %p91, %p92
    %p94 = scmp.le.s32.totalorder 1, %s8
    %p95 = scmp.lt.s32.totalorder %s8, 3
    %p96 = pnand %p94, %p95
    %p97 = pneg %p96
    // Predicated region
    $region9: #{decoder_forward.20} parent=5 // pred_check
      _
    $region10: #{decoder_forward.20} parent=5 // pred_check_branch
      %99 = sbr.rel (%p96) target = $region12
    $region11: #{decoder_forward.20} parent=5 // pred_region
      %s100 = ssub.s32 %s8, 1
    $region12: #{decoder_forward.20} parent=5 // pred_fallthru
      _
    %p101 = scmp.lt.s32.totalorder %s8, 2
    // Predicated region
    $region13: #{decoder_forward.20} parent=5 // pred_check
      %p102 = pneg %p101
    $region14: #{decoder_forward.20} parent=5 // pred_check_branch
      %104 = sbr.rel (%p102) target = $region16
    $region15: #{decoder_forward.20} parent=5 // pred_region
      // Predicated region
      $region17: #{decoder_forward.20} parent=15 // pred_check
        %p105 = pneg %p28
      $region18: #{decoder_forward.20} parent=15 // pred_check_branch
        %107 = sbr.rel (%p105) target = $region20
      $region19: #{decoder_forward.20} parent=15 // pred_region
        %p108 = scmp.lt.s32.totalorder %s8, 1
        %s109 = scalar_select %p108, %s8, 1
        %s110 = smul.addr %s109, 8
        %s111 = smul.addr %s110, 2
        %s112 = scalar_lea.vmem %s0, %s111
      $region20: #{decoder_forward.20} parent=15 // pred_fallthru
        _
      // Predicated region
      $region21: #{decoder_forward.20} parent=15 // pred_check
        %p113 = pneg %p54
      $region22: #{decoder_forward.20} parent=15 // pred_check_branch
        %115 = sbr.rel (%p113) target = $region24
      $region23: #{decoder_forward.20} parent=15 // pred_region
        %p116 = scmp.lt.s32.totalorder %s8, 1
        %s117 = scalar_select %p116, %s8, 1
        %s118 = smul.addr %s117, 2
        %s119 = scalar_lea.vmem %s1, %s118
      $region24: #{decoder_forward.20} parent=15 // pred_fallthru
        _
    $region16: #{decoder_forward.20} parent=5 // pred_fallthru
      _
    %p120 = scmp.le.s32.totalorder 1, %s8
    %p121 = scmp.lt.s32.totalorder %s8, 3
    %p122 = pnand %p120, %p121
    %p123 = pneg %p122
    // Predicated region
    $region25: #{decoder_forward.20} parent=5 // pred_check
      _
    $region26: #{decoder_forward.20} parent=5 // pred_check_branch
      %125 = sbr.rel (%p122) target = $region28
    $region27: #{decoder_forward.20} parent=5 // pred_region
      %s126 = ssub.s32 %s8, 1
      %p127 = scmp.lt.s32.totalorder %s13, 1
      %s128 = scalar_select %p127, %s13, 1
      %s129 = smul.addr %s128, 8
      %s130 = smul.addr %s129, 2
      %s131 = scalar_lea.vmem %s0, %s130
      %p132 = pneg %p34
      %p133 = pneg %p31
      %p134 = scmp.lt.s32.totalorder %s13, 1
      %s135 = scalar_select %p134, %s13, 1
      %s136 = smul.addr %s135, 2
      %s137 = scalar_lea.vmem %s1, %s136
      %p138 = pneg %p60
      %p139 = pneg %p57
      %p140 = pneg %p86
      %p141 = pneg %p83
      %p142 = scmp.lt.s32.totalorder %s13, 1
      %s143 = scalar_select %p142, %s13, 1
      %s144 = smul.addr %s143, 4
      %s145 = scalar_lea.vmem %s2, %s144
      %p146 = scmp.lt.s32.totalorder %s13, 1
      %s147 = scalar_select %p146, %s13, 1
      %s148 = smul.addr %s147, 8
      %s149 = smul.addr %s148, 2
      %s150 = scalar_lea.vmem %s0, %s149
      %p151 = scmp.lt.s32.totalorder %s13, 1
      %s152 = scalar_select %p151, %s13, 1
      %s153 = smul.addr %s152, 2
      %s154 = scalar_lea.vmem %s1, %s153
      %p155 = scmp.lt.s32.totalorder %s13, 1
      %s156 = scalar_select %p155, %s13, 1
      %s157 = smul.addr %s156, 4
      %s158 = scalar_lea.vmem %s2, %s157
      %v162 = vld [vmem:[%s150] sm:$0x1]
      %v163 = vld [vmem:[%s150 + $0x2] sm:$0x1]
      %v164 = vld [vmem:[%s150 + $0x4] sm:$0x1]
      %v165 = vld [vmem:[%s150 + $0x6] sm:$0x1]
      %v166 = vld [vmem:[%s150 + $0x8] sm:$0x1]
      %v167 = vld [vmem:[%s150 + $0xa] sm:$0x1]
      %v168 = vld [vmem:[%s150 + $0xc] sm:$0x1]
      %v169 = vld [vmem:[%s150 + $0xe] sm:$0x1]
      %v170 = vld [vmem:[%s150] sm:$0x2]
      %v171 = vld [vmem:[%s150 + $0x2] sm:$0x2]
      %v172 = vld [vmem:[%s150 + $0x4] sm:$0x2]
      %v173 = vld [vmem:[%s150 + $0x6] sm:$0x2]
      %v174 = vld [vmem:[%s150 + $0x8] sm:$0x2]
      %v175 = vld [vmem:[%s150 + $0xa] sm:$0x2]
      %v176 = vld [vmem:[%s150 + $0xc] sm:$0x2]
      %v177 = vld [vmem:[%s150 + $0xe] sm:$0x2]
      %v178 = vld [vmem:[%s154] sm:$0x3]
      %vm179 = vnez %v178
      %v189 = vunpack.c.l.s4 1983009808
      %v190 = vunpack.c.0.s8 %v189
      %v191 = vlaneseq
      %v192 = vshrl.u32 %v191, 7
      %v193 = vsub.s32 %v190, %v192
      %v194 = vrot.slane %v162, %v193
      %v196 = vunpack.c.l.s4 1983009808
      %v197 = vunpack.c.0.s8 %v196
      %v198 = vlaneseq
      %v199 = vshrl.u32 %v198, 7
      %v200 = vsub.s32 %v197, %v199
      %v201 = vrot.slane %v163, %v200
      %v203 = vunpack.c.l.s4 1983009808
      %v204 = vunpack.c.0.s8 %v203
      %v205 = vlaneseq
      %v206 = vshrl.u32 %v205, 7
      %v207 = vsub.s32 %v204, %v206
      %v208 = vrot.slane %v164, %v207
      %v210 = vunpack.c.l.s4 1983009808
      %v211 = vunpack.c.0.s8 %v210
      %v212 = vlaneseq
      %v213 = vshrl.u32 %v212, 7
      %v214 = vsub.s32 %v211, %v213
      %v215 = vrot.slane %v165, %v214
      %v217 = vunpack.c.l.s4 1983009808
      %v218 = vunpack.c.0.s8 %v217
      %v219 = vlaneseq
      %v220 = vshrl.u32 %v219, 7
      %v221 = vsub.s32 %v218, %v220
      %v222 = vrot.slane %v166, %v221
      %v224 = vunpack.c.l.s4 1983009808
      %v225 = vunpack.c.0.s8 %v224
      %v226 = vlaneseq
      %v227 = vshrl.u32 %v226, 7
      %v228 = vsub.s32 %v225, %v227
      %v229 = vrot.slane %v167, %v228
      %v231 = vunpack.c.l.s4 1983009808
      %v232 = vunpack.c.0.s8 %v231
      %v233 = vlaneseq
      %v234 = vshrl.u32 %v233, 7
      %v235 = vsub.s32 %v232, %v234
      %v236 = vrot.slane %v168, %v235
      %v238 = vunpack.c.l.s4 1983009808
      %v239 = vunpack.c.0.s8 %v238
      %v240 = vlaneseq
      %v241 = vshrl.u32 %v240, 7
      %v242 = vsub.s32 %v239, %v241
      %v243 = vrot.slane %v169, %v242
      %v244 = vunpack.c.l.b16 %v194
      %v245 = vunpack.c.l.b16 %v201
      %v246 = vunpack.c.l.b16 %v208
      %v247 = vunpack.c.l.b16 %v215
      %v248 = vunpack.c.l.b16 %v222
      %v249 = vunpack.c.l.b16 %v229
      %v250 = vunpack.c.l.b16 %v236
      %v251 = vunpack.c.l.b16 %v243
      %v252 = vrot.slane %v245, 7
      %vm253 = vcmask 1041409
      %v254 = vsel %vm253, %v252, %v244
      %v255 = vrot.slane %v246, 6
      %vm256 = vcmask 1042434
      %v257 = vsel %vm256, %v255, %v254
      %v258 = vrot.slane %v247, 5
      %vm259 = vcmask 1043459
      %v260 = vsel %vm259, %v258, %v257
      %v261 = vrot.slane %v248, 4
      %vm262 = vcmask 1044484
      %v263 = vsel %vm262, %v261, %v260
      %v264 = vrot.slane %v249, 3
      %vm265 = vcmask 1045509
      %v266 = vsel %vm265, %v264, %v263
      %v267 = vrot.slane %v250, 2
      %vm268 = vcmask 1046534
      %v269 = vsel %vm268, %v267, %v266
      %v270 = vrot.slane %v251, 1
      %vm271 = vcmask 1047559
      %v272 = vsel %vm271, %v270, %v269
      %v273 = vpack.c.b16 %v272, %v272
      %v274 = vrot.slane %v244, 1
      %v275 = vsel %vm253, %v245, %v274
      %v276 = vrot.slane %v246, 7
      %v277 = vsel %vm256, %v276, %v275
      %v278 = vrot.slane %v247, 6
      %v279 = vsel %vm259, %v278, %v277
      %v280 = vrot.slane %v248, 5
      %v281 = vsel %vm262, %v280, %v279
      %v282 = vrot.slane %v249, 4
      %v283 = vsel %vm265, %v282, %v281
      %v284 = vrot.slane %v250, 3
      %v285 = vsel %vm268, %v284, %v283
      %v286 = vrot.slane %v251, 2
      %v287 = vsel %vm271, %v286, %v285
      %v288 = vpack.c.b16 %v287, %v287
      %vm289 = vcmask 64512
      %v291 = vsel %vm289, %v273, 0
      %v294 = vsel %vm289, %v288, 0
      %296 = vmatprep.subr.bf16.mxu0 0
      %297 = vmatpush1.bf16.xpose.msra.mxu0 0
      %298 = vmatprep.subr.bf16.mxu0 0
      %299 = vmatpush1.bf16.xpose.msra.mxu0 0
      %300 = vmatprep.subr.bf16.mxu0 0
      %301 = vmatpush1.bf16.xpose.msra.mxu0 0
      %302 = vmatprep.subr.bf16.mxu0 0
      %303 = vmatpush1.bf16.xpose.msra.mxu0 0
      %304 = vmatprep.subr.bf16.mxu0 0
      %305 = vmatpush1.bf16.xpose.msra.mxu0 0
      %306 = vmatprep.subr.bf16.mxu0 0
      %307 = vmatpush1.bf16.xpose.msra.mxu0 0
      %308 = vmatprep.subr.bf16.mxu0 0
      %309 = vmatpush1.bf16.xpose.msra.mxu0 0
      %310 = vmatprep.subr.bf16.mxu0 0
      %311 = vmatpush1.bf16.xpose.msra.mxu0 %v294
      %312 = vmatprep.subr.bf16.mxu0 0
      %313 = vmatpush2.bf16.xpose.msra.mxu0 0
      %314 = vmatprep.subr.bf16.mxu0 0
      %315 = vmatpush2.bf16.xpose.msra.mxu0 0
      %316 = vmatprep.subr.bf16.mxu0 0
      %317 = vmatpush2.bf16.xpose.msra.mxu0 0
      %318 = vmatprep.subr.bf16.mxu0 0
      %319 = vmatpush2.bf16.xpose.msra.mxu0 0
      %320 = vmatprep.subr.bf16.mxu0 0
      %321 = vmatpush2.bf16.xpose.msra.mxu0 0
      %322 = vmatprep.subr.bf16.mxu0 0
      %323 = vmatpush2.bf16.xpose.msra.mxu0 0
      %324 = vmatprep.subr.bf16.mxu0 0
      %325 = vmatpush2.bf16.xpose.msra.mxu0 0
      %326 = vmatprep.subr.bf16.mxu0 0
      %327 = vmatpush2.bf16.xpose.msra.mxu0 0
      %328 = vmatprep.mubr.bf16.mxu0 0
      %329 = vmatmul.mubr.bf16.gmra.mxu0 %v291
      %v330 = vpop.f32.mrf.mxu0
      %v331 = vadd.f32 0.0, %v330
      %v332 = vpop.f32.mrf.mxu0
      %v333 = vpop.f32.mrf.mxu0
      %v334 = vpop.f32.mrf.mxu0
      %335 = vdwg.mxu0
      %v336 = vsel %vm179, 16843009, 0
      %v337 = vunpack.c.0.s8 %v336
      %vm338 = vcmp.ne.s32.totalorder %v337, 0
      %v339 = vsel %vm338, %v331, -1e+09
      %v340 = vsel %vm289, %v339, -inf
      %341 = vmax.xlane.f32.xlu0 %v340
      %v342 = vpop.xlane.xlu0 %341
      %v343 = vsub.f32 %v339, %v342
      %v344 = vmul.f32 %v343, 1.442695
      %v345 = vpow.pop %v344
      %v346 = vsel %vm289, %v345, 0.0
      %347 = vadd.xlane.f32.xlu0 %v346
      %v348 = vpop.xlane.xlu0 %347
      %v349 = vrcp.pop %v348
      %v350 = vmul.f32 %v345, %v349
      %v351 = vpack.c.bf16 %v350, %v350
      %v361 = vunpack.c.l.s4 1983009808
      %v362 = vunpack.c.0.s8 %v361
      %v363 = vlaneseq
      %v364 = vshrl.u32 %v363, 7
      %v365 = vsub.s32 %v362, %v364
      %v366 = vrot.slane %v170, %v365
      %v368 = vunpack.c.l.s4 1983009808
      %v369 = vunpack.c.0.s8 %v368
      %v370 = vlaneseq
      %v371 = vshrl.u32 %v370, 7
      %v372 = vsub.s32 %v369, %v371
      %v373 = vrot.slane %v171, %v372
      %v375 = vunpack.c.l.s4 1983009808
      %v376 = vunpack.c.0.s8 %v375
      %v377 = vlaneseq
      %v378 = vshrl.u32 %v377, 7
      %v379 = vsub.s32 %v376, %v378
      %v380 = vrot.slane %v172, %v379
      %v382 = vunpack.c.l.s4 1983009808
      %v383 = vunpack.c.0.s8 %v382
      %v384 = vlaneseq
      %v385 = vshrl.u32 %v384, 7
      %v386 = vsub.s32 %v383, %v385
      %v387 = vrot.slane %v173, %v386
      %v389 = vunpack.c.l.s4 1983009808
      %v390 = vunpack.c.0.s8 %v389
      %v391 = vlaneseq
      %v392 = vshrl.u32 %v391, 7
      %v393 = vsub.s32 %v390, %v392
      %v394 = vrot.slane %v174, %v393
      %v396 = vunpack.c.l.s4 1983009808
      %v397 = vunpack.c.0.s8 %v396
      %v398 = vlaneseq
      %v399 = vshrl.u32 %v398, 7
      %v400 = vsub.s32 %v397, %v399
      %v401 = vrot.slane %v175, %v400
      %v403 = vunpack.c.l.s4 1983009808
      %v404 = vunpack.c.0.s8 %v403
      %v405 = vlaneseq
      %v406 = vshrl.u32 %v405, 7
      %v407 = vsub.s32 %v404, %v406
      %v408 = vrot.slane %v176, %v407
      %v410 = vunpack.c.l.s4 1983009808
      %v411 = vunpack.c.0.s8 %v410
      %v412 = vlaneseq
      %v413 = vshrl.u32 %v412, 7
      %v414 = vsub.s32 %v411, %v413
      %v415 = vrot.slane %v177, %v414
      %v416 = vunpack.c.l.b16 %v366
      %v417 = vunpack.c.l.b16 %v373
      %v418 = vunpack.c.l.b16 %v380
      %v419 = vunpack.c.l.b16 %v387
      %v420 = vunpack.c.l.b16 %v394
      %v421 = vunpack.c.l.b16 %v401
      %v422 = vunpack.c.l.b16 %v408
      %v423 = vunpack.c.l.b16 %v415
      %v424 = vrot.slane %v416, 2
      %v425 = vrot.slane %v417, 1
      %v426 = vsel %vm253, %v425, %v424
      %v427 = vsel %vm256, %v418, %v426
      %v428 = vrot.slane %v419, 7
      %v429 = vsel %vm259, %v428, %v427
      %v430 = vrot.slane %v420, 6
      %v431 = vsel %vm262, %v430, %v429
      %v432 = vrot.slane %v421, 5
      %v433 = vsel %vm265, %v432, %v431
      %v434 = vrot.slane %v422, 4
      %v435 = vsel %vm268, %v434, %v433
      %v436 = vrot.slane %v423, 3
      %v437 = vsel %vm271, %v436, %v435
      %v438 = vpack.c.b16 %v437, %v437
      %v440 = vsel %vm289, %v351, 0
      %vm442 = vcmask 1043456
      %v444 = vsel %vm442, %v438, 0
      %446 = vmatprep.subr.bf16.mxu0 0
      %447 = vmatpush1.bf16.msra.mxu0 0
      %448 = vmatprep.subr.bf16.mxu0 0
      %449 = vmatpush1.bf16.msra.mxu0 0
      %450 = vmatprep.subr.bf16.mxu0 0
      %451 = vmatpush1.bf16.msra.mxu0 0
      %452 = vmatprep.subr.bf16.mxu0 0
      %453 = vmatpush1.bf16.msra.mxu0 0
      %454 = vmatprep.subr.bf16.mxu0 0
      %455 = vmatpush1.bf16.msra.mxu0 0
      %456 = vmatprep.subr.bf16.mxu0 0
      %457 = vmatpush1.bf16.msra.mxu0 0
      %458 = vmatprep.subr.bf16.mxu0 0
      %459 = vmatpush1.bf16.msra.mxu0 0
      %460 = vmatprep.subr.bf16.mxu0 0
      %461 = vmatpush1.bf16.msra.mxu0 %v444
      %462 = vmatprep.subr.bf16.mxu0 0
      %463 = vmatpush2.bf16.msra.mxu0 0
      %464 = vmatprep.subr.bf16.mxu0 0
      %465 = vmatpush2.bf16.msra.mxu0 0
      %466 = vmatprep.subr.bf16.mxu0 0
      %467 = vmatpush2.bf16.msra.mxu0 0
      %468 = vmatprep.subr.bf16.mxu0 0
      %469 = vmatpush2.bf16.msra.mxu0 0
      %470 = vmatprep.subr.bf16.mxu0 0
      %471 = vmatpush2.bf16.msra.mxu0 0
      %472 = vmatprep.subr.bf16.mxu0 0
      %473 = vmatpush2.bf16.msra.mxu0 0
      %474 = vmatprep.subr.bf16.mxu0 0
      %475 = vmatpush2.bf16.msra.mxu0 0
      %476 = vmatprep.subr.bf16.mxu0 0
      %477 = vmatpush2.bf16.msra.mxu0 0
      %478 = vmatprep.mubr.bf16.mxu0 0
      %479 = vmatmul.mubr.bf16.gmra.mxu0 %v440
      %v480 = vpop.f32.mrf.mxu0
      %v481 = vadd.f32 0.0, %v480
      %v482 = vpop.f32.mrf.mxu0
      %v483 = vpop.f32.mrf.mxu0
      %v484 = vpop.f32.mrf.mxu0
      %485 = vdwg.mxu0
      %486 = vst.msk [vmem:[#allocation2] sm:$0xff] %vm289, %v481
      %487 = vrot.lane.b32.xlu0 %v273, 120
      %v488 = vpop.permute.xlu0 %487
      %489 = vrot.lane.b32.xlu0 %v288, 120
      %v490 = vpop.permute.xlu0 %489
      %v492 = vsel %vm289, %v488, 0
      %v495 = vsel %vm289, %v490, 0
      %497 = vmatprep.subr.bf16.mxu0 0
      %498 = vmatpush1.bf16.xpose.msra.mxu0 0
      %499 = vmatprep.subr.bf16.mxu0 0
      %500 = vmatpush1.bf16.xpose.msra.mxu0 0
      %501 = vmatprep.subr.bf16.mxu0 0
      %502 = vmatpush1.bf16.xpose.msra.mxu0 0
      %503 = vmatprep.subr.bf16.mxu0 0
      %504 = vmatpush1.bf16.xpose.msra.mxu0 0
      %505 = vmatprep.subr.bf16.mxu0 0
      %506 = vmatpush1.bf16.xpose.msra.mxu0 0
      %507 = vmatprep.subr.bf16.mxu0 0
      %508 = vmatpush1.bf16.xpose.msra.mxu0 0
      %509 = vmatprep.subr.bf16.mxu0 0
      %510 = vmatpush1.bf16.xpose.msra.mxu0 0
      %511 = vmatprep.subr.bf16.mxu0 0
      %512 = vmatpush1.bf16.xpose.msra.mxu0 %v495
      %513 = vmatprep.subr.bf16.mxu0 0
      %514 = vmatpush2.bf16.xpose.msra.mxu0 0
      %515 = vmatprep.subr.bf16.mxu0 0
      %516 = vmatpush2.bf16.xpose.msra.mxu0 0
      %517 = vmatprep.subr.bf16.mxu0 0
      %518 = vmatpush2.bf16.xpose.msra.mxu0 0
      %519 = vmatprep.subr.bf16.mxu0 0
      %520 = vmatpush2.bf16.xpose.msra.mxu0 0
      %521 = vmatprep.subr.bf16.mxu0 0
      %522 = vmatpush2.bf16.xpose.msra.mxu0 0
      %523 = vmatprep.subr.bf16.mxu0 0
      %524 = vmatpush2.bf16.xpose.msra.mxu0 0
      %525 = vmatprep.subr.bf16.mxu0 0
      %526 = vmatpush2.bf16.xpose.msra.mxu0 0
      %527 = vmatprep.subr.bf16.mxu0 0
      %528 = vmatpush2.bf16.xpose.msra.mxu0 0
      %529 = vmatprep.mubr.bf16.mxu0 0
      %530 = vmatmul.mubr.bf16.gmra.mxu0 %v492
      %v531 = vpop.f32.mrf.mxu0
      %v532 = vadd.f32 0.0, %v531
      %v533 = vpop.f32.mrf.mxu0
      %v534 = vpop.f32.mrf.mxu0
      %v535 = vpop.f32.mrf.mxu0
      %536 = vdwg.mxu0
      %v537 = vsel %vm338, %v532, -1e+09
      %v538 = vsel %vm289, %v537, -inf
      %539 = vmax.xlane.f32.xlu0 %v538
      %v540 = vpop.xlane.xlu0 %539
      %v541 = vsub.f32 %v537, %v540
      %v542 = vmul.f32 %v541, 1.442695
      %v543 = vpow.pop %v542
      %v544 = vsel %vm289, %v543, 0.0
      %545 = vadd.xlane.f32.xlu0 %v544
      %v546 = vpop.xlane.xlu0 %545
      %v547 = vrcp.pop %v546
      %v548 = vmul.f32 %v543, %v547
      %v549 = vpack.c.bf16 %v548, %v548
      %550 = vrot.lane.b32.xlu0 %v438, 120
      %v551 = vpop.permute.xlu0 %550
      %v553 = vsel %vm289, %v549, 0
      %v556 = vsel %vm442, %v551, 0
      %558 = vmatprep.subr.bf16.mxu0 0
      %559 = vmatpush1.bf16.msra.mxu0 0
      %560 = vmatprep.subr.bf16.mxu0 0
      %561 = vmatpush1.bf16.msra.mxu0 0
      %562 = vmatprep.subr.bf16.mxu0 0
      %563 = vmatpush1.bf16.msra.mxu0 0
      %564 = vmatprep.subr.bf16.mxu0 0
      %565 = vmatpush1.bf16.msra.mxu0 0
      %566 = vmatprep.subr.bf16.mxu0 0
      %567 = vmatpush1.bf16.msra.mxu0 0
      %568 = vmatprep.subr.bf16.mxu0 0
      %569 = vmatpush1.bf16.msra.mxu0 0
      %570 = vmatprep.subr.bf16.mxu0 0
      %571 = vmatpush1.bf16.msra.mxu0 0
      %572 = vmatprep.subr.bf16.mxu0 0
      %573 = vmatpush1.bf16.msra.mxu0 %v556
      %574 = vmatprep.subr.bf16.mxu0 0
      %575 = vmatpush2.bf16.msra.mxu0 0
      %576 = vmatprep.subr.bf16.mxu0 0
      %577 = vmatpush2.bf16.msra.mxu0 0
      %578 = vmatprep.subr.bf16.mxu0 0
      %579 = vmatpush2.bf16.msra.mxu0 0
      %580 = vmatprep.subr.bf16.mxu0 0
      %581 = vmatpush2.bf16.msra.mxu0 0
      %582 = vmatprep.subr.bf16.mxu0 0
      %583 = vmatpush2.bf16.msra.mxu0 0
      %584 = vmatprep.subr.bf16.mxu0 0
      %585 = vmatpush2.bf16.msra.mxu0 0
      %586 = vmatprep.subr.bf16.mxu0 0
      %587 = vmatpush2.bf16.msra.mxu0 0
      %588 = vmatprep.subr.bf16.mxu0 0
      %589 = vmatpush2.bf16.msra.mxu0 0
      %590 = vmatprep.mubr.bf16.mxu0 0
      %591 = vmatmul.mubr.bf16.gmra.mxu0 %v553
      %v592 = vpop.f32.mrf.mxu0
      %v593 = vadd.f32 0.0, %v592
      %v594 = vpop.f32.mrf.mxu0
      %v595 = vpop.f32.mrf.mxu0
      %v596 = vpop.f32.mrf.mxu0
      %597 = vdwg.mxu0
      %599 = vrot.lane.b32.xlu0 %v593, 8
      %v600 = vpop.permute.xlu0 %599
      %vm602 = vcmask 130112
      %603 = vst.msk [vmem:[#allocation2] sm:$0xff] %vm602, %v600
      %604 = vrot.lane.b32.xlu0 %v273, 112
      %v605 = vpop.permute.xlu0 %604
      %606 = vrot.lane.b32.xlu0 %v288, 112
      %v607 = vpop.permute.xlu0 %606
      %v609 = vsel %vm289, %v605, 0
      %v612 = vsel %vm289, %v607, 0
      %614 = vmatprep.subr.bf16.mxu0 0
      %615 = vmatpush1.bf16.xpose.msra.mxu0 0
      %616 = vmatprep.subr.bf16.mxu0 0
      %617 = vmatpush1.bf16.xpose.msra.mxu0 0
      %618 = vmatprep.subr.bf16.mxu0 0
      %619 = vmatpush1.bf16.xpose.msra.mxu0 0
      %620 = vmatprep.subr.bf16.mxu0 0
      %621 = vmatpush1.bf16.xpose.msra.mxu0 0
      %622 = vmatprep.subr.bf16.mxu0 0
      %623 = vmatpush1.bf16.xpose.msra.mxu0 0
      %624 = vmatprep.subr.bf16.mxu0 0
      %625 = vmatpush1.bf16.xpose.msra.mxu0 0
      %626 = vmatprep.subr.bf16.mxu0 0
      %627 = vmatpush1.bf16.xpose.msra.mxu0 0
      %628 = vmatprep.subr.bf16.mxu0 0
      %629 = vmatpush1.bf16.xpose.msra.mxu0 %v612
      %630 = vmatprep.subr.bf16.mxu0 0
      %631 = vmatpush2.bf16.xpose.msra.mxu0 0
      %632 = vmatprep.subr.bf16.mxu0 0
      %633 = vmatpush2.bf16.xpose.msra.mxu0 0
      %634 = vmatprep.subr.bf16.mxu0 0
      %635 = vmatpush2.bf16.xpose.msra.mxu0 0
      %636 = vmatprep.subr.bf16.mxu0 0
      %637 = vmatpush2.bf16.xpose.msra.mxu0 0
      %638 = vmatprep.subr.bf16.mxu0 0
      %639 = vmatpush2.bf16.xpose.msra.mxu0 0
      %640 = vmatprep.subr.bf16.mxu0 0
      %641 = vmatpush2.bf16.xpose.msra.mxu0 0
      %642 = vmatprep.subr.bf16.mxu0 0
      %643 = vmatpush2.bf16.xpose.msra.mxu0 0
      %644 = vmatprep.subr.bf16.mxu0 0
      %645 = vmatpush2.bf16.xpose.msra.mxu0 0
      %646 = vmatprep.mubr.bf16.mxu0 0
      %647 = vmatmul.mubr.bf16.gmra.mxu0 %v609
      %v648 = vpop.f32.mrf.mxu0
      %v649 = vadd.f32 0.0, %v648
      %v650 = vpop.f32.mrf.mxu0
      %v651 = vpop.f32.mrf.mxu0
      %v652 = vpop.f32.mrf.mxu0
      %653 = vdwg.mxu0
      %v654 = vsel %vm338, %v649, -1e+09
      %v655 = vsel %vm289, %v654, -inf
      %656 = vmax.xlane.f32.xlu0 %v655
      %v657 = vpop.xlane.xlu0 %656
      %v658 = vsub.f32 %v654, %v657
      %v659 = vmul.f32 %v658, 1.442695
      %v660 = vpow.pop %v659
      %v661 = vsel %vm289, %v660, 0.0
      %662 = vadd.xlane.f32.xlu0 %v661
      %v663 = vpop.xlane.xlu0 %662
      %v664 = vrcp.pop %v663
      %v665 = vmul.f32 %v660, %v664
      %v666 = vpack.c.bf16 %v665, %v665
      %667 = vrot.lane.b32.xlu0 %v438, 112
      %v668 = vpop.permute.xlu0 %667
      %v670 = vsel %vm289, %v666, 0
      %v673 = vsel %vm442, %v668, 0
      %675 = vmatprep.subr.bf16.mxu0 0
      %676 = vmatpush1.bf16.msra.mxu0 0
      %677 = vmatprep.subr.bf16.mxu0 0
      %678 = vmatpush1.bf16.msra.mxu0 0
      %679 = vmatprep.subr.bf16.mxu0 0
      %680 = vmatpush1.bf16.msra.mxu0 0
      %681 = vmatprep.subr.bf16.mxu0 0
      %682 = vmatpush1.bf16.msra.mxu0 0
      %683 = vmatprep.subr.bf16.mxu0 0
      %684 = vmatpush1.bf16.msra.mxu0 0
      %685 = vmatprep.subr.bf16.mxu0 0
      %686 = vmatpush1.bf16.msra.mxu0 0
      %687 = vmatprep.subr.bf16.mxu0 0
      %688 = vmatpush1.bf16.msra.mxu0 0
      %689 = vmatprep.subr.bf16.mxu0 0
      %690 = vmatpush1.bf16.msra.mxu0 %v673
      %691 = vmatprep.subr.bf16.mxu0 0
      %692 = vmatpush2.bf16.msra.mxu0 0
      %693 = vmatprep.subr.bf16.mxu0 0
      %694 = vmatpush2.bf16.msra.mxu0 0
      %695 = vmatprep.subr.bf16.mxu0 0
      %696 = vmatpush2.bf16.msra.mxu0 0
      %697 = vmatprep.subr.bf16.mxu0 0
      %698 = vmatpush2.bf16.msra.mxu0 0
      %699 = vmatprep.subr.bf16.mxu0 0
      %700 = vmatpush2.bf16.msra.mxu0 0
      %701 = vmatprep.subr.bf16.mxu0 0
      %702 = vmatpush2.bf16.msra.mxu0 0
      %703 = vmatprep.subr.bf16.mxu0 0
      %704 = vmatpush2.bf16.msra.mxu0 0
      %705 = vmatprep.subr.bf16.mxu0 0
      %706 = vmatpush2.bf16.msra.mxu0 0
      %707 = vmatprep.mubr.bf16.mxu0 0
      %708 = vmatmul.mubr.bf16.gmra.mxu0 %v670
      %v709 = vpop.f32.mrf.mxu0
      %v710 = vadd.f32 0.0, %v709
      %v711 = vpop.f32.mrf.mxu0
      %v712 = vpop.f32.mrf.mxu0
      %v713 = vpop.f32.mrf.mxu0
      %714 = vdwg.mxu0
      %716 = vrot.lane.b32.xlu0 %v710, 16
      %v717 = vpop.permute.xlu0 %716
      %vm719 = vcmask 195712
      %720 = vst.msk [vmem:[#allocation2] sm:$0xff] %vm719, %v717
      %721 = vrot.lane.b32.xlu0 %v273, 104
      %v722 = vpop.permute.xlu0 %721
      %723 = vrot.lane.b32.xlu0 %v288, 104
      %v724 = vpop.permute.xlu0 %723
      %v726 = vsel %vm289, %v722, 0
      %v729 = vsel %vm289, %v724, 0
      %731 = vmatprep.subr.bf16.mxu0 0
      %732 = vmatpush1.bf16.xpose.msra.mxu0 0
      %733 = vmatprep.subr.bf16.mxu0 0
      %734 = vmatpush1.bf16.xpose.msra.mxu0 0
      %735 = vmatprep.subr.bf16.mxu0 0
      %736 = vmatpush1.bf16.xpose.msra.mxu0 0
      %737 = vmatprep.subr.bf16.mxu0 0
      %738 = vmatpush1.bf16.xpose.msra.mxu0 0
      %739 = vmatprep.subr.bf16.mxu0 0
      %740 = vmatpush1.bf16.xpose.msra.mxu0 0
      %741 = vmatprep.subr.bf16.mxu0 0
      %742 = vmatpush1.bf16.xpose.msra.mxu0 0
      %743 = vmatprep.subr.bf16.mxu0 0
      %744 = vmatpush1.bf16.xpose.msra.mxu0 0
      %745 = vmatprep.subr.bf16.mxu0 0
      %746 = vmatpush1.bf16.xpose.msra.mxu0 %v729
      %747 = vmatprep.subr.bf16.mxu0 0
      %748 = vmatpush2.bf16.xpose.msra.mxu0 0
      %749 = vmatprep.subr.bf16.mxu0 0
      %750 = vmatpush2.bf16.xpose.msra.mxu0 0
      %751 = vmatprep.subr.bf16.mxu0 0
      %752 = vmatpush2.bf16.xpose.msra.mxu0 0
      %753 = vmatprep.subr.bf16.mxu0 0
      %754 = vmatpush2.bf16.xpose.msra.mxu0 0
      %755 = vmatprep.subr.bf16.mxu0 0
      %756 = vmatpush2.bf16.xpose.msra.mxu0 0
      %757 = vmatprep.subr.bf16.mxu0 0
      %758 = vmatpush2.bf16.xpose.msra.mxu0 0
      %759 = vmatprep.subr.bf16.mxu0 0
      %760 = vmatpush2.bf16.xpose.msra.mxu0 0
      %761 = vmatprep.subr.bf16.mxu0 0
      %762 = vmatpush2.bf16.xpose.msra.mxu0 0
      %763 = vmatprep.mubr.bf16.mxu0 0
      %764 = vmatmul.mubr.bf16.gmra.mxu0 %v726
      %v765 = vpop.f32.mrf.mxu0
      %v766 = vadd.f32 0.0, %v765
      %v767 = vpop.f32.mrf.mxu0
      %v768 = vpop.f32.mrf.mxu0
      %v769 = vpop.f32.mrf.mxu0
      %770 = vdwg.mxu0
      %v771 = vsel %vm338, %v766, -1e+09
      %v772 = vsel %vm289, %v771, -inf
      %773 = vmax.xlane.f32.xlu0 %v772
      %v774 = vpop.xlane.xlu0 %773
      %v775 = vsub.f32 %v771, %v774
      %v776 = vmul.f32 %v775, 1.442695
      %v777 = vpow.pop %v776
      %v778 = vsel %vm289, %v777, 0.0
      %779 = vadd.xlane.f32.xlu0 %v778
      %v780 = vpop.xlane.xlu0 %779
      %v781 = vrcp.pop %v780
      %v782 = vmul.f32 %v777, %v781
      %v783 = vpack.c.bf16 %v782, %v782
      %784 = vrot.lane.b32.xlu0 %v438, 104
      %v785 = vpop.permute.xlu0 %784
      %v787 = vsel %vm289, %v783, 0
      %v790 = vsel %vm442, %v785, 0
      %792 = vmatprep.subr.bf16.mxu0 0
      %793 = vmatpush1.bf16.msra.mxu0 0
      %794 = vmatprep.subr.bf16.mxu0 0
      %795 = vmatpush1.bf16.msra.mxu0 0
      %796 = vmatprep.subr.bf16.mxu0 0
      %797 = vmatpush1.bf16.msra.mxu0 0
      %798 = vmatprep.subr.bf16.mxu0 0
      %799 = vmatpush1.bf16.msra.mxu0 0
      %800 = vmatprep.subr.bf16.mxu0 0
      %801 = vmatpush1.bf16.msra.mxu0 0
      %802 = vmatprep.subr.bf16.mxu0 0
      %803 = vmatpush1.bf16.msra.mxu0 0
      %804 = vmatprep.subr.bf16.mxu0 0
      %805 = vmatpush1.bf16.msra.mxu0 0
      %806 = vmatprep.subr.bf16.mxu0 0
      %807 = vmatpush1.bf16.msra.mxu0 %v790
      %808 = vmatprep.subr.bf16.mxu0 0
      %809 = vmatpush2.bf16.msra.mxu0 0
      %810 = vmatprep.subr.bf16.mxu0 0
      %811 = vmatpush2.bf16.msra.mxu0 0
      %812 = vmatprep.subr.bf16.mxu0 0
      %813 = vmatpush2.bf16.msra.mxu0 0
      %814 = vmatprep.subr.bf16.mxu0 0
      %815 = vmatpush2.bf16.msra.mxu0 0
      %816 = vmatprep.subr.bf16.mxu0 0
      %817 = vmatpush2.bf16.msra.mxu0 0
      %818 = vmatprep.subr.bf16.mxu0 0
      %819 = vmatpush2.bf16.msra.mxu0 0
      %820 = vmatprep.subr.bf16.mxu0 0
      %821 = vmatpush2.bf16.msra.mxu0 0
      %822 = vmatprep.subr.bf16.mxu0 0
      %823 = vmatpush2.bf16.msra.mxu0 0
      %824 = vmatprep.mubr.bf16.mxu0 0
      %825 = vmatmul.mubr.bf16.gmra.mxu0 %v787
      %v826 = vpop.f32.mrf.mxu0
      %v827 = vadd.f32 0.0, %v826
      %v828 = vpop.f32.mrf.mxu0
      %v829 = vpop.f32.mrf.mxu0
      %v830 = vpop.f32.mrf.mxu0
      %831 = vdwg.mxu0
      %833 = vrot.lane.b32.xlu0 %v827, 24
      %v834 = vpop.permute.xlu0 %833
      %vm836 = vcmask 261312
      %837 = vst.msk [vmem:[#allocation2] sm:$0xff] %vm836, %v834
      %v838 = vld [vmem:[#allocation2] sm:$0xff]
      %v839 = vpack.c.bf16 %v838, %v838
      %vm840 = vcmask 257024
      %841 = vst.msk [vmem:[%s158] sm:$0xf] %vm840, %v839
      %p842 = scmp.lt.s32.totalorder %s13, 1
      %s843 = scalar_select %p842, %s13, 1
      %s844 = smul.addr %s843, 4
      %s845 = scalar_lea.vmem %s2, %s844
      // Predicated region
      $region29: #{decoder_forward.20} parent=27 // pred_check
        %p846 = pneg %p83
      $region30: #{decoder_forward.20} parent=27 // pred_check_branch
        %848 = sbr.rel (%p846) target = $region32
      $region31: #{decoder_forward.20} parent=27 // pred_region
        _
      $region32: #{decoder_forward.20} parent=27 // pred_fallthru
        _
    $region28: #{decoder_forward.20} parent=5 // pred_fallthru
      _
    %p849 = scmp.le.s32.totalorder 2, %s8
    // Predicated region
    $region33: #{decoder_forward.20} parent=5 // pred_check
      %p850 = pneg %p849
    $region34: #{decoder_forward.20} parent=5 // pred_check_branch
      %852 = sbr.rel (%p850) target = $region36
    $region35: #{decoder_forward.20} parent=5 // pred_region
      %s853 = ssub.s32 %s8, 2
      // Predicated region
      $region37: #{decoder_forward.20} parent=35 // pred_check
        %p854 = pneg %p89
      $region38: #{decoder_forward.20} parent=35 // pred_check_branch
        %856 = sbr.rel (%p854) target = $region40
      $region39: #{decoder_forward.20} parent=35 // pred_region
        %p857 = scmp.lt.s32.totalorder %s14, 1
        %s858 = scalar_select %p857, %s14, 1
        %s859 = smul.addr %s858, 4
        %s860 = scalar_lea.vmem %s2, %s859
      $region40: #{decoder_forward.20} parent=35 // pred_fallthru
        _
    $region36: #{decoder_forward.20} parent=5 // pred_fallthru
      _
  $region6: #{decoder_forward.20} parent=0 // loop_footer
    %s12 = sadd.s32 1, %s8
  $region7: #{decoder_forward.20} parent=0 // loop_footer_branch
    %7 = sbr.rel target = $region3
  $region8: #{decoder_forward.20} parent=0 // loop_exit
    _

// kernel: decoder_forward.26
$region0: #{decoder_forward.26}
  #allocation0 [shape = 'u32[]', space=smem, size = 0x4, offset = 0x4, fixed_abs, tag = 'smem constant byte address 0x4 - core index']
  #allocation1 [shape = 'u32[144,128]{1,0:T(1,128)}', space=vmem, size = 0x12000, scoped, tag = 'internal scratch']
  #allocation2 [shape = 'f32[16,64]{1,0:T(8,128)}', space=vmem, size = 0x2000, scoped, tag = 'scratch operand']
  %s0 = inlined_call_operand.vmem [shape: bf16[16,32], index: 0, kind: input, shape index: {}]
  %s1 = inlined_call_operand.vmem [shape: bf16[32,64], index: 1, kind: input, shape index: {}]
  %s2 = inlined_call_operand.vmem [shape: f32[1,64], index: 2, kind: input, shape index: {}]
  %s3 = inlined_call_operand.vmem [shape: bf16[16,64], index: 3, kind: output, shape index: {}]
  %s4 = sld [smem:[#allocation0]]
  $region30: #{decoder_forward.26} parent=0
    _
  %s6 = ssub.s32 1, %s4
  %s7 = scalar_select 0, %s6, %s4
  // Predicated region
  $region2: #{decoder_forward.26} parent=0 // pred_check
    _
  $region3: #{decoder_forward.26} parent=0 // pred_check_branch
    %9 = sbr.rel (0) target = $region5
  $region4: #{decoder_forward.26} parent=0 // pred_region
    _
  $region5: #{decoder_forward.26} parent=0 // pred_fallthru
    _
  // Predicated region
  $region6: #{decoder_forward.26} parent=0 // pred_check
    _
  $region7: #{decoder_forward.26} parent=0 // pred_check_branch
    %11 = sbr.rel (0) target = $region9
  $region8: #{decoder_forward.26} parent=0 // pred_region
    _
  $region9: #{decoder_forward.26} parent=0 // pred_fallthru
    _
  // Predicated region
  $region10: #{decoder_forward.26} parent=0 // pred_check
    _
  $region11: #{decoder_forward.26} parent=0 // pred_check_branch
    %13 = sbr.rel (0) target = $region13
  $region12: #{decoder_forward.26} parent=0 // pred_region
    _
  $region13: #{decoder_forward.26} parent=0 // pred_fallthru
    _
  %p15 = scmp.eq.s32.totalorder 0, 0
  // Predicated region
  $region14: #{decoder_forward.26} parent=0 // pred_check
    %p16 = pneg %p15
  $region15: #{decoder_forward.26} parent=0 // pred_check_branch
    %18 = sbr.rel (%p16) target = $region17
  $region16: #{decoder_forward.26} parent=0 // pred_region
    %vm19 = vcmask 523264
    %20 = vst.msk [vmem:[#allocation2] sm:$0xff] %vm19, 0.0
    %21 = vst.msk [vmem:[#allocation2 + $0x8] sm:$0xff] %vm19, 0.0
  $region17: #{decoder_forward.26} parent=0 // pred_fallthru
    _
  %v22 = vld [vmem:[#allocation2] sm:$0xff]
  %v23 = vld [vmem:[#allocation2 + $0x8] sm:$0xff]
  %v24 = vld [vmem:[%s0] sm:$0xf]
  %v25 = vld [vmem:[%s0 + $0x4] sm:$0xf]
  %v26 = vld [vmem:[%s1] sm:$0xf]
  %v27 = vld [vmem:[%s1 + $0x4] sm:$0xf]
  %v28 = vld [vmem:[%s1 + $0x8] sm:$0xf]
  %v29 = vld [vmem:[%s1 + $0xc] sm:$0xf]
  %v32 = vunpack.c.l.b16 %v24
  %v33 = vunpack.c.l.b16 %v25
  %v34 = vpack.c.b16 %v33, %v32
  %v39 = vunpack.c.l.b16 %v26
  %v40 = vunpack.c.l.b16 %v27
  %v41 = vunpack.c.l.b16 %v28
  %v42 = vunpack.c.l.b16 %v29
  %v43 = vpack.c.b16 %v40, %v39
  %v44 = vpack.c.b16 %v42, %v41
  %vm47 = vcmask 261120
  %v49 = vsel %vm47, %v34, 0
  %51 = vmatprep.subr.bf16.mxu0 0
  %52 = vmatpush1.bf16.msra.mxu0 0
  %53 = vmatprep.subr.bf16.mxu0 0
  %54 = vmatpush1.bf16.msra.mxu0 0
  %55 = vmatprep.subr.bf16.mxu0 0
  %56 = vmatpush1.bf16.msra.mxu0 0
  %57 = vmatprep.subr.bf16.mxu0 0
  %58 = vmatpush1.bf16.msra.mxu0 0
  %59 = vmatprep.subr.bf16.mxu0 0
  %60 = vmatpush1.bf16.msra.mxu0 0
  %61 = vmatprep.subr.bf16.mxu0 0
  %62 = vmatpush1.bf16.msra.mxu0 0
  %63 = vmatprep.subr.bf16.mxu0 0
  %64 = vmatpush1.bf16.msra.mxu0 %v44
  %65 = vmatprep.subr.bf16.mxu0 0
  %66 = vmatpush1.bf16.msra.mxu0 %v43
  %67 = vmatprep.subr.bf16.mxu0 0
  %68 = vmatpush2.bf16.msra.mxu0 0
  %69 = vmatprep.subr.bf16.mxu0 0
  %70 = vmatpush2.bf16.msra.mxu0 0
  %71 = vmatprep.subr.bf16.mxu0 0
  %72 = vmatpush2.bf16.msra.mxu0 0
  %73 = vmatprep.subr.bf16.mxu0 0
  %74 = vmatpush2.bf16.msra.mxu0 0
  %75 = vmatprep.subr.bf16.mxu0 0
  %76 = vmatpush2.bf16.msra.mxu0 0
  %77 = vmatprep.subr.bf16.mxu0 0
  %78 = vmatpush2.bf16.msra.mxu0 0
  %79 = vmatprep.subr.bf16.mxu0 0
  %80 = vmatpush2.bf16.msra.mxu0 0
  %81 = vmatprep.subr.bf16.mxu0 0
  %82 = vmatpush2.bf16.msra.mxu0 0
  %83 = vmatprep.mubr.bf16.mxu0 0
  %84 = vmatmul.mubr.bf16.gmra.mxu0 %v49
  %v85 = vpop.f32.mrf.mxu0
  %v86 = vadd.f32 0.0, %v85
  %v87 = vpop.f32.mrf.mxu0
  %v88 = vpop.f32.mrf.mxu0
  %v89 = vadd.f32 0.0, %v88
  %v90 = vpop.f32.mrf.mxu0
  %91 = vdwg.mxu0
  %v92 = vadd.f32 %v22, %v86
  %v93 = vadd.f32 %v23, %v89
  %vm94 = vcmask 523264
  %95 = vst.msk [vmem:[#allocation2] sm:$0xff] %vm94, %v92
  %96 = vst.msk [vmem:[#allocation2 + $0x8] sm:$0xff] %vm94, %v93
  // Predicated region
  $region18: #{decoder_forward.26} parent=0 // pred_check
    %p97 = pneg %p15
  $region19: #{decoder_forward.26} parent=0 // pred_check_branch
    %99 = sbr.rel (%p97) target = $region21
  $region20: #{decoder_forward.26} parent=0 // pred_region
    %v100 = vld [vmem:[#allocation2] sm:$0xff]
    %v101 = vld [vmem:[#allocation2 + $0x8] sm:$0xff]
    %v102 = vld [vmem:[%s2] sm:$0x1]
    %v104 = vlaneseq
    %v105 = vshrl.u32 %v104, 7
    %v106 = vsub.s32 0, %v105
    %v107 = vrot.slane %v102, %v106
    %v109 = vadd.f32 %v100, %v107
    %v110 = vadd.f32 %v101, %v107
    %v111 = vmax.f32 %v109, 0.0
    %v112 = vmax.f32 %v110, 0.0
    %v113 = vpack.c.bf16 %v112, %v111
    %v115 = vunpack.c.l.b16 %v113
    %v116 = vunpack.c.h.b16 %v113
    %v117 = vpack.c.b16 %v115, %v115
    %v118 = vpack.c.b16 %v116, %v116
    %vm121 = vcmask 519168
    %122 = vst.msk [vmem:[%s3] sm:$0xf] %vm121, %v117
    %123 = vst.msk [vmem:[%s3 + $0x4] sm:$0xf] %vm121, %v118
  $region21: #{decoder_forward.26} parent=0 // pred_fallthru
    _
  // Predicated region
  $region22: #{decoder_forward.26} parent=0 // pred_check
    _
  $region23: #{decoder_forward.26} parent=0 // pred_check_branch
    %125 = sbr.rel (0) target = $region25
  $region24: #{decoder_forward.26} parent=0 // pred_region
    _
  $region25: #{decoder_forward.26} parent=0 // pred_fallthru
    _
  // Predicated region
  $region26: #{decoder_forward.26} parent=0 // pred_check
    _
  $region27: #{decoder_forward.26} parent=0 // pred_check_branch
    %127 = sbr.rel (0) target = $region29
  $region28: #{decoder_forward.26} parent=0 // pred_region
    _
  $region29: #{decoder_forward.26} parent=0 // pred_fallthru
    _

// kernel: decoder_forward.23
$region0: #{decoder_forward.23}
  #allocation0 [shape = 'u32[]', space=smem, size = 0x4, offset = 0x4, fixed_abs, tag = 'smem constant byte address 0x4 - core index']
  #allocation1 [shape = 'u32[144,128]{1,0:T(1,128)}', space=vmem, size = 0x12000, scoped, tag = 'internal scratch']
  #allocation2 [shape = 'f32[16,64]{1,0:T(8,128)}', space=vmem, size = 0x2000, scoped, tag = 'scratch operand']
  %s0 = inlined_call_operand.vmem [shape: bf16[16,32], index: 0, kind: input, shape index: {}]
  %s1 = inlined_call_operand.vmem [shape: bf16[32,64], index: 1, kind: input, shape index: {}]
  %s2 = inlined_call_operand.vmem [shape: f32[1,64], index: 2, kind: input, shape index: {}]
  %s3 = inlined_call_operand.vmem [shape: bf16[16,64], index: 3, kind: output, shape index: {}]
  %s4 = sld [smem:[#allocation0]]
  $region30: #{decoder_forward.23} parent=0
    _
  %s6 = ssub.s32 1, %s4
  %s7 = scalar_select 0, %s6, %s4
  // Predicated region
  $region2: #{decoder_forward.23} parent=0 // pred_check
    _
  $region3: #{decoder_forward.23} parent=0 // pred_check_branch
    %9 = sbr.rel (0) target = $region5
  $region4: #{decoder_forward.23} parent=0 // pred_region
    _
  $region5: #{decoder_forward.23} parent=0 // pred_fallthru
    _
  // Predicated region
  $region6: #{decoder_forward.23} parent=0 // pred_check
    _
  $region7: #{decoder_forward.23} parent=0 // pred_check_branch
    %11 = sbr.rel (0) target = $region9
  $region8: #{decoder_forward.23} parent=0 // pred_region
    _
  $region9: #{decoder_forward.23} parent=0 // pred_fallthru
    _
  // Predicated region
  $region10: #{decoder_forward.23} parent=0 // pred_check
    _
  $region11: #{decoder_forward.23} parent=0 // pred_check_branch
    %13 = sbr.rel (0) target = $region13
  $region12: #{decoder_forward.23} parent=0 // pred_region
    _
  $region13: #{decoder_forward.23} parent=0 // pred_fallthru
    _
  %p15 = scmp.eq.s32.totalorder 0, 0
  // Predicated region
  $region14: #{decoder_forward.23} parent=0 // pred_check
    %p16 = pneg %p15
  $region15: #{decoder_forward.23} parent=0 // pred_check_branch
    %18 = sbr.rel (%p16) target = $region17
  $region16: #{decoder_forward.23} parent=0 // pred_region
    %vm19 = vcmask 523264
    %20 = vst.msk [vmem:[#allocation2] sm:$0xff] %vm19, 0.0
    %21 = vst.msk [vmem:[#allocation2 + $0x8] sm:$0xff] %vm19, 0.0
  $region17: #{decoder_forward.23} parent=0 // pred_fallthru
    _
  %v22 = vld [vmem:[#allocation2] sm:$0xff]
  %v23 = vld [vmem:[#allocation2 + $0x8] sm:$0xff]
  %v24 = vld [vmem:[%s0] sm:$0xf]
  %v25 = vld [vmem:[%s0 + $0x4] sm:$0xf]
  %v26 = vld [vmem:[%s1] sm:$0xf]
  %v27 = vld [vmem:[%s1 + $0x4] sm:$0xf]
  %v28 = vld [vmem:[%s1 + $0x8] sm:$0xf]
  %v29 = vld [vmem:[%s1 + $0xc] sm:$0xf]
  %v32 = vunpack.c.l.b16 %v24
  %v33 = vunpack.c.l.b16 %v25
  %v34 = vpack.c.b16 %v33, %v32
  %v39 = vunpack.c.l.b16 %v26
  %v40 = vunpack.c.l.b16 %v27
  %v41 = vunpack.c.l.b16 %v28
  %v42 = vunpack.c.l.b16 %v29
  %v43 = vpack.c.b16 %v40, %v39
  %v44 = vpack.c.b16 %v42, %v41
  %vm47 = vcmask 261120
  %v49 = vsel %vm47, %v34, 0
  %51 = vmatprep.subr.bf16.mxu0 0
  %52 = vmatpush1.bf16.msra.mxu0 0
  %53 = vmatprep.subr.bf16.mxu0 0
  %54 = vmatpush1.bf16.msra.mxu0 0
  %55 = vmatprep.subr.bf16.mxu0 0
  %56 = vmatpush1.bf16.msra.mxu0 0
  %57 = vmatprep.subr.bf16.mxu0 0
  %58 = vmatpush1.bf16.msra.mxu0 0
  %59 = vmatprep.subr.bf16.mxu0 0
  %60 = vmatpush1.bf16.msra.mxu0 0
  %61 = vmatprep.subr.bf16.mxu0 0
  %62 = vmatpush1.bf16.msra.mxu0 0
  %63 = vmatprep.subr.bf16.mxu0 0
  %64 = vmatpush1.bf16.msra.mxu0 %v44
  %65 = vmatprep.subr.bf16.mxu0 0
  %66 = vmatpush1.bf16.msra.mxu0 %v43
  %67 = vmatprep.subr.bf16.mxu0 0
  %68 = vmatpush2.bf16.msra.mxu0 0
  %69 = vmatprep.subr.bf16.mxu0 0
  %70 = vmatpush2.bf16.msra.mxu0 0
  %71 = vmatprep.subr.bf16.mxu0 0
  %72 = vmatpush2.bf16.msra.mxu0 0
  %73 = vmatprep.subr.bf16.mxu0 0
  %74 = vmatpush2.bf16.msra.mxu0 0
  %75 = vmatprep.subr.bf16.mxu0 0
  %76 = vmatpush2.bf16.msra.mxu0 0
  %77 = vmatprep.subr.bf16.mxu0 0
  %78 = vmatpush2.bf16.msra.mxu0 0
  %79 = vmatprep.subr.bf16.mxu0 0
  %80 = vmatpush2.bf16.msra.mxu0 0
  %81 = vmatprep.subr.bf16.mxu0 0
  %82 = vmatpush2.bf16.msra.mxu0 0
  %83 = vmatprep.mubr.bf16.mxu0 0
  %84 = vmatmul.mubr.bf16.gmra.mxu0 %v49
  %v85 = vpop.f32.mrf.mxu0
  %v86 = vadd.f32 0.0, %v85
  %v87 = vpop.f32.mrf.mxu0
  %v88 = vpop.f32.mrf.mxu0
  %v89 = vadd.f32 0.0, %v88
  %v90 = vpop.f32.mrf.mxu0
  %91 = vdwg.mxu0
  %v92 = vadd.f32 %v22, %v86
  %v93 = vadd.f32 %v23, %v89
  %vm94 = vcmask 523264
  %95 = vst.msk [vmem:[#allocation2] sm:$0xff] %vm94, %v92
  %96 = vst.msk [vmem:[#allocation2 + $0x8] sm:$0xff] %vm94, %v93
  // Predicated region
  $region18: #{decoder_forward.23} parent=0 // pred_check
    %p97 = pneg %p15
  $region19: #{decoder_forward.23} parent=0 // pred_check_branch
    %99 = sbr.rel (%p97) target = $region21
  $region20: #{decoder_forward.23} parent=0 // pred_region
    %v100 = vld [vmem:[#allocation2] sm:$0xff]
    %v101 = vld [vmem:[#allocation2 + $0x8] sm:$0xff]
    %v102 = vld [vmem:[%s2] sm:$0x1]
    %v104 = vlaneseq
    %v105 = vshrl.u32 %v104, 7
    %v106 = vsub.s32 0, %v105
    %v107 = vrot.slane %v102, %v106
    %v109 = vadd.f32 %v100, %v107
    %v110 = vadd.f32 %v101, %v107
    %v111 = vpack.c.bf16 %v110, %v109
    %v113 = vunpack.c.l.b16 %v111
    %v114 = vunpack.c.h.b16 %v111
    %v115 = vpack.c.b16 %v113, %v113
    %v116 = vpack.c.b16 %v114, %v114
    %vm119 = vcmask 519168
    %120 = vst.msk [vmem:[%s3] sm:$0xf] %vm119, %v115
    %121 = vst.msk [vmem:[%s3 + $0x4] sm:$0xf] %vm119, %v116
  $region21: #{decoder_forward.23} parent=0 // pred_fallthru
    _
  // Predicated region
  $region22: #{decoder_forward.23} parent=0 // pred_check
    _
  $region23: #{decoder_forward.23} parent=0 // pred_check_branch
    %123 = sbr.rel (0) target = $region25
  $region24: #{decoder_forward.23} parent=0 // pred_region
    _
  $region25: #{decoder_forward.23} parent=0 // pred_fallthru
    _
  // Predicated region
  $region26: #{decoder_forward.23} parent=0 // pred_check
    _
  $region27: #{decoder_forward.23} parent=0 // pred_check_branch
    %125 = sbr.rel (0) target = $region29
  $region28: #{decoder_forward.23} parent=0 // pred_region
    _
  $region29: #{decoder_forward.23} parent=0 // pred_fallthru
    _

// kernel: decoder_forward.24
$region0: #{decoder_forward.24}
  #allocation0 [shape = 'u32[]', space=smem, size = 0x4, offset = 0x4, fixed_abs, tag = 'smem constant byte address 0x4 - core index']
  #allocation1 [shape = 'u32[144,128]{1,0:T(1,128)}', space=vmem, size = 0x12000, scoped, tag = 'internal scratch']
  #allocation2 [shape = 'f32[8,32]{1,0:T(8,128)}', space=vmem, size = 0x1000, scoped, tag = 'scratch operand']
  %s0 = inlined_call_operand.vmem [shape: bf16[2,8,32], index: 0, kind: input, shape index: {}]
  %s1 = inlined_call_operand.vmem [shape: bf16[2,8,2,32], index: 1, kind: input, shape index: {}]
  %s2 = inlined_call_operand.vmem [shape: s8[2,8,8], index: 2, kind: input, shape index: {}]
  %s3 = inlined_call_operand.vmem [shape: bf16[2,8,32], index: 3, kind: output, shape index: {}]
  %s4 = sld [smem:[#allocation0]]
  $region45: #{decoder_forward.24} parent=0
    _
  %s6 = ssub.s32 1, %s4
  %s7 = scalar_select 0, %s6, %s4
  loop: start=0, step=1, limit=4
  $region2: #{decoder_forward.24} parent=0 // loop_pre_header
    _
  $region3: #{decoder_forward.24} parent=0 // loop_header
    %s9 = sphi 0, %s13
    %p10 = scmp.ge.s32.totalorder %s9, 4
    %s19 = sphi 0, %s21
    %s22 = sphi 0, %s19
    %s23 = sphi 0, %s22
    %s39 = sphi 0, %s23
    %s45 = sphi 0, %s47
    %s48 = sphi 0, %s45
    %s49 = sphi 0, %s48
    %s65 = sphi 0, %s49
    %s71 = sphi 0, %s73
    %s74 = sphi 0, %s71
    %s75 = sphi 0, %s74
    %s91 = sphi 0, %s75
    %s97 = sphi 0, %s99
    %s100 = sphi 0, %s97
    %s101 = sphi 0, %s100
    %s117 = sphi 0, %s101
  $region4: #{decoder_forward.24} parent=0 // loop_header_branch
    %12 = sbr.rel (%p10) target = $region8
  $region5: #{decoder_forward.24} parent=0 // loop_body
    %s14 = ssub.s32 %s9, 1
    %s15 = ssub.s32 %s9, 2
    %s16 = sadd.s32 %s9, 1
    %s17 = ssub.s32 %s9, %s16
    %p18 = scmp.eq.s32.totalorder %s17, 0
    %s20 = sadd.s32 %s19, 1
    %s21 = scalar_select %p18, %s19, %s20
    %p24 = pneg %p18
    %p25 = scmp.eq.s32.totalorder %s9, 1
    %p26 = por %p24, %p25
    %p27 = scmp.ne.s32.totalorder %s19, %s22
    %p28 = scmp.eq.s32.totalorder %s9, 0
    %p29 = por %p27, %p28
    %p30 = scmp.ne.s32.totalorder %s19, %s22
    %p31 = scmp.eq.s32.totalorder %s14, 1
    %p32 = por %p30, %p31
    %p33 = scmp.ne.s32.totalorder %s22, %s23
    %p34 = scmp.eq.s32.totalorder %s14, 0
    %p35 = por %p33, %p34
    %p36 = scmp.ne.s32.totalorder %s22, %s23
    %p37 = scmp.eq.s32.totalorder %s15, 1
    %p38 = por %p36, %p37
    %p40 = scmp.ne.s32.totalorder %s23, %s39
    %p41 = scmp.eq.s32.totalorder %s15, 0
    %p42 = por %p40, %p41
    %s43 = ssub.s32 %s9, %s16
    %p44 = scmp.eq.s32.totalorder %s43, 0
    %s46 = sadd.s32 %s45, 1
    %s47 = scalar_select %p44, %s45, %s46
    %p50 = pneg %p44
    %p51 = scmp.eq.s32.totalorder %s9, 1
    %p52 = por %p50, %p51
    %p53 = scmp.ne.s32.totalorder %s45, %s48
    %p54 = scmp.eq.s32.totalorder %s9, 0
    %p55 = por %p53, %p54
    %p56 = scmp.ne.s32.totalorder %s45, %s48
    %p57 = scmp.eq.s32.totalorder %s14, 1
    %p58 = por %p56, %p57
    %p59 = scmp.ne.s32.totalorder %s48, %s49
    %p60 = scmp.eq.s32.totalorder %s14, 0
    %p61 = por %p59, %p60
    %p62 = scmp.ne.s32.totalorder %s48, %s49
    %p63 = scmp.eq.s32.totalorder %s15, 1
    %p64 = por %p62, %p63
    %p66 = scmp.ne.s32.totalorder %s49, %s65
    %p67 = scmp.eq.s32.totalorder %s15, 0
    %p68 = por %p66, %p67
    %s69 = ssub.s32 %s9, %s16
    %p70 = scmp.eq.s32.totalorder %s69, 0
    %s72 = sadd.s32 %s71, 1
    %s73 = scalar_select %p70, %s71, %s72
    %p76 = pneg %p70
    %p77 = scmp.eq.s32.totalorder %s9, 1
    %p78 = por %p76, %p77
    %p79 = scmp.ne.s32.totalorder %s71, %s74
    %p80 = scmp.eq.s32.totalorder %s9, 0
    %p81 = por %p79, %p80
    %p82 = scmp.ne.s32.totalorder %s71, %s74
    %p83 = scmp.eq.s32.totalorder %s14, 1
    %p84 = por %p82, %p83
    %p85 = scmp.ne.s32.totalorder %s74, %s75
    %p86 = scmp.eq.s32.totalorder %s14, 0
    %p87 = por %p85, %p86
    %p88 = scmp.ne.s32.totalorder %s74, %s75
    %p89 = scmp.eq.s32.totalorder %s15, 1
    %p90 = por %p88, %p89
    %p92 = scmp.ne.s32.totalorder %s75, %s91
    %p93 = scmp.eq.s32.totalorder %s15, 0
    %p94 = por %p92, %p93
    %s95 = ssub.s32 %s9, %s16
    %p96 = scmp.eq.s32.totalorder %s95, 0
    %s98 = sadd.s32 %s97, 1
    %s99 = scalar_select %p96, %s97, %s98
    %p102 = pneg %p96
    %p103 = scmp.eq.s32.totalorder %s9, 1
    %p104 = por %p102, %p103
    %p105 = scmp.ne.s32.totalorder %s97, %s100
    %p106 = scmp.eq.s32.totalorder %s9, 0
    %p107 = por %p105, %p106
    %p108 = scmp.ne.s32.totalorder %s97, %s100
    %p109 = scmp.eq.s32.totalorder %s14, 1
    %p110 = por %p108, %p109
    %p111 = scmp.ne.s32.totalorder %s100, %s101
    %p112 = scmp.eq.s32.totalorder %s14, 0
    %p113 = por %p111, %p112
    %p114 = scmp.ne.s32.totalorder %s100, %s101
    %p115 = scmp.eq.s32.totalorder %s15, 1
    %p116 = por %p114, %p115
    %p118 = scmp.ne.s32.totalorder %s101, %s117
    %p119 = scmp.eq.s32.totalorder %s15, 0
    %p120 = por %p118, %p119
    %p121 = scmp.le.s32.totalorder 1, %s9
    %p122 = scmp.lt.s32.totalorder %s9, 3
    %p123 = pnand %p121, %p122
    %p124 = pneg %p123
    // Predicated region
    $region9: #{decoder_forward.24} parent=5 // pred_check
      _
    $region10: #{decoder_forward.24} parent=5 // pred_check_branch
      %126 = sbr.rel (%p123) target = $region12
    $region11: #{decoder_forward.24} parent=5 // pred_region
      %s127 = ssub.s32 %s9, 1
    $region12: #{decoder_forward.24} parent=5 // pred_fallthru
      _
    %p128 = scmp.lt.s32.totalorder %s9, 2
    // Predicated region
    $region13: #{decoder_forward.24} parent=5 // pred_check
      %p129 = pneg %p128
    $region14: #{decoder_forward.24} parent=5 // pred_check_branch
      %131 = sbr.rel (%p129) target = $region16
    $region15: #{decoder_forward.24} parent=5 // pred_region
      // Predicated region
      $region17: #{decoder_forward.24} parent=15 // pred_check
        %p132 = pneg %p29
      $region18: #{decoder_forward.24} parent=15 // pred_check_branch
        %134 = sbr.rel (%p132) target = $region20
      $region19: #{decoder_forward.24} parent=15 // pred_region
        %p135 = scmp.lt.s32.totalorder %s9, 1
        %s136 = scalar_select %p135, %s9, 1
        %s137 = smul.addr %s136, 4
        %s138 = scalar_lea.vmem %s0, %s137
      $region20: #{decoder_forward.24} parent=15 // pred_fallthru
        _
      // Predicated region
      $region21: #{decoder_forward.24} parent=15 // pred_check
        %p139 = pneg %p55
      $region22: #{decoder_forward.24} parent=15 // pred_check_branch
        %141 = sbr.rel (%p139) target = $region24
      $region23: #{decoder_forward.24} parent=15 // pred_region
        %p142 = scmp.lt.s32.totalorder %s9, 1
        %s143 = scalar_select %p142, %s9, 1
        %s144 = smul.addr %s143, 8
        %s145 = scalar_lea.vmem %s1, %s144
      $region24: #{decoder_forward.24} parent=15 // pred_fallthru
        _
      // Predicated region
      $region25: #{decoder_forward.24} parent=15 // pred_check
        %p146 = pneg %p81
      $region26: #{decoder_forward.24} parent=15 // pred_check_branch
        %148 = sbr.rel (%p146) target = $region28
      $region27: #{decoder_forward.24} parent=15 // pred_region
        %p149 = scmp.lt.s32.totalorder %s9, 1
        %s150 = scalar_select %p149, %s9, 1
        %s151 = smul.addr %s150, 2
        %s152 = scalar_lea.vmem %s2, %s151
      $region28: #{decoder_forward.24} parent=15 // pred_fallthru
        _
    $region16: #{decoder_forward.24} parent=5 // pred_fallthru
      _
    %p153 = scmp.le.s32.totalorder 1, %s9
    %p154 = scmp.lt.s32.totalorder %s9, 3
    %p155 = pnand %p153, %p154
    %p156 = pneg %p155
    // Predicated region
    $region29: #{decoder_forward.24} parent=5 // pred_check
      _
    $region30: #{decoder_forward.24} parent=5 // pred_check_branch
      %158 = sbr.rel (%p155) target = $region32
    $region31: #{decoder_forward.24} parent=5 // pred_region
      %s159 = ssub.s32 %s9, 1
      %p160 = scmp.lt.s32.totalorder %s14, 1
      %s161 = scalar_select %p160, %s14, 1
      %s162 = smul.addr %s161, 4
      %s163 = scalar_lea.vmem %s0, %s162
      %p164 = pneg %p35
      %p165 = pneg %p32
      %p166 = scmp.lt.s32.totalorder %s14, 1
      %s167 = scalar_select %p166, %s14, 1
      %s168 = smul.addr %s167, 8
      %s169 = scalar_lea.vmem %s1, %s168
      %p170 = pneg %p61
      %p171 = pneg %p58
      %p172 = scmp.lt.s32.totalorder %s14, 1
      %s173 = scalar_select %p172, %s14, 1
      %s174 = smul.addr %s173, 2
      %s175 = scalar_lea.vmem %s2, %s174
      %p176 = pneg %p87
      %p177 = pneg %p84
      %p178 = pneg %p113
      %p179 = pneg %p110
      %p180 = scmp.lt.s32.totalorder %s14, 1
      %s181 = scalar_select %p180, %s14, 1
      %s182 = smul.addr %s181, 4
      %s183 = scalar_lea.vmem %s3, %s182
      %p184 = scmp.lt.s32.totalorder %s14, 1
      %s185 = scalar_select %p184, %s14, 1
      %s186 = smul.addr %s185, 4
      %s187 = scalar_lea.vmem %s0, %s186
      %p188 = scmp.lt.s32.totalorder %s14, 1
      %s189 = scalar_select %p188, %s14, 1
      %s190 = smul.addr %s189, 8
      %s191 = scalar_lea.vmem %s1, %s190
      %p192 = scmp.lt.s32.totalorder %s14, 1
      %s193 = scalar_select %p192, %s14, 1
      %s194 = smul.addr %s193, 2
      %s195 = scalar_lea.vmem %s2, %s194
      %p196 = scmp.lt.s32.totalorder %s14, 1
      %s197 = scalar_select %p196, %s14, 1
      %s198 = smul.addr %s197, 4
      %s199 = scalar_lea.vmem %s3, %s198
      %v203 = vld [vmem:[%s187] sm:$0xf]
      %v204 = vld [vmem:[%s191] sm:$0x1]
      %v205 = vld [vmem:[%s191 + $0x1] sm:$0x1]
      %v206 = vld [vmem:[%s191 + $0x2] sm:$0x1]
      %v207 = vld [vmem:[%s191 + $0x3] sm:$0x1]
      %v208 = vld [vmem:[%s191 + $0x4] sm:$0x1]
      %v209 = vld [vmem:[%s191 + $0x5] sm:$0x1]
      %v210 = vld [vmem:[%s191 + $0x6] sm:$0x1]
      %v211 = vld [vmem:[%s191 + $0x7] sm:$0x1]
      %v212 = vld [vmem:[%s195] sm:$0x3]
      %vm213 = vnez %v212
      %v223 = vunpack.c.l.s4 1966171168
      %v224 = vunpack.c.0.s8 %v223
      %v225 = vlaneseq
      %v226 = vshrl.u32 %v225, 7
      %v227 = vsub.s32 %v224, %v226
      %v228 = vrot.slane %v204, %v227
      %v230 = vunpack.c.l.s4 1966171168
      %v231 = vunpack.c.0.s8 %v230
      %v232 = vlaneseq
      %v233 = vshrl.u32 %v232, 7
      %v234 = vsub.s32 %v231, %v233
      %v235 = vrot.slane %v228, %v234
      %v237 = vunpack.c.l.s4 1966171168
      %v238 = vunpack.c.0.s8 %v237
      %v239 = vlaneseq
      %v240 = vshrl.u32 %v239, 7
      %v241 = vsub.s32 %v238, %v240
      %v242 = vrot.slane %v205, %v241
      %v244 = vunpack.c.l.s4 1966171168
      %v245 = vunpack.c.0.s8 %v244
      %v246 = vlaneseq
      %v247 = vshrl.u32 %v246, 7
      %v248 = vsub.s32 %v245, %v247
      %v249 = vrot.slane %v242, %v248
      %v251 = vunpack.c.l.s4 1966171168
      %v252 = vunpack.c.0.s8 %v251
      %v253 = vlaneseq
      %v254 = vshrl.u32 %v253, 7
      %v255 = vsub.s32 %v252, %v254
      %v256 = vrot.slane %v206, %v255
      %v258 = vunpack.c.l.s4 1966171168
      %v259 = vunpack.c.0.s8 %v258
      %v260 = vlaneseq
      %v261 = vshrl.u32 %v260, 7
      %v262 = vsub.s32 %v259, %v261
      %v263 = vrot.slane %v256, %v262
      %v265 = vunpack.c.l.s4 1966171168
      %v266 = vunpack.c.0.s8 %v265
      %v267 = vlaneseq
      %v268 = vshrl.u32 %v267, 7
      %v269 = vsub.s32 %v266, %v268
      %v270 = vrot.slane %v207, %v269
      %v272 = vunpack.c.l.s4 1966171168
      %v273 = vunpack.c.0.s8 %v272
      %v274 = vlaneseq
      %v275 = vshrl.u32 %v274, 7
      %v276 = vsub.s32 %v273, %v275
      %v277 = vrot.slane %v270, %v276
      %v279 = vunpack.c.l.s4 1966171168
      %v280 = vunpack.c.0.s8 %v279
      %v281 = vlaneseq
      %v282 = vshrl.u32 %v281, 7
      %v283 = vsub.s32 %v280, %v282
      %v284 = vrot.slane %v208, %v283
      %v286 = vunpack.c.l.s4 1966171168
      %v287 = vunpack.c.0.s8 %v286
      %v288 = vlaneseq
      %v289 = vshrl.u32 %v288, 7
      %v290 = vsub.s32 %v287, %v289
      %v291 = vrot.slane %v284, %v290
      %v293 = vunpack.c.l.s4 1966171168
      %v294 = vunpack.c.0.s8 %v293
      %v295 = vlaneseq
      %v296 = vshrl.u32 %v295, 7
      %v297 = vsub.s32 %v294, %v296
      %v298 = vrot.slane %v209, %v297
      %v300 = vunpack.c.l.s4 1966171168
      %v301 = vunpack.c.0.s8 %v300
      %v302 = vlaneseq
      %v303 = vshrl.u32 %v302, 7
      %v304 = vsub.s32 %v301, %v303
      %v305 = vrot.slane %v298, %v304
      %v307 = vunpack.c.l.s4 1966171168
      %v308 = vunpack.c.0.s8 %v307
      %v309 = vlaneseq
      %v310 = vshrl.u32 %v309, 7
      %v311 = vsub.s32 %v308, %v310
      %v312 = vrot.slane %v210, %v311
      %v314 = vunpack.c.l.s4 1966171168
      %v315 = vunpack.c.0.s8 %v314
      %v316 = vlaneseq
      %v317 = vshrl.u32 %v316, 7
      %v318 = vsub.s32 %v315, %v317
      %v319 = vrot.slane %v312, %v318
      %v321 = vunpack.c.l.s4 1966171168
      %v322 = vunpack.c.0.s8 %v321
      %v323 = vlaneseq
      %v324 = vshrl.u32 %v323, 7
      %v325 = vsub.s32 %v322, %v324
      %v326 = vrot.slane %v211, %v325
      %v328 = vunpack.c.l.s4 1966171168
      %v329 = vunpack.c.0.s8 %v328
      %v330 = vlaneseq
      %v331 = vshrl.u32 %v330, 7
      %v332 = vsub.s32 %v329, %v331
      %v333 = vrot.slane %v326, %v332
      %v334 = vunpack.c.l.b16 %v235
      %v335 = vunpack.c.l.b16 %v249
      %v336 = vunpack.c.l.b16 %v263
      %v337 = vunpack.c.l.b16 %v277
      %v338 = vunpack.c.l.b16 %v291
      %v339 = vunpack.c.l.b16 %v305
      %v340 = vunpack.c.l.b16 %v319
      %v341 = vunpack.c.l.b16 %v333
      %v342 = vrot.slane %v335, 7
      %vm343 = vcmask 1041409
      %v344 = vsel %vm343, %v342, %v334
      %v345 = vrot.slane %v336, 6
      %vm346 = vcmask 1042434
      %v347 = vsel %vm346, %v345, %v344
      %v348 = vrot.slane %v337, 5
      %vm349 = vcmask 1043459
      %v350 = vsel %vm349, %v348, %v347
      %v351 = vrot.slane %v338, 4
      %vm352 = vcmask 1044484
      %v353 = vsel %vm352, %v351, %v350
      %v354 = vrot.slane %v339, 3
      %vm355 = vcmask 1045509
      %v356 = vsel %vm355, %v354, %v353
      %v357 = vrot.slane %v340, 2
      %vm358 = vcmask 1046534
      %v359 = vsel %vm358, %v357, %v356
      %v360 = vrot.slane %v341, 1
      %vm361 = vcmask 1047559
      %v362 = vsel %vm361, %v360, %v359
      %v363 = vpack.c.b16 %v362, %v362
      %vm364 = vcmask 64512
      %v366 = vsel %vm364, %v203, 0
      %v369 = vsel %vm364, %v363, 0
      %371 = vmatprep.subr.bf16.mxu0 0
      %372 = vmatpush1.bf16.xpose.msra.mxu0 0
      %373 = vmatprep.subr.bf16.mxu0 0
      %374 = vmatpush1.bf16.xpose.msra.mxu0 0
      %375 = vmatprep.subr.bf16.mxu0 0
      %376 = vmatpush1.bf16.xpose.msra.mxu0 0
      %377 = vmatprep.subr.bf16.mxu0 0
      %378 = vmatpush1.bf16.xpose.msra.mxu0 0
      %379 = vmatprep.subr.bf16.mxu0 0
      %380 = vmatpush1.bf16.xpose.msra.mxu0 0
      %381 = vmatprep.subr.bf16.mxu0 0
      %382 = vmatpush1.bf16.xpose.msra.mxu0 0
      %383 = vmatprep.subr.bf16.mxu0 0
      %384 = vmatpush1.bf16.xpose.msra.mxu0 0
      %385 = vmatprep.subr.bf16.mxu0 0
      %386 = vmatpush1.bf16.xpose.msra.mxu0 %v369
      %387 = vmatprep.subr.bf16.mxu0 0
      %388 = vmatpush2.bf16.xpose.msra.mxu0 0
      %389 = vmatprep.subr.bf16.mxu0 0
      %390 = vmatpush2.bf16.xpose.msra.mxu0 0
      %391 = vmatprep.subr.bf16.mxu0 0
      %392 = vmatpush2.bf16.xpose.msra.mxu0 0
      %393 = vmatprep.subr.bf16.mxu0 0
      %394 = vmatpush2.bf16.xpose.msra.mxu0 0
      %395 = vmatprep.subr.bf16.mxu0 0
      %396 = vmatpush2.bf16.xpose.msra.mxu0 0
      %397 = vmatprep.subr.bf16.mxu0 0
      %398 = vmatpush2.bf16.xpose.msra.mxu0 0
      %399 = vmatprep.subr.bf16.mxu0 0
      %400 = vmatpush2.bf16.xpose.msra.mxu0 0
      %401 = vmatprep.subr.bf16.mxu0 0
      %402 = vmatpush2.bf16.xpose.msra.mxu0 0
      %403 = vmatprep.mubr.bf16.mxu0 0
      %404 = vmatmul.mubr.bf16.gmra.mxu0 %v366
      %v405 = vpop.f32.mrf.mxu0
      %v406 = vadd.f32 0.0, %v405
      %v407 = vpop.f32.mrf.mxu0
      %v408 = vpop.f32.mrf.mxu0
      %v409 = vpop.f32.mrf.mxu0
      %410 = vdwg.mxu0
      %v411 = vsel %vm213, 16843009, 0
      %v412 = vunpack.c.0.s8 %v411
      %vm413 = vcmp.ne.s32.totalorder %v412, 0
      %v414 = vsel %vm413, %v406, -1e+09
      %v415 = vsel %vm364, %v414, -inf
      %416 = vmax.xlane.f32.xlu0 %v415
      %v417 = vpop.xlane.xlu0 %416
      %v418 = vsub.f32 %v414, %v417
      %v419 = vmul.f32 %v418, 1.442695
      %v420 = vpow.pop %v419
      %v421 = vsel %vm364, %v420, 0.0
      %422 = vadd.xlane.f32.xlu0 %v421
      %v423 = vpop.xlane.xlu0 %422
      %v424 = vrcp.pop %v423
      %v425 = vmul.f32 %v420, %v424
      %v426 = vpack.c.bf16 %v425, %v425
      %v427 = vrot.slane %v334, 1
      %v428 = vsel %vm343, %v335, %v427
      %v429 = vrot.slane %v336, 7
      %v430 = vsel %vm346, %v429, %v428
      %v431 = vrot.slane %v337, 6
      %v432 = vsel %vm349, %v431, %v430
      %v433 = vrot.slane %v338, 5
      %v434 = vsel %vm352, %v433, %v432
      %v435 = vrot.slane %v339, 4
      %v436 = vsel %vm355, %v435, %v434
      %v437 = vrot.slane %v340, 3
      %v438 = vsel %vm358, %v437, %v436
      %v439 = vrot.slane %v341, 2
      %v440 = vsel %vm361, %v439, %v438
      %v441 = vpack.c.b16 %v440, %v440
      %v443 = vsel %vm364, %v426, 0
      %vm445 = vcmask 1043456
      %v447 = vsel %vm445, %v441, 0
      %449 = vmatprep.subr.bf16.mxu0 0
      %450 = vmatpush1.bf16.msra.mxu0 0
      %451 = vmatprep.subr.bf16.mxu0 0
      %452 = vmatpush1.bf16.msra.mxu0 0
      %453 = vmatprep.subr.bf16.mxu0 0
      %454 = vmatpush1.bf16.msra.mxu0 0
      %455 = vmatprep.subr.bf16.mxu0 0
      %456 = vmatpush1.bf16.msra.mxu0 0
      %457 = vmatprep.subr.bf16.mxu0 0
      %458 = vmatpush1.bf16.msra.mxu0 0
      %459 = vmatprep.subr.bf16.mxu0 0
      %460 = vmatpush1.bf16.msra.mxu0 0
      %461 = vmatprep.subr.bf16.mxu0 0
      %462 = vmatpush1.bf16.msra.mxu0 0
      %463 = vmatprep.subr.bf16.mxu0 0
      %464 = vmatpush1.bf16.msra.mxu0 %v447
      %465 = vmatprep.subr.bf16.mxu0 0
      %466 = vmatpush2.bf16.msra.mxu0 0
      %467 = vmatprep.subr.bf16.mxu0 0
      %468 = vmatpush2.bf16.msra.mxu0 0
      %469 = vmatprep.subr.bf16.mxu0 0
      %470 = vmatpush2.bf16.msra.mxu0 0
      %471 = vmatprep.subr.bf16.mxu0 0
      %472 = vmatpush2.bf16.msra.mxu0 0
      %473 = vmatprep.subr.bf16.mxu0 0
      %474 = vmatpush2.bf16.msra.mxu0 0
      %475 = vmatprep.subr.bf16.mxu0 0
      %476 = vmatpush2.bf16.msra.mxu0 0
      %477 = vmatprep.subr.bf16.mxu0 0
      %478 = vmatpush2.bf16.msra.mxu0 0
      %479 = vmatprep.subr.bf16.mxu0 0
      %480 = vmatpush2.bf16.msra.mxu0 0
      %481 = vmatprep.mubr.bf16.mxu0 0
      %482 = vmatmul.mubr.bf16.gmra.mxu0 %v443
      %v483 = vpop.f32.mrf.mxu0
      %v484 = vadd.f32 0.0, %v483
      %v485 = vpop.f32.mrf.mxu0
      %v486 = vpop.f32.mrf.mxu0
      %v487 = vpop.f32.mrf.mxu0
      %488 = vdwg.mxu0
      %489 = vst.msk [vmem:[#allocation2] sm:$0xff] %vm364, %v484
      %v491 = vunpack.c.l.b16 %v203
      %v492 = vpack.c.b16 %v491, %v491
      %493 = vrot.lane.b32.xlu0 %v492, 120
      %v494 = vpop.permute.xlu0 %493
      %495 = vrot.lane.b32.xlu0 %v363, 120
      %v496 = vpop.permute.xlu0 %495
      %v498 = vsel %vm364, %v494, 0
      %v501 = vsel %vm364, %v496, 0
      %503 = vmatprep.subr.bf16.mxu0 0
      %504 = vmatpush1.bf16.xpose.msra.mxu0 0
      %505 = vmatprep.subr.bf16.mxu0 0
      %506 = vmatpush1.bf16.xpose.msra.mxu0 0
      %507 = vmatprep.subr.bf16.mxu0 0
      %508 = vmatpush1.bf16.xpose.msra.mxu0 0
      %509 = vmatprep.subr.bf16.mxu0 0
      %510 = vmatpush1.bf16.xpose.msra.mxu0 0
      %511 = vmatprep.subr.bf16.mxu0 0
      %512 = vmatpush1.bf16.xpose.msra.mxu0 0
      %513 = vmatprep.subr.bf16.mxu0 0
      %514 = vmatpush1.bf16.xpose.msra.mxu0 0
      %515 = vmatprep.subr.bf16.mxu0 0
      %516 = vmatpush1.bf16.xpose.msra.mxu0 0
      %517 = vmatprep.subr.bf16.mxu0 0
      %518 = vmatpush1.bf16.xpose.msra.mxu0 %v501
      %519 = vmatprep.subr.bf16.mxu0 0
      %520 = vmatpush2.bf16.xpose.msra.mxu0 0
      %521 = vmatprep.subr.bf16.mxu0 0
      %522 = vmatpush2.bf16.xpose.msra.mxu0 0
      %523 = vmatprep.subr.bf16.mxu0 0
      %524 = vmatpush2.bf16.xpose.msra.mxu0 0
      %525 = vmatprep.subr.bf16.mxu0 0
      %526 = vmatpush2.bf16.xpose.msra.mxu0 0
      %527 = vmatprep.subr.bf16.mxu0 0
      %528 = vmatpush2.bf16.xpose.msra.mxu0 0
      %529 = vmatprep.subr.bf16.mxu0 0
      %530 = vmatpush2.bf16.xpose.msra.mxu0 0
      %531 = vmatprep.subr.bf16.mxu0 0
      %532 = vmatpush2.bf16.xpose.msra.mxu0 0
      %533 = vmatprep.subr.bf16.mxu0 0
      %534 = vmatpush2.bf16.xpose.msra.mxu0 0
      %535 = vmatprep.mubr.bf16.mxu0 0
      %536 = vmatmul.mubr.bf16.gmra.mxu0 %v498
      %v537 = vpop.f32.mrf.mxu0
      %v538 = vadd.f32 0.0, %v537
      %v539 = vpop.f32.mrf.mxu0
      %v540 = vpop.f32.mrf.mxu0
      %v541 = vpop.f32.mrf.mxu0
      %542 = vdwg.mxu0
      %v543 = vsel %vm413, %v538, -1e+09
      %v544 = vsel %vm364, %v543, -inf
      %545 = vmax.xlane.f32.xlu0 %v544
      %v546 = vpop.xlane.xlu0 %545
      %v547 = vsub.f32 %v543, %v546
      %v548 = vmul.f32 %v547, 1.442695
      %v549 = vpow.pop %v548
      %v550 = vsel %vm364, %v549, 0.0
      %551 = vadd.xlane.f32.xlu0 %v550
      %v552 = vpop.xlane.xlu0 %551
      %v553 = vrcp.pop %v552
      %v554 = vmul.f32 %v549, %v553
      %v555 = vpack.c.bf16 %v554, %v554
      %556 = vrot.lane.b32.xlu0 %v441, 120
      %v557 = vpop.permute.xlu0 %556
      %v559 = vsel %vm364, %v555, 0
      %v562 = vsel %vm445, %v557, 0
      %564 = vmatprep.subr.bf16.mxu0 0
      %565 = vmatpush1.bf16.msra.mxu0 0
      %566 = vmatprep.subr.bf16.mxu0 0
      %567 = vmatpush1.bf16.msra.mxu0 0
      %568 = vmatprep.subr.bf16.mxu0 0
      %569 = vmatpush1.bf16.msra.mxu0 0
      %570 = vmatprep.subr.bf16.mxu0 0
      %571 = vmatpush1.bf16.msra.mxu0 0
      %572 = vmatprep.subr.bf16.mxu0 0
      %573 = vmatpush1.bf16.msra.mxu0 0
      %574 = vmatprep.subr.bf16.mxu0 0
      %575 = vmatpush1.bf16.msra.mxu0 0
      %576 = vmatprep.subr.bf16.mxu0 0
      %577 = vmatpush1.bf16.msra.mxu0 0
      %578 = vmatprep.subr.bf16.mxu0 0
      %579 = vmatpush1.bf16.msra.mxu0 %v562
      %580 = vmatprep.subr.bf16.mxu0 0
      %581 = vmatpush2.bf16.msra.mxu0 0
      %582 = vmatprep.subr.bf16.mxu0 0
      %583 = vmatpush2.bf16.msra.mxu0 0
      %584 = vmatprep.subr.bf16.mxu0 0
      %585 = vmatpush2.bf16.msra.mxu0 0
      %586 = vmatprep.subr.bf16.mxu0 0
      %587 = vmatpush2.bf16.msra.mxu0 0
      %588 = vmatprep.subr.bf16.mxu0 0
      %589 = vmatpush2.bf16.msra.mxu0 0
      %590 = vmatprep.subr.bf16.mxu0 0
      %591 = vmatpush2.bf16.msra.mxu0 0
      %592 = vmatprep.subr.bf16.mxu0 0
      %593 = vmatpush2.bf16.msra.mxu0 0
      %594 = vmatprep.subr.bf16.mxu0 0
      %595 = vmatpush2.bf16.msra.mxu0 0
      %596 = vmatprep.mubr.bf16.mxu0 0
      %597 = vmatmul.mubr.bf16.gmra.mxu0 %v559
      %v598 = vpop.f32.mrf.mxu0
      %v599 = vadd.f32 0.0, %v598
      %v600 = vpop.f32.mrf.mxu0
      %v601 = vpop.f32.mrf.mxu0
      %v602 = vpop.f32.mrf.mxu0
      %603 = vdwg.mxu0
      %605 = vrot.lane.b32.xlu0 %v599, 8
      %v606 = vpop.permute.xlu0 %605
      %vm608 = vcmask 130112
      %609 = vst.msk [vmem:[#allocation2] sm:$0xff] %vm608, %v606
      %610 = vrot.lane.b32.xlu0 %v492, 112
      %v611 = vpop.permute.xlu0 %610
      %612 = vrot.lane.b32.xlu0 %v363, 112
      %v613 = vpop.permute.xlu0 %612
      %v615 = vsel %vm364, %v611, 0
      %v618 = vsel %vm364, %v613, 0
      %620 = vmatprep.subr.bf16.mxu0 0
      %621 = vmatpush1.bf16.xpose.msra.mxu0 0
      %622 = vmatprep.subr.bf16.mxu0 0
      %623 = vmatpush1.bf16.xpose.msra.mxu0 0
      %624 = vmatprep.subr.bf16.mxu0 0
      %625 = vmatpush1.bf16.xpose.msra.mxu0 0
      %626 = vmatprep.subr.bf16.mxu0 0
      %627 = vmatpush1.bf16.xpose.msra.mxu0 0
      %628 = vmatprep.subr.bf16.mxu0 0
      %629 = vmatpush1.bf16.xpose.msra.mxu0 0
      %630 = vmatprep.subr.bf16.mxu0 0
      %631 = vmatpush1.bf16.xpose.msra.mxu0 0
      %632 = vmatprep.subr.bf16.mxu0 0
      %633 = vmatpush1.bf16.xpose.msra.mxu0 0
      %634 = vmatprep.subr.bf16.mxu0 0
      %635 = vmatpush1.bf16.xpose.msra.mxu0 %v618
      %636 = vmatprep.subr.bf16.mxu0 0
      %637 = vmatpush2.bf16.xpose.msra.mxu0 0
      %638 = vmatprep.subr.bf16.mxu0 0
      %639 = vmatpush2.bf16.xpose.msra.mxu0 0
      %640 = vmatprep.subr.bf16.mxu0 0
      %641 = vmatpush2.bf16.xpose.msra.mxu0 0
      %642 = vmatprep.subr.bf16.mxu0 0
      %643 = vmatpush2.bf16.xpose.msra.mxu0 0
      %644 = vmatprep.subr.bf16.mxu0 0
      %645 = vmatpush2.bf16.xpose.msra.mxu0 0
      %646 = vmatprep.subr.bf16.mxu0 0
      %647 = vmatpush2.bf16.xpose.msra.mxu0 0
      %648 = vmatprep.subr.bf16.mxu0 0
      %649 = vmatpush2.bf16.xpose.msra.mxu0 0
      %650 = vmatprep.subr.bf16.mxu0 0
      %651 = vmatpush2.bf16.xpose.msra.mxu0 0
      %652 = vmatprep.mubr.bf16.mxu0 0
      %653 = vmatmul.mubr.bf16.gmra.mxu0 %v615
      %v654 = vpop.f32.mrf.mxu0
      %v655 = vadd.f32 0.0, %v654
      %v656 = vpop.f32.mrf.mxu0
      %v657 = vpop.f32.mrf.mxu0
      %v658 = vpop.f32.mrf.mxu0
      %659 = vdwg.mxu0
      %v660 = vsel %vm413, %v655, -1e+09
      %v661 = vsel %vm364, %v660, -inf
      %662 = vmax.xlane.f32.xlu0 %v661
      %v663 = vpop.xlane.xlu0 %662
      %v664 = vsub.f32 %v660, %v663
      %v665 = vmul.f32 %v664, 1.442695
      %v666 = vpow.pop %v665
      %v667 = vsel %vm364, %v666, 0.0
      %668 = vadd.xlane.f32.xlu0 %v667
      %v669 = vpop.xlane.xlu0 %668
      %v670 = vrcp.pop %v669
      %v671 = vmul.f32 %v666, %v670
      %v672 = vpack.c.bf16 %v671, %v671
      %673 = vrot.lane.b32.xlu0 %v441, 112
      %v674 = vpop.permute.xlu0 %673
      %v676 = vsel %vm364, %v672, 0
      %v679 = vsel %vm445, %v674, 0
      %681 = vmatprep.subr.bf16.mxu0 0
      %682 = vmatpush1.bf16.msra.mxu0 0
      %683 = vmatprep.subr.bf16.mxu0 0
      %684 = vmatpush1.bf16.msra.mxu0 0
      %685 = vmatprep.subr.bf16.mxu0 0
      %686 = vmatpush1.bf16.msra.mxu0 0
      %687 = vmatprep.subr.bf16.mxu0 0
      %688 = vmatpush1.bf16.msra.mxu0 0
      %689 = vmatprep.subr.bf16.mxu0 0
      %690 = vmatpush1.bf16.msra.mxu0 0
      %691 = vmatprep.subr.bf16.mxu0 0
      %692 = vmatpush1.bf16.msra.mxu0 0
      %693 = vmatprep.subr.bf16.mxu0 0
      %694 = vmatpush1.bf16.msra.mxu0 0
      %695 = vmatprep.subr.bf16.mxu0 0
      %696 = vmatpush1.bf16.msra.mxu0 %v679
      %697 = vmatprep.subr.bf16.mxu0 0
      %698 = vmatpush2.bf16.msra.mxu0 0
      %699 = vmatprep.subr.bf16.mxu0 0
      %700 = vmatpush2.bf16.msra.mxu0 0
      %701 = vmatprep.subr.bf16.mxu0 0
      %702 = vmatpush2.bf16.msra.mxu0 0
      %703 = vmatprep.subr.bf16.mxu0 0
      %704 = vmatpush2.bf16.msra.mxu0 0
      %705 = vmatprep.subr.bf16.mxu0 0
      %706 = vmatpush2.bf16.msra.mxu0 0
      %707 = vmatprep.subr.bf16.mxu0 0
      %708 = vmatpush2.bf16.msra.mxu0 0
      %709 = vmatprep.subr.bf16.mxu0 0
      %710 = vmatpush2.bf16.msra.mxu0 0
      %711 = vmatprep.subr.bf16.mxu0 0
      %712 = vmatpush2.bf16.msra.mxu0 0
      %713 = vmatprep.mubr.bf16.mxu0 0
      %714 = vmatmul.mubr.bf16.gmra.mxu0 %v676
      %v715 = vpop.f32.mrf.mxu0
      %v716 = vadd.f32 0.0, %v715
      %v717 = vpop.f32.mrf.mxu0
      %v718 = vpop.f32.mrf.mxu0
      %v719 = vpop.f32.mrf.mxu0
      %720 = vdwg.mxu0
      %722 = vrot.lane.b32.xlu0 %v716, 16
      %v723 = vpop.permute.xlu0 %722
      %vm725 = vcmask 195712
      %726 = vst.msk [vmem:[#allocation2] sm:$0xff] %vm725, %v723
      %727 = vrot.lane.b32.xlu0 %v492, 104
      %v728 = vpop.permute.xlu0 %727
      %729 = vrot.lane.b32.xlu0 %v363, 104
      %v730 = vpop.permute.xlu0 %729
      %v732 = vsel %vm364, %v728, 0
      %v735 = vsel %vm364, %v730, 0
      %737 = vmatprep.subr.bf16.mxu0 0
      %738 = vmatpush1.bf16.xpose.msra.mxu0 0
      %739 = vmatprep.subr.bf16.mxu0 0
      %740 = vmatpush1.bf16.xpose.msra.mxu0 0
      %741 = vmatprep.subr.bf16.mxu0 0
      %742 = vmatpush1.bf16.xpose.msra.mxu0 0
      %743 = vmatprep.subr.bf16.mxu0 0
      %744 = vmatpush1.bf16.xpose.msra.mxu0 0
      %745 = vmatprep.subr.bf16.mxu0 0
      %746 = vmatpush1.bf16.xpose.msra.mxu0 0
      %747 = vmatprep.subr.bf16.mxu0 0
      %748 = vmatpush1.bf16.xpose.msra.mxu0 0
      %749 = vmatprep.subr.bf16.mxu0 0
      %750 = vmatpush1.bf16.xpose.msra.mxu0 0
      %751 = vmatprep.subr.bf16.mxu0 0
      %752 = vmatpush1.bf16.xpose.msra.mxu0 %v735
      %753 = vmatprep.subr.bf16.mxu0 0
      %754 = vmatpush2.bf16.xpose.msra.mxu0 0
      %755 = vmatprep.subr.bf16.mxu0 0
      %756 = vmatpush2.bf16.xpose.msra.mxu0 0
      %757 = vmatprep.subr.bf16.mxu0 0
      %758 = vmatpush2.bf16.xpose.msra.mxu0 0
      %759 = vmatprep.subr.bf16.mxu0 0
      %760 = vmatpush2.bf16.xpose.msra.mxu0 0
      %761 = vmatprep.subr.bf16.mxu0 0
      %762 = vmatpush2.bf16.xpose.msra.mxu0 0
      %763 = vmatprep.subr.bf16.mxu0 0
      %764 = vmatpush2.bf16.xpose.msra.mxu0 0
      %765 = vmatprep.subr.bf16.mxu0 0
      %766 = vmatpush2.bf16.xpose.msra.mxu0 0
      %767 = vmatprep.subr.bf16.mxu0 0
      %768 = vmatpush2.bf16.xpose.msra.mxu0 0
      %769 = vmatprep.mubr.bf16.mxu0 0
      %770 = vmatmul.mubr.bf16.gmra.mxu0 %v732
      %v771 = vpop.f32.mrf.mxu0
      %v772 = vadd.f32 0.0, %v771
      %v773 = vpop.f32.mrf.mxu0
      %v774 = vpop.f32.mrf.mxu0
      %v775 = vpop.f32.mrf.mxu0
      %776 = vdwg.mxu0
      %v777 = vsel %vm413, %v772, -1e+09
      %v778 = vsel %vm364, %v777, -inf
      %779 = vmax.xlane.f32.xlu0 %v778
      %v780 = vpop.xlane.xlu0 %779
      %v781 = vsub.f32 %v777, %v780
      %v782 = vmul.f32 %v781, 1.442695
      %v783 = vpow.pop %v782
      %v784 = vsel %vm364, %v783, 0.0
      %785 = vadd.xlane.f32.xlu0 %v784
      %v786 = vpop.xlane.xlu0 %785
      %v787 = vrcp.pop %v786
      %v788 = vmul.f32 %v783, %v787
      %v789 = vpack.c.bf16 %v788, %v788
      %790 = vrot.lane.b32.xlu0 %v441, 104
      %v791 = vpop.permute.xlu0 %790
      %v793 = vsel %vm364, %v789, 0
      %v796 = vsel %vm445, %v791, 0
      %798 = vmatprep.subr.bf16.mxu0 0
      %799 = vmatpush1.bf16.msra.mxu0 0
      %800 = vmatprep.subr.bf16.mxu0 0
      %801 = vmatpush1.bf16.msra.mxu0 0
      %802 = vmatprep.subr.bf16.mxu0 0
      %803 = vmatpush1.bf16.msra.mxu0 0
      %804 = vmatprep.subr.bf16.mxu0 0
      %805 = vmatpush1.bf16.msra.mxu0 0
      %806 = vmatprep.subr.bf16.mxu0 0
      %807 = vmatpush1.bf16.msra.mxu0 0
      %808 = vmatprep.subr.bf16.mxu0 0
      %809 = vmatpush1.bf16.msra.mxu0 0
      %810 = vmatprep.subr.bf16.mxu0 0
      %811 = vmatpush1.bf16.msra.mxu0 0
      %812 = vmatprep.subr.bf16.mxu0 0
      %813 = vmatpush1.bf16.msra.mxu0 %v796
      %814 = vmatprep.subr.bf16.mxu0 0
      %815 = vmatpush2.bf16.msra.mxu0 0
      %816 = vmatprep.subr.bf16.mxu0 0
      %817 = vmatpush2.bf16.msra.mxu0 0
      %818 = vmatprep.subr.bf16.mxu0 0
      %819 = vmatpush2.bf16.msra.mxu0 0
      %820 = vmatprep.subr.bf16.mxu0 0
      %821 = vmatpush2.bf16.msra.mxu0 0
      %822 = vmatprep.subr.bf16.mxu0 0
      %823 = vmatpush2.bf16.msra.mxu0 0
      %824 = vmatprep.subr.bf16.mxu0 0
      %825 = vmatpush2.bf16.msra.mxu0 0
      %826 = vmatprep.subr.bf16.mxu0 0
      %827 = vmatpush2.bf16.msra.mxu0 0
      %828 = vmatprep.subr.bf16.mxu0 0
      %829 = vmatpush2.bf16.msra.mxu0 0
      %830 = vmatprep.mubr.bf16.mxu0 0
      %831 = vmatmul.mubr.bf16.gmra.mxu0 %v793
      %v832 = vpop.f32.mrf.mxu0
      %v833 = vadd.f32 0.0, %v832
      %v834 = vpop.f32.mrf.mxu0
      %v835 = vpop.f32.mrf.mxu0
      %v836 = vpop.f32.mrf.mxu0
      %837 = vdwg.mxu0
      %839 = vrot.lane.b32.xlu0 %v833, 24
      %v840 = vpop.permute.xlu0 %839
      %vm842 = vcmask 261312
      %843 = vst.msk [vmem:[#allocation2] sm:$0xff] %vm842, %v840
      %v844 = vld [vmem:[#allocation2] sm:$0xff]
      %v845 = vpack.c.bf16 %v844, %v844
      %vm846 = vcmask 257024
      %847 = vst.msk [vmem:[%s199] sm:$0xf] %vm846, %v845
      %p848 = scmp.lt.s32.totalorder %s14, 1
      %s849 = scalar_select %p848, %s14, 1
      %s850 = smul.addr %s849, 4
      %s851 = scalar_lea.vmem %s3, %s850
      // Predicated region
      $region33: #{decoder_forward.24} parent=31 // pred_check
        %p852 = pneg %p110
      $region34: #{decoder_forward.24} parent=31 // pred_check_branch
        %854 = sbr.rel (%p852) target = $region36
      $region35: #{decoder_forward.24} parent=31 // pred_region
        _
      $region36: #{decoder_forward.24} parent=31 // pred_fallthru
        _
    $region32: #{decoder_forward.24} parent=5 // pred_fallthru
      _
    %p855 = scmp.le.s32.totalorder 2, %s9
    // Predicated region
    $region37: #{decoder_forward.24} parent=5 // pred_check
      %p856 = pneg %p855
    $region38: #{decoder_forward.24} parent=5 // pred_check_branch
      %858 = sbr.rel (%p856) target = $region40
    $region39: #{decoder_forward.24} parent=5 // pred_region
      %s859 = ssub.s32 %s9, 2
      // Predicated region
      $region41: #{decoder_forward.24} parent=39 // pred_check
        %p860 = pneg %p116
      $region42: #{decoder_forward.24} parent=39 // pred_check_branch
        %862 = sbr.rel (%p860) target = $region44
      $region43: #{decoder_forward.24} parent=39 // pred_region
        %p863 = scmp.lt.s32.totalorder %s15, 1
        %s864 = scalar_select %p863, %s15, 1
        %s865 = smul.addr %s864, 4
        %s866 = scalar_lea.vmem %s3, %s865
      $region44: #{decoder_forward.24} parent=39 // pred_fallthru
        _
    $region40: #{decoder_forward.24} parent=5 // pred_fallthru
      _
  $region6: #{decoder_forward.24} parent=0 // loop_footer
    %s13 = sadd.s32 1, %s9
  $region7: #{decoder_forward.24} parent=0 // loop_footer_branch
    %8 = sbr.rel target = $region3
  $region8: #{decoder_forward.24} parent=0 // loop_exit
    _

// kernel: decoder_forward.27
$region0: #{decoder_forward.27}
  #allocation0 [shape = 'u32[]', space=smem, size = 0x4, offset = 0x4, fixed_abs, tag = 'smem constant byte address 0x4 - core index']
  #allocation1 [shape = 'u32[144,128]{1,0:T(1,128)}', space=vmem, size = 0x12000, scoped, tag = 'internal scratch']
  #allocation2 [shape = 'f32[16,32]{1,0:T(8,128)}', space=vmem, size = 0x2000, scoped, tag = 'scratch operand']
  %s0 = inlined_call_operand.vmem [shape: bf16[16,64], index: 0, kind: input, shape index: {}]
  %s1 = inlined_call_operand.vmem [shape: bf16[64,32], index: 1, kind: input, shape index: {}]
  %s2 = inlined_call_operand.vmem [shape: f32[1,32], index: 2, kind: input, shape index: {}]
  %s3 = inlined_call_operand.vmem [shape: f32[16,32], index: 3, kind: input, shape index: {}]
  %s4 = inlined_call_operand.vmem [shape: f32[1,32], index: 4, kind: input, shape index: {}]
  %s5 = inlined_call_operand.vmem [shape: f32[1,32], index: 5, kind: input, shape index: {}]
  %s6 = inlined_call_operand.vmem [shape: f32[16,32], index: 6, kind: output, shape index: {}]
  %s7 = sld [smem:[#allocation0]]
  $region42: #{decoder_forward.27} parent=0
    _
  %s9 = ssub.s32 1, %s7
  %s10 = scalar_select 0, %s9, %s7
  // Predicated region
  $region2: #{decoder_forward.27} parent=0 // pred_check
    _
  $region3: #{decoder_forward.27} parent=0 // pred_check_branch
    %12 = sbr.rel (0) target = $region5
  $region4: #{decoder_forward.27} parent=0 // pred_region
    _
  $region5: #{decoder_forward.27} parent=0 // pred_fallthru
    _
  // Predicated region
  $region6: #{decoder_forward.27} parent=0 // pred_check
    _
  $region7: #{decoder_forward.27} parent=0 // pred_check_branch
    %14 = sbr.rel (0) target = $region9
  $region8: #{decoder_forward.27} parent=0 // pred_region
    _
  $region9: #{decoder_forward.27} parent=0 // pred_fallthru
    _
  // Predicated region
  $region10: #{decoder_forward.27} parent=0 // pred_check
    _
  $region11: #{decoder_forward.27} parent=0 // pred_check_branch
    %16 = sbr.rel (0) target = $region13
  $region12: #{decoder_forward.27} parent=0 // pred_region
    _
  $region13: #{decoder_forward.27} parent=0 // pred_fallthru
    _
  // Predicated region
  $region14: #{decoder_forward.27} parent=0 // pred_check
    _
  $region15: #{decoder_forward.27} parent=0 // pred_check_branch
    %18 = sbr.rel (0) target = $region17
  $region16: #{decoder_forward.27} parent=0 // pred_region
    _
  $region17: #{decoder_forward.27} parent=0 // pred_fallthru
    _
  // Predicated region
  $region18: #{decoder_forward.27} parent=0 // pred_check
    _
  $region19: #{decoder_forward.27} parent=0 // pred_check_branch
    %20 = sbr.rel (0) target = $region21
  $region20: #{decoder_forward.27} parent=0 // pred_region
    _
  $region21: #{decoder_forward.27} parent=0 // pred_fallthru
    _
  // Predicated region
  $region22: #{decoder_forward.27} parent=0 // pred_check
    _
  $region23: #{decoder_forward.27} parent=0 // pred_check_branch
    %22 = sbr.rel (0) target = $region25
  $region24: #{decoder_forward.27} parent=0 // pred_region
    _
  $region25: #{decoder_forward.27} parent=0 // pred_fallthru
    _
  %p24 = scmp.eq.s32.totalorder 0, 0
  // Predicated region
  $region26: #{decoder_forward.27} parent=0 // pred_check
    %p25 = pneg %p24
  $region27: #{decoder_forward.27} parent=0 // pred_check_branch
    %27 = sbr.rel (%p25) target = $region29
  $region28: #{decoder_forward.27} parent=0 // pred_region
    %vm28 = vcmask 261120
    %29 = vst.msk [vmem:[#allocation2] sm:$0xff] %vm28, 0.0
    %30 = vst.msk [vmem:[#allocation2 + $0x8] sm:$0xff] %vm28, 0.0
  $region29: #{decoder_forward.27} parent=0 // pred_fallthru
    _
  %v31 = vld [vmem:[#allocation2] sm:$0xff]
  %v32 = vld [vmem:[#allocation2 + $0x8] sm:$0xff]
  %v33 = vld [vmem:[%s0] sm:$0xf]
  %v34 = vld [vmem:[%s0 + $0x4] sm:$0xf]
  %v35 = vld [vmem:[%s1] sm:$0xf]
  %v36 = vld [vmem:[%s1 + $0x4] sm:$0xf]
  %v37 = vld [vmem:[%s1 + $0x8] sm:$0xf]
  %v38 = vld [vmem:[%s1 + $0xc] sm:$0xf]
  %v39 = vld [vmem:[%s1 + $0x10] sm:$0xf]
  %v40 = vld [vmem:[%s1 + $0x14] sm:$0xf]
  %v41 = vld [vmem:[%s1 + $0x18] sm:$0xf]
  %v42 = vld [vmem:[%s1 + $0x1c] sm:$0xf]
  %v45 = vunpack.c.l.b16 %v33
  %v46 = vunpack.c.l.b16 %v34
  %v47 = vpack.c.b16 %v46, %v45
  %v56 = vunpack.c.l.b16 %v35
  %v57 = vunpack.c.l.b16 %v36
  %v58 = vunpack.c.l.b16 %v37
  %v59 = vunpack.c.l.b16 %v38
  %v60 = vunpack.c.l.b16 %v39
  %v61 = vunpack.c.l.b16 %v40
  %v62 = vunpack.c.l.b16 %v41
  %v63 = vunpack.c.l.b16 %v42
  %v64 = vpack.c.b16 %v57, %v56
  %v65 = vpack.c.b16 %v59, %v58
  %v66 = vpack.c.b16 %v61, %v60
  %v67 = vpack.c.b16 %v63, %v62
  %vm72 = vcmask 523264
  %v74 = vsel %vm72, %v47, 0
  %76 = vmatprep.subr.bf16.mxu0 0
  %77 = vmatpush1.bf16.msra.mxu0 0
  %78 = vmatprep.subr.bf16.mxu0 0
  %79 = vmatpush1.bf16.msra.mxu0 0
  %80 = vmatprep.subr.bf16.mxu0 0
  %81 = vmatpush1.bf16.msra.mxu0 0
  %82 = vmatprep.subr.bf16.mxu0 0
  %83 = vmatpush1.bf16.msra.mxu0 0
  %84 = vmatprep.subr.bf16.mxu0 0
  %85 = vmatpush1.bf16.msra.mxu0 %v67
  %86 = vmatprep.subr.bf16.mxu0 0
  %87 = vmatpush1.bf16.msra.mxu0 %v66
  %88 = vmatprep.subr.bf16.mxu0 0
  %89 = vmatpush1.bf16.msra.mxu0 %v65
  %90 = vmatprep.subr.bf16.mxu0 0
  %91 = vmatpush1.bf16.msra.mxu0 %v64
  %92 = vmatprep.subr.bf16.mxu0 0
  %93 = vmatpush2.bf16.msra.mxu0 0
  %94 = vmatprep.subr.bf16.mxu0 0
  %95 = vmatpush2.bf16.msra.mxu0 0
  %96 = vmatprep.subr.bf16.mxu0 0
  %97 = vmatpush2.bf16.msra.mxu0 0
  %98 = vmatprep.subr.bf16.mxu0 0
  %99 = vmatpush2.bf16.msra.mxu0 0
  %100 = vmatprep.subr.bf16.mxu0 0
  %101 = vmatpush2.bf16.msra.mxu0 0
  %102 = vmatprep.subr.bf16.mxu0 0
  %103 = vmatpush2.bf16.msra.mxu0 0
  %104 = vmatprep.subr.bf16.mxu0 0
  %105 = vmatpush2.bf16.msra.mxu0 0
  %106 = vmatprep.subr.bf16.mxu0 0
  %107 = vmatpush2.bf16.msra.mxu0 0
  %108 = vmatprep.mubr.bf16.mxu0 0
  %109 = vmatmul.mubr.bf16.gmra.mxu0 %v74
  %v110 = vpop.f32.mrf.mxu0
  %v111 = vadd.f32 0.0, %v110
  %v112 = vpop.f32.mrf.mxu0
  %v113 = vpop.f32.mrf.mxu0
  %v114 = vadd.f32 0.0, %v113
  %v115 = vpop.f32.mrf.mxu0
  %116 = vdwg.mxu0
  %v117 = vadd.f32 %v31, %v111
  %v118 = vadd.f32 %v32, %v114
  %vm119 = vcmask 261120
  %120 = vst.msk [vmem:[#allocation2] sm:$0xff] %vm119, %v117
  %121 = vst.msk [vmem:[#allocation2 + $0x8] sm:$0xff] %vm119, %v118
  // Predicated region
  $region30: #{decoder_forward.27} parent=0 // pred_check
    %p122 = pneg %p24
  $region31: #{decoder_forward.27} parent=0 // pred_check_branch
    %124 = sbr.rel (%p122) target = $region33
  $region32: #{decoder_forward.27} parent=0 // pred_region
    %v125 = vld [vmem:[#allocation2] sm:$0xff]
    %v126 = vld [vmem:[#allocation2 + $0x8] sm:$0xff]
    %v127 = vld [vmem:[%s2] sm:$0x1]
    %v129 = vlaneseq
    %v130 = vshrl.u32 %v129, 7
    %v131 = vsub.s32 0, %v130
    %v132 = vrot.slane %v127, %v131
    %v134 = vadd.f32 %v125, %v132
    %v135 = vadd.f32 %v126, %v132
    %v136 = vld [vmem:[%s3] sm:$0xff]
    %v137 = vld [vmem:[%s3 + $0x8] sm:$0xff]
    %v138 = vadd.f32 %v134, %v136
    %v139 = vadd.f32 %v135, %v137
    %v140 = vsel %vm119, %v138, 0.0
    %141 = vadd.xlane.f32.xlu0 %v140
    %v142 = vpop.xlane.xlu0 %141
    %v143 = vsel %vm119, %v139, 0.0
    %144 = vadd.xlane.f32.xlu0 %v143
    %v145 = vpop.xlane.xlu0 %144
    %v146 = vrcp.pop 32.0
    %v147 = vmul.f32 %v142, %v146
    %v148 = vmul.f32 %v145, %v146
    %v149 = vsub.f32 %v138, %v147
    %v150 = vsub.f32 %v139, %v148
    %v151 = vmul.f32 %v149, %v149
    %v152 = vmul.f32 %v150, %v150
    %v153 = vsel %vm119, %v151, 0.0
    %154 = vadd.xlane.f32.xlu0 %v153
    %v155 = vpop.xlane.xlu0 %154
    %v156 = vsel %vm119, %v152, 0.0
    %157 = vadd.xlane.f32.xlu0 %v156
    %v158 = vpop.xlane.xlu0 %157
    %v159 = vmul.f32 %v155, %v146
    %v160 = vmul.f32 %v158, %v146
    %v161 = vadd.f32 %v159, 1e-05
    %v162 = vadd.f32 %v160, 1e-05
    %v163 = vrsqrt.pop %v161
    %v164 = vrsqrt.pop %v162
    %v165 = vmul.f32 %v149, %v163
    %v166 = vmul.f32 %v150, %v164
    %v167 = vld [vmem:[%s4] sm:$0x1]
    %v169 = vlaneseq
    %v170 = vshrl.u32 %v169, 7
    %v171 = vsub.s32 0, %v170
    %v172 = vrot.slane %v167, %v171
    %v174 = vmul.f32 %v165, %v172
    %v175 = vmul.f32 %v166, %v172
    %v176 = vld [vmem:[%s5] sm:$0x1]
    %v178 = vlaneseq
    %v179 = vshrl.u32 %v178, 7
    %v180 = vsub.s32 0, %v179
    %v181 = vrot.slane %v176, %v180
    %v183 = vadd.f32 %v174, %v181
    %v184 = vadd.f32 %v175, %v181
    %185 = vst.msk [vmem:[%s6] sm:$0xff] %vm119, %v183
    %186 = vst.msk [vmem:[%s6 + $0x8] sm:$0xff] %vm119, %v184
  $region33: #{decoder_forward.27} parent=0 // pred_fallthru
    _
  // Predicated region
  $region34: #{decoder_forward.27} parent=0 // pred_check
    _
  $region35: #{decoder_forward.27} parent=0 // pred_check_branch
    %188 = sbr.rel (0) target = $region37
  $region36: #{decoder_forward.27} parent=0 // pred_region
    _
  $region37: #{decoder_forward.27} parent=0 // pred_fallthru
    _
  // Predicated region
  $region38: #{decoder_forward.27} parent=0 // pred_check
    _
  $region39: #{decoder_forward.27} parent=0 // pred_check_branch
    %190 = sbr.rel (0) target = $region41
  $region40: #{decoder_forward.27} parent=0 // pred_region
    _
  $region41: #{decoder_forward.27} parent=0 // pred_fallthru
    _

// kernel: decoder_forward.37
$region0: #{decoder_forward.37}
  #allocation0 [shape = 'u32[]', space=smem, size = 0x4, offset = 0x4, fixed_abs, tag = 'smem constant byte address 0x4 - core index']
  #allocation1 [shape = 'u32[144,128]{1,0:T(1,128)}', space=vmem, size = 0x12000, scoped, tag = 'internal scratch']
  #allocation2 [shape = 'f32[16,128]{1,0:T(8,128)}', space=vmem, size = 0x2000, scoped, tag = 'scratch operand']
  %s0 = inlined_call_operand.vmem [shape: bf16[16,32], index: 0, kind: input, shape index: {}]
  %s1 = inlined_call_operand.vmem [shape: bf16[32,128], index: 1, kind: input, shape index: {}]
  %s2 = inlined_call_operand.vmem [shape: f32[1,128], index: 2, kind: input, shape index: {}]
  %s3 = inlined_call_operand.vmem [shape: f32[16,128], index: 3, kind: output, shape index: {}]
  %s4 = sld [smem:[#allocation0]]
  $region30: #{decoder_forward.37} parent=0
    _
  %s6 = ssub.s32 1, %s4
  %s7 = scalar_select 0, %s6, %s4
  // Predicated region
  $region2: #{decoder_forward.37} parent=0 // pred_check
    _
  $region3: #{decoder_forward.37} parent=0 // pred_check_branch
    %9 = sbr.rel (0) target = $region5
  $region4: #{decoder_forward.37} parent=0 // pred_region
    _
  $region5: #{decoder_forward.37} parent=0 // pred_fallthru
    _
  // Predicated region
  $region6: #{decoder_forward.37} parent=0 // pred_check
    _
  $region7: #{decoder_forward.37} parent=0 // pred_check_branch
    %11 = sbr.rel (0) target = $region9
  $region8: #{decoder_forward.37} parent=0 // pred_region
    _
  $region9: #{decoder_forward.37} parent=0 // pred_fallthru
    _
  // Predicated region
  $region10: #{decoder_forward.37} parent=0 // pred_check
    _
  $region11: #{decoder_forward.37} parent=0 // pred_check_branch
    %13 = sbr.rel (0) target = $region13
  $region12: #{decoder_forward.37} parent=0 // pred_region
    _
  $region13: #{decoder_forward.37} parent=0 // pred_fallthru
    _
  %p15 = scmp.eq.s32.totalorder 0, 0
  // Predicated region
  $region14: #{decoder_forward.37} parent=0 // pred_check
    %p16 = pneg %p15
  $region15: #{decoder_forward.37} parent=0 // pred_check_branch
    %18 = sbr.rel (%p16) target = $region17
  $region16: #{decoder_forward.37} parent=0 // pred_region
    %19 = vst [vmem:[#allocation2] sm:$0xff] 0.0
    %20 = vst [vmem:[#allocation2 + $0x8] sm:$0xff] 0.0
  $region17: #{decoder_forward.37} parent=0 // pred_fallthru
    _
  %v21 = vld [vmem:[#allocation2] sm:$0xff]
  %v22 = vld [vmem:[#allocation2 + $0x8] sm:$0xff]
  %v23 = vld [vmem:[%s0] sm:$0xf]
  %v24 = vld [vmem:[%s0 + $0x4] sm:$0xf]
  %v25 = vld [vmem:[%s1] sm:$0xf]
  %v26 = vld [vmem:[%s1 + $0x4] sm:$0xf]
  %v27 = vld [vmem:[%s1 + $0x8] sm:$0xf]
  %v28 = vld [vmem:[%s1 + $0xc] sm:$0xf]
  %v31 = vunpack.c.l.b16 %v23
  %v32 = vunpack.c.l.b16 %v24
  %v33 = vpack.c.b16 %v32, %v31
  %v38 = vunpack.c.l.b16 %v25
  %v39 = vunpack.c.l.b16 %v26
  %v40 = vunpack.c.l.b16 %v27
  %v41 = vunpack.c.l.b16 %v28
  %v42 = vpack.c.b16 %v39, %v38
  %v43 = vpack.c.b16 %v41, %v40
  %vm46 = vcmask 261120
  %v48 = vsel %vm46, %v33, 0
  %50 = vmatprep.subr.bf16.mxu0 0
  %51 = vmatpush1.bf16.msra.mxu0 0
  %52 = vmatprep.subr.bf16.mxu0 0
  %53 = vmatpush1.bf16.msra.mxu0 0
  %54 = vmatprep.subr.bf16.mxu0 0
  %55 = vmatpush1.bf16.msra.mxu0 0
  %56 = vmatprep.subr.bf16.mxu0 0
  %57 = vmatpush1.bf16.msra.mxu0 0
  %58 = vmatprep.subr.bf16.mxu0 0
  %59 = vmatpush1.bf16.msra.mxu0 0
  %60 = vmatprep.subr.bf16.mxu0 0
  %61 = vmatpush1.bf16.msra.mxu0 0
  %62 = vmatprep.subr.bf16.mxu0 0
  %63 = vmatpush1.bf16.msra.mxu0 %v43
  %64 = vmatprep.subr.bf16.mxu0 0
  %65 = vmatpush1.bf16.msra.mxu0 %v42
  %66 = vmatprep.subr.bf16.mxu0 0
  %67 = vmatpush2.bf16.msra.mxu0 0
  %68 = vmatprep.subr.bf16.mxu0 0
  %69 = vmatpush2.bf16.msra.mxu0 0
  %70 = vmatprep.subr.bf16.mxu0 0
  %71 = vmatpush2.bf16.msra.mxu0 0
  %72 = vmatprep.subr.bf16.mxu0 0
  %73 = vmatpush2.bf16.msra.mxu0 0
  %74 = vmatprep.subr.bf16.mxu0 0
  %75 = vmatpush2.bf16.msra.mxu0 0
  %76 = vmatprep.subr.bf16.mxu0 0
  %77 = vmatpush2.bf16.msra.mxu0 0
  %78 = vmatprep.subr.bf16.mxu0 0
  %79 = vmatpush2.bf16.msra.mxu0 0
  %80 = vmatprep.subr.bf16.mxu0 0
  %81 = vmatpush2.bf16.msra.mxu0 0
  %82 = vmatprep.mubr.bf16.mxu0 0
  %83 = vmatmul.mubr.bf16.gmra.mxu0 %v48
  %v84 = vpop.f32.mrf.mxu0
  %v85 = vadd.f32 0.0, %v84
  %v86 = vpop.f32.mrf.mxu0
  %v87 = vpop.f32.mrf.mxu0
  %v88 = vadd.f32 0.0, %v87
  %v89 = vpop.f32.mrf.mxu0
  %90 = vdwg.mxu0
  %v91 = vadd.f32 %v21, %v85
  %v92 = vadd.f32 %v22, %v88
  %93 = vst [vmem:[#allocation2] sm:$0xff] %v91
  %94 = vst [vmem:[#allocation2 + $0x8] sm:$0xff] %v92
  // Predicated region
  $region18: #{decoder_forward.37} parent=0 // pred_check
    %p95 = pneg %p15
  $region19: #{decoder_forward.37} parent=0 // pred_check_branch
    %97 = sbr.rel (%p95) target = $region21
  $region20: #{decoder_forward.37} parent=0 // pred_region
    %v98 = vld [vmem:[#allocation2] sm:$0xff]
    %v99 = vld [vmem:[#allocation2 + $0x8] sm:$0xff]
    %v100 = vld [vmem:[%s2] sm:$0x1]
    %v102 = vlaneseq
    %v103 = vshrl.u32 %v102, 7
    %v104 = vsub.s32 0, %v103
    %v105 = vrot.slane %v100, %v104
    %v107 = vadd.f32 %v98, %v105
    %v108 = vadd.f32 %v99, %v105
    %109 = vst [vmem:[%s3] sm:$0xff] %v107
    %110 = vst [vmem:[%s3 + $0x8] sm:$0xff] %v108
  $region21: #{decoder_forward.37} parent=0 // pred_fallthru
    _
  // Predicated region
  $region22: #{decoder_forward.37} parent=0 // pred_check
    _
  $region23: #{decoder_forward.37} parent=0 // pred_check_branch
    %112 = sbr.rel (0) target = $region25
  $region24: #{decoder_forward.37} parent=0 // pred_region
    _
  $region25: #{decoder_forward.37} parent=0 // pred_fallthru
    _
  // Predicated region
  $region26: #{decoder_forward.37} parent=0 // pred_check
    _
  $region27: #{decoder_forward.37} parent=0 // pred_check_branch
    %114 = sbr.rel (0) target = $region29
  $region28: #{decoder_forward.37} parent=0 // pred_region
    _
  $region29: #{decoder_forward.37} parent=0 // pred_fallthru
    _

</llo_original>
